<compile_context>
chip_gen: v5e
topology: v5e:2x2
jax: 0.10.0
libtpu: 0.0.40
codegen_flags: <defaults>
</compile_context>

<pallas_src>
import functools

import jax
import jax.numpy as jnp
from jax.experimental import pallas as pl
from jax.experimental.pallas import tpu as pltpu

RRELU_SLOPE = (1.0 / 8.0 + 1.0 / 3.0) / 2.0  # nn.RReLU eval-mode negative slope
OUT_PAD = 128                                # lane-dense output slab width


def _rrelu(x):
    return jnp.where(x >= 0, x, x * RRELU_SLOPE)


def _round_up(x, m):
    return ((x + m - 1) // m) * m


# ----------------------------------------------------------------------------
# Fused Pallas kernel: Time2Vec -> masked 2-layer LSTM -> Linear + RReLU on h_n
# ----------------------------------------------------------------------------
def _node_rnn_kernel(times_ref, feats_ref, mask_ref,
                     t2v_w_ref, t2v_b_ref,
                     wih0_t2v_ref, wih0_feat_ref, b0_ref,
                     wrec_ref, wih1_ref, b1_ref,
                     wlin_ref, blin_ref,
                     out_ref, *, hidden):
    T, Bt, _ = times_ref.shape
    F = feats_ref.shape[-1]
    H = hidden
    t2v_dim = t2v_w_ref.shape[-1]

    # ---- Time2Vec: Linear(1, t2v) then sin() on every column but the first.
    # (iota lane-select instead of a lane-axis concatenation)
    times = times_ref[...]                                        # [T, Bt, 1]
    tw = t2v_w_ref[...].reshape(1, 1, t2v_dim)
    tb = t2v_b_ref[...].reshape(1, 1, t2v_dim)
    tv = times * tw + tb                                          # [T, Bt, t2v]
    lane = jax.lax.broadcasted_iota(jnp.int32, tv.shape, 2)
    tv = jnp.where(lane == 0, tv, jnp.sin(tv))

    # ---- layer-0 input-gate contributions for ALL timesteps in one fused matmul
    # pair (row-split matmul instead of concatenating [tv | feats]).  Kept as a
    # traced value: no VMEM scratch round-trip.  Bt % 8 == 0 -> reshape is
    # tile-aligned.
    tv2 = tv.reshape(T * Bt, t2v_dim)
    feats2 = feats_ref[...].reshape(T * Bt, F)
    g0_all = (jnp.dot(tv2, wih0_t2v_ref[...], preferred_element_type=jnp.float32)
              + jnp.dot(feats2, wih0_feat_ref[...], preferred_element_type=jnp.float32)
              + b0_ref[...]).reshape(T, Bt, 4 * H)                # [T, Bt, 4H]

    wrec = wrec_ref[...]          # [2H, 8H] = blockdiag(whh0, whh1)
    wih1 = wih1_ref[...]          # [H, 4H]
    b1 = b1_ref[...]              # [1, 4H]
    mask_all = mask_ref[...]      # [T, Bt, 1]

    # g-gate lane mask, hoisted once (JAX does not CSE broadcast_in_dim).
    lane4h = jax.lax.broadcasted_iota(jnp.int32, (Bt, 4 * H), 1)
    g_lane = jnp.logical_and(lane4h >= 2 * H, lane4h < 3 * H)

    def cell(gates, c_prev):
        # PyTorch gate order: i, f, g, o.  One dense sigmoid pass + one dense
        # tanh pass selected onto the g lanes (full 4H=128-wide vregs).
        act = jnp.where(g_lane, jnp.tanh(gates), jax.nn.sigmoid(gates))
        i = act[:, 0 * H:1 * H]
        f = act[:, 1 * H:2 * H]
        g = act[:, 2 * H:3 * H]
        o = act[:, 3 * H:4 * H]
        c = f * c_prev + i * g
        return o * jnp.tanh(c), c

    def step(carry, g0_t, m_t):
        h0, c0, h1, c1 = carry
        sel = jnp.broadcast_to(m_t > 0.0, (Bt, H))                # one predicate, 4 selects
        # Both layers' recurrent gate contributions in ONE N=8H matmul.
        rec = jnp.dot(jnp.concatenate([h0, h1], axis=-1), wrec,
                      preferred_element_type=jnp.float32)         # [Bt, 8H]
        # layer 0 (input contribution precomputed in g0_all)
        gates0 = g0_t + rec[:, :4 * H]
        h0n, c0n = cell(gates0, c0)
        h0 = jnp.where(sel, h0n, h0)
        c0 = jnp.where(sel, c0n, c0)
        # layer 1 (input = layer-0 output at this step)
        gates1 = (jnp.dot(h0, wih1, preferred_element_type=jnp.float32)
                  + rec[:, 4 * H:] + b1)
        h1n, c1n = cell(gates1, c1)
        h1 = jnp.where(sel, h1n, h1)
        c1 = jnp.where(sel, c1n, c1)
        return h0, c0, h1, c1

    z = jnp.zeros((Bt, H), jnp.float32)
    carry = (z, z, z, z)
    # TODO(synk): T is small/static here (full unroll == previous unroll=True);
    # for long sequences switch to lax.fori_loop with partial unroll (4-8) and a
    # VMEM ref for g0_all to bound code size / vreg live ranges.
    for t in range(T):
        carry = step(carry, g0_all[t], mask_all[t])
    h0, _, h1, _ = carry

    # ---- final Linear + RReLU(eval): one lane-dense matmul, one aligned store.
    hn = jnp.concatenate([h0, h1], axis=0)                        # [2*Bt, H]
    y = _rrelu(jnp.dot(hn, wlin_ref[...], preferred_element_type=jnp.float32)
               + blin_ref[...])                                   # [2*Bt, OUT_PAD]
    out_ref[...] = y.reshape(2, Bt, OUT_PAD)


def node_rnn_forward(times_tb, feats_tbf, mask_tb1, params, hidden, out_feats,
                     b_tile=None):
    T, B = times_tb.shape
    F = feats_tbf.shape[-1]
    if b_tile is None:
        b_tile = min(128, _round_up(B, 8))     # >= 8 sublane rows per tile
    B_pad = _round_up(B, b_tile)
    nb = B_pad // b_tile
    pad_b = B_pad - B

    # pad batch to a tile multiple (padded rows have mask 0 -> state stays 0)
    times = jnp.pad(times_tb, ((0, 0), (0, pad_b)))[:, :, None]   # [T, Bp, 1]
    feats = jnp.pad(feats_tbf, ((0, 0), (0, pad_b), (0, 0)))      # [T, Bp, F]
    mask = jnp.pad(mask_tb1, ((0, 0), (0, pad_b), (0, 0)))        # [T, Bp, 1]

    weights = (params['t2v_w'], params['t2v_b'],
               params['wih0_t2v'], params['wih0_feat'], params['b0'],
               params['wrec'], params['wih1'], params['b1'],
               params['wlin_pad'], params['blin_pad'])

    def rep(w):  # replicated (same block for every batch tile)
        return pl.BlockSpec(w.shape, lambda b: (0,) * w.ndim)

    in_specs = [pl.BlockSpec((T, b_tile, 1), lambda b: (0, b, 0)),
                pl.BlockSpec((T, b_tile, F), lambda b: (0, b, 0)),
                pl.BlockSpec((T, b_tile, 1), lambda b: (0, b, 0))]
    in_specs += [rep(w) for w in weights]

    # VMEM budget: double-buffered input/output tiles + g0 value + weights, with
    # headroom; capped at 48 MiB so tiles sized on v5e/v6e also fit v7x's 64 MiB.
    est = (T * b_tile * (2 + F) * 4 * 2
           + T * b_tile * 4 * hidden * 4
           + sum(int(w.size) * 4 for w in weights)
           + 2 * b_tile * OUT_PAD * 4 * 2)
    vmem_limit = int(min(max(4 * est, 8 * 1024 * 1024), 48 * 1024 * 1024))

    out = pl.pallas_call(
        functools.partial(_node_rnn_kernel, hidden=hidden),
        grid=(nb,),
        out_shape=jax.ShapeDtypeStruct((2, B_pad, OUT_PAD), jnp.float32),
        in_specs=in_specs,
        out_specs=pl.BlockSpec((2, b_tile, OUT_PAD), lambda b: (0, b, 0)),
        compiler_params=pltpu.CompilerParams(
            dimension_semantics=("parallel",),   # batch tiles shard across v7x's 2 TCs
            vmem_limit_bytes=vmem_limit),
    )(times, feats, mask, *weights)
    # TODO(synk): for very large batches cast matmul operands to bf16
    # (preferred_element_type=f32) to double MXU throughput and halve VMEM.
    return out[:, :B, :out_feats]                                 # [2, B, out_feats]


# ----------------------------------------------------------------------------
# Parameter construction (deterministic, PyTorch-style uniform init)
# ----------------------------------------------------------------------------
def _uniform(key, shape, bound):
    return jax.random.uniform(key, shape, jnp.float32, -bound, bound)


def make_params(key, in_feats, hidden, out_feats, t2v_dim):
    ks = jax.random.split(key, 12)
    H = hidden
    b_t2v = 1.0                      # fan_in = 1
    b_lstm = 1.0 / (H ** 0.5)
    b_lin = 1.0 / (H ** 0.5)

    t2v_w = _uniform(ks[0], (1, t2v_dim), b_t2v)
    t2v_b = _uniform(ks[1], (1, t2v_dim), b_t2v)

    in_total = in_feats + t2v_dim
    w_ih0 = _uniform(ks[2], (in_total, 4 * H), b_lstm)
    w_hh0 = _uniform(ks[3], (H, 4 * H), b_lstm)
    b_ih0 = _uniform(ks[4], (1, 4 * H), b_lstm)
    b_hh0 = _uniform(ks[5], (1, 4 * H), b_lstm)

    w_ih1 = _uniform(ks[6], (H, 4 * H), b_lstm)
    w_hh1 = _uniform(ks[7], (H, 4 * H), b_lstm)
    b_ih1 = _uniform(ks[8], (1, 4 * H), b_lstm)
    b_hh1 = _uniform(ks[9], (1, 4 * H), b_lstm)

    w_lin = _uniform(ks[10], (H, out_feats), b_lin)
    b_lin = _uniform(ks[11], (1, out_feats), b_lin)
    # lane-dense (128-wide) output slab: pad the final linear to OUT_PAD columns
    wlin_pad = jnp.zeros((H, OUT_PAD), jnp.float32).at[:, :out_feats].set(w_lin)
    blin_pad = jnp.zeros((1, OUT_PAD), jnp.float32).at[:, :out_feats].set(b_lin)

    # blockdiag recurrent weight: [h0|h1] @ wrec gives both layers' whh terms
    wrec = jnp.zeros((2 * H, 8 * H), jnp.float32)
    wrec = wrec.at[:H, :4 * H].set(w_hh0).at[H:, 4 * H:].set(w_hh1)

    return dict(
        t2v_w=t2v_w, t2v_b=t2v_b,
        # layer-0 input weight split by rows (t2v part / feature part)
        wih0_t2v=w_ih0[:t2v_dim], wih0_feat=w_ih0[t2v_dim:],
        whh0=w_hh0, b0=b_ih0 + b_hh0,
        wih1=w_ih1, whh1=w_hh1, b1=b_ih1 + b_hh1,
        wrec=wrec,
        wlin_pad=wlin_pad, blin_pad=blin_pad,
        w_lin=w_lin, b_lin=b_lin)


# ----------------------------------------------------------------------------
# Pure-JAX reference (mirrors the torch NodeRNN forward, packed-LSTM semantics)
# ----------------------------------------------------------------------------
def node_rnn_ref(times_tb, feats_tbf, mask_tb1, params, hidden, out_feats):
    T, B = times_tb.shape
    H = hidden
    tw = params['t2v_w'].reshape(1, 1, -1)
    tb = params['t2v_b'].reshape(1, 1, -1)
    tv = times_tb[:, :, None] * tw + tb
    tv = jnp.concatenate([tv[:, :, :1], jnp.sin(tv[:, :, 1:])], axis=-1)
    x = jnp.concatenate([tv, feats_tbf], axis=-1)
    wih0 = jnp.concatenate([params['wih0_t2v'], params['wih0_feat']], axis=0)

    def cell(gates, c):
        i = jax.nn.sigmoid(gates[:, :H])
        f = jax.nn.sigmoid(gates[:, H:2 * H])
        g = jnp.tanh(gates[:, 2 * H:3 * H])
        o = jax.nn.sigmoid(gates[:, 3 * H:])
        c = f * c + i * g
        return o * jnp.tanh(c), c

    h0 = c0 = h1 = c1 = jnp.zeros((B, H), jnp.float32)
    for t in range(T):
        m = mask_tb1[t]
        g0 = x[t] @ wih0 + params['b0'] + h0 @ params['whh0']
        h0n, c0n = cell(g0, c0)
        h0 = jnp.where(m > 0, h0n, h0)
        c0 = jnp.where(m > 0, c0n, c0)
        g1 = h0 @ params['wih1'] + params['b1'] + h1 @ params['whh1']
        h1n, c1n = cell(g1, c1)
        h1 = jnp.where(m > 0, h1n, h1)
        c1 = jnp.where(m > 0, c1n, c1)
    hn = jnp.stack([h0, h1], axis=0)                               # [2, B, H]
    return _rrelu(hn @ params['w_lin'] + params['b_lin'])


# ----------------------------------------------------------------------------
if __name__ == "__main__":
    key = jax.random.PRNGKey(0)
    B, T = 2, 8
    in_feats, t2v_dim, hidden, out_feats = 6, 8, 32, 16

    kp, kt, kx = jax.random.split(key, 3)
    params = make_params(kp, in_feats, hidden, out_feats, t2v_dim)

    # padded sequences + lengths (PackedSequence stand-in)
    lens = jnp.array([5, 8], dtype=jnp.int32)
    times_bt = jax.random.uniform(kt, (B, T), jnp.float32)
    feats_btf = jax.random.normal(kx, (B, T, in_feats), jnp.float32)
    idx = jnp.arange(T)[None, :]
    mask_bt = (idx < lens[:, None]).astype(jnp.float32)
    times_bt = times_bt * mask_bt
    feats_btf = feats_btf * mask_bt[:, :, None]

    # time-major layout for the recurrence (JAX glue, replaces pack/pad plumbing)
    times_tb = times_bt.T
    feats_tbf = jnp.transpose(feats_btf, (1, 0, 2))
    mask_tb1 = mask_bt.T[:, :, None]

    # --- Pallas forward (single fused kernel, batch-tiled grid) ---
    y = node_rnn_forward(times_tb, feats_tbf, mask_tb1, params, hidden, out_feats)
    y = jax.block_until_ready(y)

    # --- reference check ---
    y_ref = node_rnn_ref(times_tb, feats_tbf, mask_tb1, params, hidden, out_feats)

    assert y.shape == (2, B, out_feats)          # [num_layers, B, out_feats]
    assert jnp.allclose(y, y_ref, atol=1e-4, rtol=1e-4), "mismatch vs reference"

    # TODO(synk): torch PackedSequence pack/pad plumbing has no Pallas equivalent;
    # it is represented as padded time-major tensors + mask built in plain JAX.
    # TODO(synk): only the LSTM branch (module default net='LSTM') is implemented;
    # the GRU branch is omitted. nn.RReLU uses its eval-mode fixed slope.
    print("KERNEL_OK")
</pallas_src>

<mosaic_0001>
module attributes {stable_mosaic.version = 11 : i64} {
  func.func @_node_rnn_kernel(%arg0: i32, %arg1: memref<8x8x1xf32, #tpu.memory_space<vmem>>, %arg2: memref<8x8x6xf32, #tpu.memory_space<vmem>>, %arg3: memref<8x8x1xf32, #tpu.memory_space<vmem>>, %arg4: memref<1x8xf32, #tpu.memory_space<vmem>>, %arg5: memref<1x8xf32, #tpu.memory_space<vmem>>, %arg6: memref<8x128xf32, #tpu.memory_space<vmem>>, %arg7: memref<6x128xf32, #tpu.memory_space<vmem>>, %arg8: memref<1x128xf32, #tpu.memory_space<vmem>>, %arg9: memref<64x256xf32, #tpu.memory_space<vmem>>, %arg10: memref<32x128xf32, #tpu.memory_space<vmem>>, %arg11: memref<1x128xf32, #tpu.memory_space<vmem>>, %arg12: memref<32x128xf32, #tpu.memory_space<vmem>>, %arg13: memref<1x128xf32, #tpu.memory_space<vmem>>, %arg14: memref<2x8x128xf32, #tpu.memory_space<vmem>>) attributes {dimension_semantics = [#tpu.dimension_semantics<parallel>], iteration_bounds = array<i64: 1>, scalar_prefetch = 0 : i64, scratch_operands = 0 : i64, tpu.core_type = #tpu.core_type<tc>, window_params = [{transform_indices = @transform_0, window_bounds = array<i64: 8, 8, 1>}, {transform_indices = @transform_1, window_bounds = array<i64: 8, 8, 6>}, {transform_indices = @transform_2, window_bounds = array<i64: 8, 8, 1>}, {pipeline_mode = #tpu.pipeline_mode<synchronous>, transform_indices = @transform_3, window_bounds = array<i64: 1, 8>}, {pipeline_mode = #tpu.pipeline_mode<synchronous>, transform_indices = @transform_4, window_bounds = array<i64: 1, 8>}, {pipeline_mode = #tpu.pipeline_mode<synchronous>, transform_indices = @transform_5, window_bounds = array<i64: 8, 128>}, {pipeline_mode = #tpu.pipeline_mode<synchronous>, transform_indices = @transform_6, window_bounds = array<i64: 6, 128>}, {pipeline_mode = #tpu.pipeline_mode<synchronous>, transform_indices = @transform_7, window_bounds = array<i64: 1, 128>}, {pipeline_mode = #tpu.pipeline_mode<synchronous>, transform_indices = @transform_8, window_bounds = array<i64: 64, 256>}, {pipeline_mode = #tpu.pipeline_mode<synchronous>, transform_indices = @transform_9, window_bounds = array<i64: 32, 128>}, {pipeline_mode = #tpu.pipeline_mode<synchronous>, transform_indices = @transform_10, window_bounds = array<i64: 1, 128>}, {pipeline_mode = #tpu.pipeline_mode<synchronous>, transform_indices = @transform_11, window_bounds = array<i64: 32, 128>}, {pipeline_mode = #tpu.pipeline_mode<synchronous>, transform_indices = @transform_12, window_bounds = array<i64: 1, 128>}, {transform_indices = @transform_13, window_bounds = array<i64: 2, 8, 128>}]} {
    %c0 = arith.constant 0 : index
    %c0_0 = arith.constant 0 : index
    %c0_1 = arith.constant 0 : index
    %0 = vector.load %arg1[%c0, %c0_0, %c0_1] : memref<8x8x1xf32, #tpu.memory_space<vmem>>, vector<8x8x1xf32>
    %c0_2 = arith.constant 0 : index
    %c0_3 = arith.constant 0 : index
    %1 = vector.load %arg4[%c0_2, %c0_3] : memref<1x8xf32, #tpu.memory_space<vmem>>, vector<1x8xf32>
    %2 = vector.shape_cast %1 : vector<1x8xf32> to vector<1x1x8xf32>
    %c0_4 = arith.constant 0 : index
    %c0_5 = arith.constant 0 : index
    %3 = vector.load %arg5[%c0_4, %c0_5] : memref<1x8xf32, #tpu.memory_space<vmem>>, vector<1x8xf32>
    %4 = vector.shape_cast %3 : vector<1x8xf32> to vector<1x1x8xf32>
    %5 = vector.broadcast %0 : vector<8x8x1xf32> to vector<8x8x8xf32>
    %6 = vector.broadcast %2 : vector<1x1x8xf32> to vector<8x8x8xf32>
    %7 = arith.mulf %5, %6 : vector<8x8x8xf32>
    %8 = vector.broadcast %4 : vector<1x1x8xf32> to vector<8x8x8xf32>
    %9 = arith.addf %7, %8 : vector<8x8x8xf32>
    %10 = tpu.iota {dimensions = array<i32: 2>} : vector<8x8x8xi32>
    %c0_i32 = arith.constant 0 : i32
    %11 = vector.broadcast %c0_i32 : i32 to vector<8x8x8xi32>
    %12 = arith.cmpi eq, %10, %11 : vector<8x8x8xi32>
    %13 = math.sin %9 : vector<8x8x8xf32>
    %14 = arith.select %12, %9, %13 : vector<8x8x8xi1>, vector<8x8x8xf32>
    %15 = vector.shape_cast %14 : vector<8x8x8xf32> to vector<64x8xf32>
    %c0_6 = arith.constant 0 : index
    %c0_7 = arith.constant 0 : index
    %c0_8 = arith.constant 0 : index
    %16 = vector.load %arg2[%c0_6, %c0_7, %c0_8] : memref<8x8x6xf32, #tpu.memory_space<vmem>>, vector<8x8x6xf32>
    %17 = vector.shape_cast %16 : vector<8x8x6xf32> to vector<64x6xf32>
    %c0_9 = arith.constant 0 : index
    %c0_10 = arith.constant 0 : index
    %18 = vector.load %arg6[%c0_9, %c0_10] : memref<8x128xf32, #tpu.memory_space<vmem>>, vector<8x128xf32>
    %cst = arith.constant dense<0.000000e+00> : vector<64x128xf32>
    %19 = tpu.matmul %15, %18, %cst {dimension_numbers = #tpu.dot_dimension_numbers<[1], [0], [0], [1], [0, 0, 1, 1], [], []>} : vector<64x8xf32>, vector<8x128xf32>, vector<64x128xf32> -> vector<64x128xf32>
    %c0_11 = arith.constant 0 : index
    %c0_12 = arith.constant 0 : index
    %20 = vector.load %arg7[%c0_11, %c0_12] : memref<6x128xf32, #tpu.memory_space<vmem>>, vector<6x128xf32>
    %cst_13 = arith.constant dense<0.000000e+00> : vector<64x128xf32>
    %21 = tpu.matmul %17, %20, %cst_13 {dimension_numbers = #tpu.dot_dimension_numbers<[1], [0], [0], [1], [0, 0, 1, 1], [], []>} : vector<64x6xf32>, vector<6x128xf32>, vector<64x128xf32> -> vector<64x128xf32>
    %22 = arith.addf %19, %21 : vector<64x128xf32>
    %c0_14 = arith.constant 0 : index
    %c0_15 = arith.constant 0 : index
    %23 = vector.load %arg8[%c0_14, %c0_15] : memref<1x128xf32, #tpu.memory_space<vmem>>, vector<1x128xf32>
    %24 = vector.broadcast %23 : vector<1x128xf32> to vector<64x128xf32>
    %25 = arith.addf %22, %24 : vector<64x128xf32>
    %26 = vector.shape_cast %25 : vector<64x128xf32> to vector<8x8x128xf32>
    %c0_16 = arith.constant 0 : index
    %c0_17 = arith.constant 0 : index
    %27 = vector.load %arg9[%c0_16, %c0_17] : memref<64x256xf32, #tpu.memory_space<vmem>>, vector<64x256xf32>
    %c0_18 = arith.constant 0 : index
    %c0_19 = arith.constant 0 : index
    %28 = vector.load %arg10[%c0_18, %c0_19] : memref<32x128xf32, #tpu.memory_space<vmem>>, vector<32x128xf32>
    %c0_20 = arith.constant 0 : index
    %c0_21 = arith.constant 0 : index
    %29 = vector.load %arg11[%c0_20, %c0_21] : memref<1x128xf32, #tpu.memory_space<vmem>>, vector<1x128xf32>
    %c0_22 = arith.constant 0 : index
    %c0_23 = arith.constant 0 : index
    %c0_24 = arith.constant 0 : index
    %30 = vector.load %arg3[%c0_22, %c0_23, %c0_24] : memref<8x8x1xf32, #tpu.memory_space<vmem>>, vector<8x8x1xf32>
    %31 = tpu.iota {dimensions = array<i32: 1>} : vector<8x128xi32>
    %c64_i32 = arith.constant 64 : i32
    %32 = vector.broadcast %c64_i32 : i32 to vector<8x128xi32>
    %33 = arith.cmpi sge, %31, %32 : vector<8x128xi32>
    %c96_i32 = arith.constant 96 : i32
    %34 = vector.broadcast %c96_i32 : i32 to vector<8x128xi32>
    %35 = arith.cmpi slt, %31, %34 : vector<8x128xi32>
    %36 = arith.andi %33, %35 : vector<8x128xi1>
    %cst_25 = arith.constant 0.000000e+00 : f32
    %37 = vector.broadcast %cst_25 : f32 to vector<8x32xf32>
    %38 = vector.extract_strided_slice %26 {offsets = [0, 0, 0], sizes = [1, 8, 128], strides = [1, 1, 1]} : vector<8x8x128xf32> to vector<1x8x128xf32>
    %39 = vector.shape_cast %38 : vector<1x8x128xf32> to vector<8x128xf32>
    %40 = vector.extract_strided_slice %30 {offsets = [0, 0, 0], sizes = [1, 8, 1], strides = [1, 1, 1]} : vector<8x8x1xf32> to vector<1x8x1xf32>
    %41 = vector.shape_cast %40 : vector<1x8x1xf32> to vector<8x1xf32>
    %cst_26 = arith.constant 0.000000e+00 : f32
    %42 = vector.broadcast %cst_26 : f32 to vector<8x1xf32>
    %43 = arith.cmpf ogt, %41, %42 : vector<8x1xf32>
    %44 = vector.shape_cast %43 : vector<8x1xi1> to vector<8x1xi1>
    %45 = vector.broadcast %44 : vector<8x1xi1> to vector<8x32xi1>
    %46 = tpu.concatenate %37, %37 in 1 : vector<8x32xf32>, vector<8x32xf32> -> vector<8x64xf32>
    %cst_27 = arith.constant dense<0.000000e+00> : vector<8x256xf32>
    %47 = tpu.matmul %46, %27, %cst_27 {dimension_numbers = #tpu.dot_dimension_numbers<[1], [0], [0], [1], [0, 0, 1, 1], [], []>} : vector<8x64xf32>, vector<64x256xf32>, vector<8x256xf32> -> vector<8x256xf32>
    %48 = vector.extract_strided_slice %47 {offsets = [0, 0], sizes = [8, 128], strides = [1, 1]} : vector<8x256xf32> to vector<8x128xf32>
    %49 = arith.addf %39, %48 : vector<8x128xf32>
    %50 = math.tanh %49 : vector<8x128xf32>
    %51 = arith.negf %49 : vector<8x128xf32>
    %52 = math.exp %51 : vector<8x128xf32>
    %cst_28 = arith.constant 1.000000e+00 : f32
    %53 = vector.broadcast %cst_28 : f32 to vector<8x128xf32>
    %54 = arith.addf %53, %52 : vector<8x128xf32>
    %55 = arith.divf %53, %54 : vector<8x128xf32>
    %56 = arith.select %36, %50, %55 : vector<8x128xi1>, vector<8x128xf32>
    %57 = vector.extract_strided_slice %56 {offsets = [0, 0], sizes = [8, 32], strides = [1, 1]} : vector<8x128xf32> to vector<8x32xf32>
    %58 = vector.extract_strided_slice %56 {offsets = [0, 32], sizes = [8, 32], strides = [1, 1]} : vector<8x128xf32> to vector<8x32xf32>
    %59 = vector.extract_strided_slice %56 {offsets = [0, 64], sizes = [8, 32], strides = [1, 1]} : vector<8x128xf32> to vector<8x32xf32>
    %60 = vector.extract_strided_slice %56 {offsets = [0, 96], sizes = [8, 32], strides = [1, 1]} : vector<8x128xf32> to vector<8x32xf32>
    %61 = arith.mulf %58, %37 : vector<8x32xf32>
    %62 = arith.mulf %57, %59 : vector<8x32xf32>
    %63 = arith.addf %61, %62 : vector<8x32xf32>
    %64 = math.tanh %63 : vector<8x32xf32>
    %65 = arith.mulf %60, %64 : vector<8x32xf32>
    %66 = arith.select %45, %65, %37 : vector<8x32xi1>, vector<8x32xf32>
    %67 = arith.select %45, %63, %37 : vector<8x32xi1>, vector<8x32xf32>
    %cst_29 = arith.constant dense<0.000000e+00> : vector<8x128xf32>
    %68 = tpu.matmul %66, %28, %cst_29 {dimension_numbers = #tpu.dot_dimension_numbers<[1], [0], [0], [1], [0, 0, 1, 1], [], []>} : vector<8x32xf32>, vector<32x128xf32>, vector<8x128xf32> -> vector<8x128xf32>
    %69 = vector.extract_strided_slice %47 {offsets = [0, 128], sizes = [8, 128], strides = [1, 1]} : vector<8x256xf32> to vector<8x128xf32>
    %70 = arith.addf %68, %69 : vector<8x128xf32>
    %71 = vector.broadcast %29 : vector<1x128xf32> to vector<8x128xf32>
    %72 = arith.addf %70, %71 : vector<8x128xf32>
    %73 = math.tanh %72 : vector<8x128xf32>
    %74 = arith.negf %72 : vector<8x128xf32>
    %75 = math.exp %74 : vector<8x128xf32>
    %cst_30 = arith.constant 1.000000e+00 : f32
    %76 = vector.broadcast %cst_30 : f32 to vector<8x128xf32>
    %77 = arith.addf %76, %75 : vector<8x128xf32>
    %78 = arith.divf %76, %77 : vector<8x128xf32>
    %79 = arith.select %36, %73, %78 : vector<8x128xi1>, vector<8x128xf32>
    %80 = vector.extract_strided_slice %79 {offsets = [0, 0], sizes = [8, 32], strides = [1, 1]} : vector<8x128xf32> to vector<8x32xf32>
    %81 = vector.extract_strided_slice %79 {offsets = [0, 32], sizes = [8, 32], strides = [1, 1]} : vector<8x128xf32> to vector<8x32xf32>
    %82 = vector.extract_strided_slice %79 {offsets = [0, 64], sizes = [8, 32], strides = [1, 1]} : vector<8x128xf32> to vector<8x32xf32>
    %83 = vector.extract_strided_slice %79 {offsets = [0, 96], sizes = [8, 32], strides = [1, 1]} : vector<8x128xf32> to vector<8x32xf32>
    %84 = arith.mulf %81, %37 : vector<8x32xf32>
    %85 = arith.mulf %80, %82 : vector<8x32xf32>
    %86 = arith.addf %84, %85 : vector<8x32xf32>
    %87 = math.tanh %86 : vector<8x32xf32>
    %88 = arith.mulf %83, %87 : vector<8x32xf32>
    %89 = arith.select %45, %88, %37 : vector<8x32xi1>, vector<8x32xf32>
    %90 = arith.select %45, %86, %37 : vector<8x32xi1>, vector<8x32xf32>
    %91 = vector.extract_strided_slice %26 {offsets = [1, 0, 0], sizes = [1, 8, 128], strides = [1, 1, 1]} : vector<8x8x128xf32> to vector<1x8x128xf32>
    %92 = vector.shape_cast %91 : vector<1x8x128xf32> to vector<8x128xf32>
    %93 = vector.extract_strided_slice %30 {offsets = [1, 0, 0], sizes = [1, 8, 1], strides = [1, 1, 1]} : vector<8x8x1xf32> to vector<1x8x1xf32>
    %94 = vector.shape_cast %93 : vector<1x8x1xf32> to vector<8x1xf32>
    %cst_31 = arith.constant 0.000000e+00 : f32
    %95 = vector.broadcast %cst_31 : f32 to vector<8x1xf32>
    %96 = arith.cmpf ogt, %94, %95 : vector<8x1xf32>
    %97 = vector.shape_cast %96 : vector<8x1xi1> to vector<8x1xi1>
    %98 = vector.broadcast %97 : vector<8x1xi1> to vector<8x32xi1>
    %99 = tpu.concatenate %66, %89 in 1 : vector<8x32xf32>, vector<8x32xf32> -> vector<8x64xf32>
    %cst_32 = arith.constant dense<0.000000e+00> : vector<8x256xf32>
    %100 = tpu.matmul %99, %27, %cst_32 {dimension_numbers = #tpu.dot_dimension_numbers<[1], [0], [0], [1], [0, 0, 1, 1], [], []>} : vector<8x64xf32>, vector<64x256xf32>, vector<8x256xf32> -> vector<8x256xf32>
    %101 = vector.extract_strided_slice %100 {offsets = [0, 0], sizes = [8, 128], strides = [1, 1]} : vector<8x256xf32> to vector<8x128xf32>
    %102 = arith.addf %92, %101 : vector<8x128xf32>
    %103 = math.tanh %102 : vector<8x128xf32>
    %104 = arith.negf %102 : vector<8x128xf32>
    %105 = math.exp %104 : vector<8x128xf32>
    %cst_33 = arith.constant 1.000000e+00 : f32
    %106 = vector.broadcast %cst_33 : f32 to vector<8x128xf32>
    %107 = arith.addf %106, %105 : vector<8x128xf32>
    %108 = arith.divf %106, %107 : vector<8x128xf32>
    %109 = arith.select %36, %103, %108 : vector<8x128xi1>, vector<8x128xf32>
    %110 = vector.extract_strided_slice %109 {offsets = [0, 0], sizes = [8, 32], strides = [1, 1]} : vector<8x128xf32> to vector<8x32xf32>
    %111 = vector.extract_strided_slice %109 {offsets = [0, 32], sizes = [8, 32], strides = [1, 1]} : vector<8x128xf32> to vector<8x32xf32>
    %112 = vector.extract_strided_slice %109 {offsets = [0, 64], sizes = [8, 32], strides = [1, 1]} : vector<8x128xf32> to vector<8x32xf32>
    %113 = vector.extract_strided_slice %109 {offsets = [0, 96], sizes = [8, 32], strides = [1, 1]} : vector<8x128xf32> to vector<8x32xf32>
    %114 = arith.mulf %111, %67 : vector<8x32xf32>
    %115 = arith.mulf %110, %112 : vector<8x32xf32>
    %116 = arith.addf %114, %115 : vector<8x32xf32>
    %117 = math.tanh %116 : vector<8x32xf32>
    %118 = arith.mulf %113, %117 : vector<8x32xf32>
    %119 = arith.select %98, %118, %66 : vector<8x32xi1>, vector<8x32xf32>
    %120 = arith.select %98, %116, %67 : vector<8x32xi1>, vector<8x32xf32>
    %cst_34 = arith.constant dense<0.000000e+00> : vector<8x128xf32>
    %121 = tpu.matmul %119, %28, %cst_34 {dimension_numbers = #tpu.dot_dimension_numbers<[1], [0], [0], [1], [0, 0, 1, 1], [], []>} : vector<8x32xf32>, vector<32x128xf32>, vector<8x128xf32> -> vector<8x128xf32>
    %122 = vector.extract_strided_slice %100 {offsets = [0, 128], sizes = [8, 128], strides = [1, 1]} : vector<8x256xf32> to vector<8x128xf32>
    %123 = arith.addf %121, %122 : vector<8x128xf32>
    %124 = vector.broadcast %29 : vector<1x128xf32> to vector<8x128xf32>
    %125 = arith.addf %123, %124 : vector<8x128xf32>
    %126 = math.tanh %125 : vector<8x128xf32>
    %127 = arith.negf %125 : vector<8x128xf32>
    %128 = math.exp %127 : vector<8x128xf32>
    %cst_35 = arith.constant 1.000000e+00 : f32
    %129 = vector.broadcast %cst_35 : f32 to vector<8x128xf32>
    %130 = arith.addf %129, %128 : vector<8x128xf32>
    %131 = arith.divf %129, %130 : vector<8x128xf32>
    %132 = arith.select %36, %126, %131 : vector<8x128xi1>, vector<8x128xf32>
    %133 = vector.extract_strided_slice %132 {offsets = [0, 0], sizes = [8, 32], strides = [1, 1]} : vector<8x128xf32> to vector<8x32xf32>
    %134 = vector.extract_strided_slice %132 {offsets = [0, 32], sizes = [8, 32], strides = [1, 1]} : vector<8x128xf32> to vector<8x32xf32>
    %135 = vector.extract_strided_slice %132 {offsets = [0, 64], sizes = [8, 32], strides = [1, 1]} : vector<8x128xf32> to vector<8x32xf32>
    %136 = vector.extract_strided_slice %132 {offsets = [0, 96], sizes = [8, 32], strides = [1, 1]} : vector<8x128xf32> to vector<8x32xf32>
    %137 = arith.mulf %134, %90 : vector<8x32xf32>
    %138 = arith.mulf %133, %135 : vector<8x32xf32>
    %139 = arith.addf %137, %138 : vector<8x32xf32>
    %140 = math.tanh %139 : vector<8x32xf32>
    %141 = arith.mulf %136, %140 : vector<8x32xf32>
    %142 = arith.select %98, %141, %89 : vector<8x32xi1>, vector<8x32xf32>
    %143 = arith.select %98, %139, %90 : vector<8x32xi1>, vector<8x32xf32>
    %144 = vector.extract_strided_slice %26 {offsets = [2, 0, 0], sizes = [1, 8, 128], strides = [1, 1, 1]} : vector<8x8x128xf32> to vector<1x8x128xf32>
    %145 = vector.shape_cast %144 : vector<1x8x128xf32> to vector<8x128xf32>
    %146 = vector.extract_strided_slice %30 {offsets = [2, 0, 0], sizes = [1, 8, 1], strides = [1, 1, 1]} : vector<8x8x1xf32> to vector<1x8x1xf32>
    %147 = vector.shape_cast %146 : vector<1x8x1xf32> to vector<8x1xf32>
    %cst_36 = arith.constant 0.000000e+00 : f32
    %148 = vector.broadcast %cst_36 : f32 to vector<8x1xf32>
    %149 = arith.cmpf ogt, %147, %148 : vector<8x1xf32>
    %150 = vector.shape_cast %149 : vector<8x1xi1> to vector<8x1xi1>
    %151 = vector.broadcast %150 : vector<8x1xi1> to vector<8x32xi1>
    %152 = tpu.concatenate %119, %142 in 1 : vector<8x32xf32>, vector<8x32xf32> -> vector<8x64xf32>
    %cst_37 = arith.constant dense<0.000000e+00> : vector<8x256xf32>
    %153 = tpu.matmul %152, %27, %cst_37 {dimension_numbers = #tpu.dot_dimension_numbers<[1], [0], [0], [1], [0, 0, 1, 1], [], []>} : vector<8x64xf32>, vector<64x256xf32>, vector<8x256xf32> -> vector<8x256xf32>
    %154 = vector.extract_strided_slice %153 {offsets = [0, 0], sizes = [8, 128], strides = [1, 1]} : vector<8x256xf32> to vector<8x128xf32>
    %155 = arith.addf %145, %154 : vector<8x128xf32>
    %156 = math.tanh %155 : vector<8x128xf32>
    %157 = arith.negf %155 : vector<8x128xf32>
    %158 = math.exp %157 : vector<8x128xf32>
    %cst_38 = arith.constant 1.000000e+00 : f32
    %159 = vector.broadcast %cst_38 : f32 to vector<8x128xf32>
    %160 = arith.addf %159, %158 : vector<8x128xf32>
    %161 = arith.divf %159, %160 : vector<8x128xf32>
    %162 = arith.select %36, %156, %161 : vector<8x128xi1>, vector<8x128xf32>
    %163 = vector.extract_strided_slice %162 {offsets = [0, 0], sizes = [8, 32], strides = [1, 1]} : vector<8x128xf32> to vector<8x32xf32>
    %164 = vector.extract_strided_slice %162 {offsets = [0, 32], sizes = [8, 32], strides = [1, 1]} : vector<8x128xf32> to vector<8x32xf32>
    %165 = vector.extract_strided_slice %162 {offsets = [0, 64], sizes = [8, 32], strides = [1, 1]} : vector<8x128xf32> to vector<8x32xf32>
    %166 = vector.extract_strided_slice %162 {offsets = [0, 96], sizes = [8, 32], strides = [1, 1]} : vector<8x128xf32> to vector<8x32xf32>
    %167 = arith.mulf %164, %120 : vector<8x32xf32>
    %168 = arith.mulf %163, %165 : vector<8x32xf32>
    %169 = arith.addf %167, %168 : vector<8x32xf32>
    %170 = math.tanh %169 : vector<8x32xf32>
    %171 = arith.mulf %166, %170 : vector<8x32xf32>
    %172 = arith.select %151, %171, %119 : vector<8x32xi1>, vector<8x32xf32>
    %173 = arith.select %151, %169, %120 : vector<8x32xi1>, vector<8x32xf32>
    %cst_39 = arith.constant dense<0.000000e+00> : vector<8x128xf32>
    %174 = tpu.matmul %172, %28, %cst_39 {dimension_numbers = #tpu.dot_dimension_numbers<[1], [0], [0], [1], [0, 0, 1, 1], [], []>} : vector<8x32xf32>, vector<32x128xf32>, vector<8x128xf32> -> vector<8x128xf32>
    %175 = vector.extract_strided_slice %153 {offsets = [0, 128], sizes = [8, 128], strides = [1, 1]} : vector<8x256xf32> to vector<8x128xf32>
    %176 = arith.addf %174, %175 : vector<8x128xf32>
    %177 = vector.broadcast %29 : vector<1x128xf32> to vector<8x128xf32>
    %178 = arith.addf %176, %177 : vector<8x128xf32>
    %179 = math.tanh %178 : vector<8x128xf32>
    %180 = arith.negf %178 : vector<8x128xf32>
    %181 = math.exp %180 : vector<8x128xf32>
    %cst_40 = arith.constant 1.000000e+00 : f32
    %182 = vector.broadcast %cst_40 : f32 to vector<8x128xf32>
    %183 = arith.addf %182, %181 : vector<8x128xf32>
    %184 = arith.divf %182, %183 : vector<8x128xf32>
    %185 = arith.select %36, %179, %184 : vector<8x128xi1>, vector<8x128xf32>
    %186 = vector.extract_strided_slice %185 {offsets = [0, 0], sizes = [8, 32], strides = [1, 1]} : vector<8x128xf32> to vector<8x32xf32>
    %187 = vector.extract_strided_slice %185 {offsets = [0, 32], sizes = [8, 32], strides = [1, 1]} : vector<8x128xf32> to vector<8x32xf32>
    %188 = vector.extract_strided_slice %185 {offsets = [0, 64], sizes = [8, 32], strides = [1, 1]} : vector<8x128xf32> to vector<8x32xf32>
    %189 = vector.extract_strided_slice %185 {offsets = [0, 96], sizes = [8, 32], strides = [1, 1]} : vector<8x128xf32> to vector<8x32xf32>
    %190 = arith.mulf %187, %143 : vector<8x32xf32>
    %191 = arith.mulf %186, %188 : vector<8x32xf32>
    %192 = arith.addf %190, %191 : vector<8x32xf32>
    %193 = math.tanh %192 : vector<8x32xf32>
    %194 = arith.mulf %189, %193 : vector<8x32xf32>
    %195 = arith.select %151, %194, %142 : vector<8x32xi1>, vector<8x32xf32>
    %196 = arith.select %151, %192, %143 : vector<8x32xi1>, vector<8x32xf32>
    %197 = vector.extract_strided_slice %26 {offsets = [3, 0, 0], sizes = [1, 8, 128], strides = [1, 1, 1]} : vector<8x8x128xf32> to vector<1x8x128xf32>
    %198 = vector.shape_cast %197 : vector<1x8x128xf32> to vector<8x128xf32>
    %199 = vector.extract_strided_slice %30 {offsets = [3, 0, 0], sizes = [1, 8, 1], strides = [1, 1, 1]} : vector<8x8x1xf32> to vector<1x8x1xf32>
    %200 = vector.shape_cast %199 : vector<1x8x1xf32> to vector<8x1xf32>
    %cst_41 = arith.constant 0.000000e+00 : f32
    %201 = vector.broadcast %cst_41 : f32 to vector<8x1xf32>
    %202 = arith.cmpf ogt, %200, %201 : vector<8x1xf32>
    %203 = vector.shape_cast %202 : vector<8x1xi1> to vector<8x1xi1>
    %204 = vector.broadcast %203 : vector<8x1xi1> to vector<8x32xi1>
    %205 = tpu.concatenate %172, %195 in 1 : vector<8x32xf32>, vector<8x32xf32> -> vector<8x64xf32>
    %cst_42 = arith.constant dense<0.000000e+00> : vector<8x256xf32>
    %206 = tpu.matmul %205, %27, %cst_42 {dimension_numbers = #tpu.dot_dimension_numbers<[1], [0], [0], [1], [0, 0, 1, 1], [], []>} : vector<8x64xf32>, vector<64x256xf32>, vector<8x256xf32> -> vector<8x256xf32>
    %207 = vector.extract_strided_slice %206 {offsets = [0, 0], sizes = [8, 128], strides = [1, 1]} : vector<8x256xf32> to vector<8x128xf32>
    %208 = arith.addf %198, %207 : vector<8x128xf32>
    %209 = math.tanh %208 : vector<8x128xf32>
    %210 = arith.negf %208 : vector<8x128xf32>
    %211 = math.exp %210 : vector<8x128xf32>
    %cst_43 = arith.constant 1.000000e+00 : f32
    %212 = vector.broadcast %cst_43 : f32 to vector<8x128xf32>
    %213 = arith.addf %212, %211 : vector<8x128xf32>
    %214 = arith.divf %212, %213 : vector<8x128xf32>
    %215 = arith.select %36, %209, %214 : vector<8x128xi1>, vector<8x128xf32>
    %216 = vector.extract_strided_slice %215 {offsets = [0, 0], sizes = [8, 32], strides = [1, 1]} : vector<8x128xf32> to vector<8x32xf32>
    %217 = vector.extract_strided_slice %215 {offsets = [0, 32], sizes = [8, 32], strides = [1, 1]} : vector<8x128xf32> to vector<8x32xf32>
    %218 = vector.extract_strided_slice %215 {offsets = [0, 64], sizes = [8, 32], strides = [1, 1]} : vector<8x128xf32> to vector<8x32xf32>
    %219 = vector.extract_strided_slice %215 {offsets = [0, 96], sizes = [8, 32], strides = [1, 1]} : vector<8x128xf32> to vector<8x32xf32>
    %220 = arith.mulf %217, %173 : vector<8x32xf32>
    %221 = arith.mulf %216, %218 : vector<8x32xf32>
    %222 = arith.addf %220, %221 : vector<8x32xf32>
    %223 = math.tanh %222 : vector<8x32xf32>
    %224 = arith.mulf %219, %223 : vector<8x32xf32>
    %225 = arith.select %204, %224, %172 : vector<8x32xi1>, vector<8x32xf32>
    %226 = arith.select %204, %222, %173 : vector<8x32xi1>, vector<8x32xf32>
    %cst_44 = arith.constant dense<0.000000e+00> : vector<8x128xf32>
    %227 = tpu.matmul %225, %28, %cst_44 {dimension_numbers = #tpu.dot_dimension_numbers<[1], [0], [0], [1], [0, 0, 1, 1], [], []>} : vector<8x32xf32>, vector<32x128xf32>, vector<8x128xf32> -> vector<8x128xf32>
    %228 = vector.extract_strided_slice %206 {offsets = [0, 128], sizes = [8, 128], strides = [1, 1]} : vector<8x256xf32> to vector<8x128xf32>
    %229 = arith.addf %227, %228 : vector<8x128xf32>
    %230 = vector.broadcast %29 : vector<1x128xf32> to vector<8x128xf32>
    %231 = arith.addf %229, %230 : vector<8x128xf32>
    %232 = math.tanh %231 : vector<8x128xf32>
    %233 = arith.negf %231 : vector<8x128xf32>
    %234 = math.exp %233 : vector<8x128xf32>
    %cst_45 = arith.constant 1.000000e+00 : f32
    %235 = vector.broadcast %cst_45 : f32 to vector<8x128xf32>
    %236 = arith.addf %235, %234 : vector<8x128xf32>
    %237 = arith.divf %235, %236 : vector<8x128xf32>
    %238 = arith.select %36, %232, %237 : vector<8x128xi1>, vector<8x128xf32>
    %239 = vector.extract_strided_slice %238 {offsets = [0, 0], sizes = [8, 32], strides = [1, 1]} : vector<8x128xf32> to vector<8x32xf32>
    %240 = vector.extract_strided_slice %238 {offsets = [0, 32], sizes = [8, 32], strides = [1, 1]} : vector<8x128xf32> to vector<8x32xf32>
    %241 = vector.extract_strided_slice %238 {offsets = [0, 64], sizes = [8, 32], strides = [1, 1]} : vector<8x128xf32> to vector<8x32xf32>
    %242 = vector.extract_strided_slice %238 {offsets = [0, 96], sizes = [8, 32], strides = [1, 1]} : vector<8x128xf32> to vector<8x32xf32>
    %243 = arith.mulf %240, %196 : vector<8x32xf32>
    %244 = arith.mulf %239, %241 : vector<8x32xf32>
    %245 = arith.addf %243, %244 : vector<8x32xf32>
    %246 = math.tanh %245 : vector<8x32xf32>
    %247 = arith.mulf %242, %246 : vector<8x32xf32>
    %248 = arith.select %204, %247, %195 : vector<8x32xi1>, vector<8x32xf32>
    %249 = arith.select %204, %245, %196 : vector<8x32xi1>, vector<8x32xf32>
    %250 = vector.extract_strided_slice %26 {offsets = [4, 0, 0], sizes = [1, 8, 128], strides = [1, 1, 1]} : vector<8x8x128xf32> to vector<1x8x128xf32>
    %251 = vector.shape_cast %250 : vector<1x8x128xf32> to vector<8x128xf32>
    %252 = vector.extract_strided_slice %30 {offsets = [4, 0, 0], sizes = [1, 8, 1], strides = [1, 1, 1]} : vector<8x8x1xf32> to vector<1x8x1xf32>
    %253 = vector.shape_cast %252 : vector<1x8x1xf32> to vector<8x1xf32>
    %cst_46 = arith.constant 0.000000e+00 : f32
    %254 = vector.broadcast %cst_46 : f32 to vector<8x1xf32>
    %255 = arith.cmpf ogt, %253, %254 : vector<8x1xf32>
    %256 = vector.shape_cast %255 : vector<8x1xi1> to vector<8x1xi1>
    %257 = vector.broadcast %256 : vector<8x1xi1> to vector<8x32xi1>
    %258 = tpu.concatenate %225, %248 in 1 : vector<8x32xf32>, vector<8x32xf32> -> vector<8x64xf32>
    %cst_47 = arith.constant dense<0.000000e+00> : vector<8x256xf32>
    %259 = tpu.matmul %258, %27, %cst_47 {dimension_numbers = #tpu.dot_dimension_numbers<[1], [0], [0], [1], [0, 0, 1, 1], [], []>} : vector<8x64xf32>, vector<64x256xf32>, vector<8x256xf32> -> vector<8x256xf32>
    %260 = vector.extract_strided_slice %259 {offsets = [0, 0], sizes = [8, 128], strides = [1, 1]} : vector<8x256xf32> to vector<8x128xf32>
    %261 = arith.addf %251, %260 : vector<8x128xf32>
    %262 = math.tanh %261 : vector<8x128xf32>
    %263 = arith.negf %261 : vector<8x128xf32>
    %264 = math.exp %263 : vector<8x128xf32>
    %cst_48 = arith.constant 1.000000e+00 : f32
    %265 = vector.broadcast %cst_48 : f32 to vector<8x128xf32>
    %266 = arith.addf %265, %264 : vector<8x128xf32>
    %267 = arith.divf %265, %266 : vector<8x128xf32>
    %268 = arith.select %36, %262, %267 : vector<8x128xi1>, vector<8x128xf32>
    %269 = vector.extract_strided_slice %268 {offsets = [0, 0], sizes = [8, 32], strides = [1, 1]} : vector<8x128xf32> to vector<8x32xf32>
    %270 = vector.extract_strided_slice %268 {offsets = [0, 32], sizes = [8, 32], strides = [1, 1]} : vector<8x128xf32> to vector<8x32xf32>
    %271 = vector.extract_strided_slice %268 {offsets = [0, 64], sizes = [8, 32], strides = [1, 1]} : vector<8x128xf32> to vector<8x32xf32>
    %272 = vector.extract_strided_slice %268 {offsets = [0, 96], sizes = [8, 32], strides = [1, 1]} : vector<8x128xf32> to vector<8x32xf32>
    %273 = arith.mulf %270, %226 : vector<8x32xf32>
    %274 = arith.mulf %269, %271 : vector<8x32xf32>
    %275 = arith.addf %273, %274 : vector<8x32xf32>
    %276 = math.tanh %275 : vector<8x32xf32>
    %277 = arith.mulf %272, %276 : vector<8x32xf32>
    %278 = arith.select %257, %277, %225 : vector<8x32xi1>, vector<8x32xf32>
    %279 = arith.select %257, %275, %226 : vector<8x32xi1>, vector<8x32xf32>
    %cst_49 = arith.constant dense<0.000000e+00> : vector<8x128xf32>
    %280 = tpu.matmul %278, %28, %cst_49 {dimension_numbers = #tpu.dot_dimension_numbers<[1], [0], [0], [1], [0, 0, 1, 1], [], []>} : vector<8x32xf32>, vector<32x128xf32>, vector<8x128xf32> -> vector<8x128xf32>
    %281 = vector.extract_strided_slice %259 {offsets = [0, 128], sizes = [8, 128], strides = [1, 1]} : vector<8x256xf32> to vector<8x128xf32>
    %282 = arith.addf %280, %281 : vector<8x128xf32>
    %283 = vector.broadcast %29 : vector<1x128xf32> to vector<8x128xf32>
    %284 = arith.addf %282, %283 : vector<8x128xf32>
    %285 = math.tanh %284 : vector<8x128xf32>
    %286 = arith.negf %284 : vector<8x128xf32>
    %287 = math.exp %286 : vector<8x128xf32>
    %cst_50 = arith.constant 1.000000e+00 : f32
    %288 = vector.broadcast %cst_50 : f32 to vector<8x128xf32>
    %289 = arith.addf %288, %287 : vector<8x128xf32>
    %290 = arith.divf %288, %289 : vector<8x128xf32>
    %291 = arith.select %36, %285, %290 : vector<8x128xi1>, vector<8x128xf32>
    %292 = vector.extract_strided_slice %291 {offsets = [0, 0], sizes = [8, 32], strides = [1, 1]} : vector<8x128xf32> to vector<8x32xf32>
    %293 = vector.extract_strided_slice %291 {offsets = [0, 32], sizes = [8, 32], strides = [1, 1]} : vector<8x128xf32> to vector<8x32xf32>
    %294 = vector.extract_strided_slice %291 {offsets = [0, 64], sizes = [8, 32], strides = [1, 1]} : vector<8x128xf32> to vector<8x32xf32>
    %295 = vector.extract_strided_slice %291 {offsets = [0, 96], sizes = [8, 32], strides = [1, 1]} : vector<8x128xf32> to vector<8x32xf32>
    %296 = arith.mulf %293, %249 : vector<8x32xf32>
    %297 = arith.mulf %292, %294 : vector<8x32xf32>
    %298 = arith.addf %296, %297 : vector<8x32xf32>
    %299 = math.tanh %298 : vector<8x32xf32>
    %300 = arith.mulf %295, %299 : vector<8x32xf32>
    %301 = arith.select %257, %300, %248 : vector<8x32xi1>, vector<8x32xf32>
    %302 = arith.select %257, %298, %249 : vector<8x32xi1>, vector<8x32xf32>
    %303 = vector.extract_strided_slice %26 {offsets = [5, 0, 0], sizes = [1, 8, 128], strides = [1, 1, 1]} : vector<8x8x128xf32> to vector<1x8x128xf32>
    %304 = vector.shape_cast %303 : vector<1x8x128xf32> to vector<8x128xf32>
    %305 = vector.extract_strided_slice %30 {offsets = [5, 0, 0], sizes = [1, 8, 1], strides = [1, 1, 1]} : vector<8x8x1xf32> to vector<1x8x1xf32>
    %306 = vector.shape_cast %305 : vector<1x8x1xf32> to vector<8x1xf32>
    %cst_51 = arith.constant 0.000000e+00 : f32
    %307 = vector.broadcast %cst_51 : f32 to vector<8x1xf32>
    %308 = arith.cmpf ogt, %306, %307 : vector<8x1xf32>
    %309 = vector.shape_cast %308 : vector<8x1xi1> to vector<8x1xi1>
    %310 = vector.broadcast %309 : vector<8x1xi1> to vector<8x32xi1>
    %311 = tpu.concatenate %278, %301 in 1 : vector<8x32xf32>, vector<8x32xf32> -> vector<8x64xf32>
    %cst_52 = arith.constant dense<0.000000e+00> : vector<8x256xf32>
    %312 = tpu.matmul %311, %27, %cst_52 {dimension_numbers = #tpu.dot_dimension_numbers<[1], [0], [0], [1], [0, 0, 1, 1], [], []>} : vector<8x64xf32>, vector<64x256xf32>, vector<8x256xf32> -> vector<8x256xf32>
    %313 = vector.extract_strided_slice %312 {offsets = [0, 0], sizes = [8, 128], strides = [1, 1]} : vector<8x256xf32> to vector<8x128xf32>
    %314 = arith.addf %304, %313 : vector<8x128xf32>
    %315 = math.tanh %314 : vector<8x128xf32>
    %316 = arith.negf %314 : vector<8x128xf32>
    %317 = math.exp %316 : vector<8x128xf32>
    %cst_53 = arith.constant 1.000000e+00 : f32
    %318 = vector.broadcast %cst_53 : f32 to vector<8x128xf32>
    %319 = arith.addf %318, %317 : vector<8x128xf32>
    %320 = arith.divf %318, %319 : vector<8x128xf32>
    %321 = arith.select %36, %315, %320 : vector<8x128xi1>, vector<8x128xf32>
    %322 = vector.extract_strided_slice %321 {offsets = [0, 0], sizes = [8, 32], strides = [1, 1]} : vector<8x128xf32> to vector<8x32xf32>
    %323 = vector.extract_strided_slice %321 {offsets = [0, 32], sizes = [8, 32], strides = [1, 1]} : vector<8x128xf32> to vector<8x32xf32>
    %324 = vector.extract_strided_slice %321 {offsets = [0, 64], sizes = [8, 32], strides = [1, 1]} : vector<8x128xf32> to vector<8x32xf32>
    %325 = vector.extract_strided_slice %321 {offsets = [0, 96], sizes = [8, 32], strides = [1, 1]} : vector<8x128xf32> to vector<8x32xf32>
    %326 = arith.mulf %323, %279 : vector<8x32xf32>
    %327 = arith.mulf %322, %324 : vector<8x32xf32>
    %328 = arith.addf %326, %327 : vector<8x32xf32>
    %329 = math.tanh %328 : vector<8x32xf32>
    %330 = arith.mulf %325, %329 : vector<8x32xf32>
    %331 = arith.select %310, %330, %278 : vector<8x32xi1>, vector<8x32xf32>
    %332 = arith.select %310, %328, %279 : vector<8x32xi1>, vector<8x32xf32>
    %cst_54 = arith.constant dense<0.000000e+00> : vector<8x128xf32>
    %333 = tpu.matmul %331, %28, %cst_54 {dimension_numbers = #tpu.dot_dimension_numbers<[1], [0], [0], [1], [0, 0, 1, 1], [], []>} : vector<8x32xf32>, vector<32x128xf32>, vector<8x128xf32> -> vector<8x128xf32>
    %334 = vector.extract_strided_slice %312 {offsets = [0, 128], sizes = [8, 128], strides = [1, 1]} : vector<8x256xf32> to vector<8x128xf32>
    %335 = arith.addf %333, %334 : vector<8x128xf32>
    %336 = vector.broadcast %29 : vector<1x128xf32> to vector<8x128xf32>
    %337 = arith.addf %335, %336 : vector<8x128xf32>
    %338 = math.tanh %337 : vector<8x128xf32>
    %339 = arith.negf %337 : vector<8x128xf32>
    %340 = math.exp %339 : vector<8x128xf32>
    %cst_55 = arith.constant 1.000000e+00 : f32
    %341 = vector.broadcast %cst_55 : f32 to vector<8x128xf32>
    %342 = arith.addf %341, %340 : vector<8x128xf32>
    %343 = arith.divf %341, %342 : vector<8x128xf32>
    %344 = arith.select %36, %338, %343 : vector<8x128xi1>, vector<8x128xf32>
    %345 = vector.extract_strided_slice %344 {offsets = [0, 0], sizes = [8, 32], strides = [1, 1]} : vector<8x128xf32> to vector<8x32xf32>
    %346 = vector.extract_strided_slice %344 {offsets = [0, 32], sizes = [8, 32], strides = [1, 1]} : vector<8x128xf32> to vector<8x32xf32>
    %347 = vector.extract_strided_slice %344 {offsets = [0, 64], sizes = [8, 32], strides = [1, 1]} : vector<8x128xf32> to vector<8x32xf32>
    %348 = vector.extract_strided_slice %344 {offsets = [0, 96], sizes = [8, 32], strides = [1, 1]} : vector<8x128xf32> to vector<8x32xf32>
    %349 = arith.mulf %346, %302 : vector<8x32xf32>
    %350 = arith.mulf %345, %347 : vector<8x32xf32>
    %351 = arith.addf %349, %350 : vector<8x32xf32>
    %352 = math.tanh %351 : vector<8x32xf32>
    %353 = arith.mulf %348, %352 : vector<8x32xf32>
    %354 = arith.select %310, %353, %301 : vector<8x32xi1>, vector<8x32xf32>
    %355 = arith.select %310, %351, %302 : vector<8x32xi1>, vector<8x32xf32>
    %356 = vector.extract_strided_slice %26 {offsets = [6, 0, 0], sizes = [1, 8, 128], strides = [1, 1, 1]} : vector<8x8x128xf32> to vector<1x8x128xf32>
    %357 = vector.shape_cast %356 : vector<1x8x128xf32> to vector<8x128xf32>
    %358 = vector.extract_strided_slice %30 {offsets = [6, 0, 0], sizes = [1, 8, 1], strides = [1, 1, 1]} : vector<8x8x1xf32> to vector<1x8x1xf32>
    %359 = vector.shape_cast %358 : vector<1x8x1xf32> to vector<8x1xf32>
    %cst_56 = arith.constant 0.000000e+00 : f32
    %360 = vector.broadcast %cst_56 : f32 to vector<8x1xf32>
    %361 = arith.cmpf ogt, %359, %360 : vector<8x1xf32>
    %362 = vector.shape_cast %361 : vector<8x1xi1> to vector<8x1xi1>
    %363 = vector.broadcast %362 : vector<8x1xi1> to vector<8x32xi1>
    %364 = tpu.concatenate %331, %354 in 1 : vector<8x32xf32>, vector<8x32xf32> -> vector<8x64xf32>
    %cst_57 = arith.constant dense<0.000000e+00> : vector<8x256xf32>
    %365 = tpu.matmul %364, %27, %cst_57 {dimension_numbers = #tpu.dot_dimension_numbers<[1], [0], [0], [1], [0, 0, 1, 1], [], []>} : vector<8x64xf32>, vector<64x256xf32>, vector<8x256xf32> -> vector<8x256xf32>
    %366 = vector.extract_strided_slice %365 {offsets = [0, 0], sizes = [8, 128], strides = [1, 1]} : vector<8x256xf32> to vector<8x128xf32>
    %367 = arith.addf %357, %366 : vector<8x128xf32>
    %368 = math.tanh %367 : vector<8x128xf32>
    %369 = arith.negf %367 : vector<8x128xf32>
    %370 = math.exp %369 : vector<8x128xf32>
    %cst_58 = arith.constant 1.000000e+00 : f32
    %371 = vector.broadcast %cst_58 : f32 to vector<8x128xf32>
    %372 = arith.addf %371, %370 : vector<8x128xf32>
    %373 = arith.divf %371, %372 : vector<8x128xf32>
    %374 = arith.select %36, %368, %373 : vector<8x128xi1>, vector<8x128xf32>
    %375 = vector.extract_strided_slice %374 {offsets = [0, 0], sizes = [8, 32], strides = [1, 1]} : vector<8x128xf32> to vector<8x32xf32>
    %376 = vector.extract_strided_slice %374 {offsets = [0, 32], sizes = [8, 32], strides = [1, 1]} : vector<8x128xf32> to vector<8x32xf32>
    %377 = vector.extract_strided_slice %374 {offsets = [0, 64], sizes = [8, 32], strides = [1, 1]} : vector<8x128xf32> to vector<8x32xf32>
    %378 = vector.extract_strided_slice %374 {offsets = [0, 96], sizes = [8, 32], strides = [1, 1]} : vector<8x128xf32> to vector<8x32xf32>
    %379 = arith.mulf %376, %332 : vector<8x32xf32>
    %380 = arith.mulf %375, %377 : vector<8x32xf32>
    %381 = arith.addf %379, %380 : vector<8x32xf32>
    %382 = math.tanh %381 : vector<8x32xf32>
    %383 = arith.mulf %378, %382 : vector<8x32xf32>
    %384 = arith.select %363, %383, %331 : vector<8x32xi1>, vector<8x32xf32>
    %385 = arith.select %363, %381, %332 : vector<8x32xi1>, vector<8x32xf32>
    %cst_59 = arith.constant dense<0.000000e+00> : vector<8x128xf32>
    %386 = tpu.matmul %384, %28, %cst_59 {dimension_numbers = #tpu.dot_dimension_numbers<[1], [0], [0], [1], [0, 0, 1, 1], [], []>} : vector<8x32xf32>, vector<32x128xf32>, vector<8x128xf32> -> vector<8x128xf32>
    %387 = vector.extract_strided_slice %365 {offsets = [0, 128], sizes = [8, 128], strides = [1, 1]} : vector<8x256xf32> to vector<8x128xf32>
    %388 = arith.addf %386, %387 : vector<8x128xf32>
    %389 = vector.broadcast %29 : vector<1x128xf32> to vector<8x128xf32>
    %390 = arith.addf %388, %389 : vector<8x128xf32>
    %391 = math.tanh %390 : vector<8x128xf32>
    %392 = arith.negf %390 : vector<8x128xf32>
    %393 = math.exp %392 : vector<8x128xf32>
    %cst_60 = arith.constant 1.000000e+00 : f32
    %394 = vector.broadcast %cst_60 : f32 to vector<8x128xf32>
    %395 = arith.addf %394, %393 : vector<8x128xf32>
    %396 = arith.divf %394, %395 : vector<8x128xf32>
    %397 = arith.select %36, %391, %396 : vector<8x128xi1>, vector<8x128xf32>
    %398 = vector.extract_strided_slice %397 {offsets = [0, 0], sizes = [8, 32], strides = [1, 1]} : vector<8x128xf32> to vector<8x32xf32>
    %399 = vector.extract_strided_slice %397 {offsets = [0, 32], sizes = [8, 32], strides = [1, 1]} : vector<8x128xf32> to vector<8x32xf32>
    %400 = vector.extract_strided_slice %397 {offsets = [0, 64], sizes = [8, 32], strides = [1, 1]} : vector<8x128xf32> to vector<8x32xf32>
    %401 = vector.extract_strided_slice %397 {offsets = [0, 96], sizes = [8, 32], strides = [1, 1]} : vector<8x128xf32> to vector<8x32xf32>
    %402 = arith.mulf %399, %355 : vector<8x32xf32>
    %403 = arith.mulf %398, %400 : vector<8x32xf32>
    %404 = arith.addf %402, %403 : vector<8x32xf32>
    %405 = math.tanh %404 : vector<8x32xf32>
    %406 = arith.mulf %401, %405 : vector<8x32xf32>
    %407 = arith.select %363, %406, %354 : vector<8x32xi1>, vector<8x32xf32>
    %408 = arith.select %363, %404, %355 : vector<8x32xi1>, vector<8x32xf32>
    %409 = vector.extract_strided_slice %26 {offsets = [7, 0, 0], sizes = [1, 8, 128], strides = [1, 1, 1]} : vector<8x8x128xf32> to vector<1x8x128xf32>
    %410 = vector.shape_cast %409 : vector<1x8x128xf32> to vector<8x128xf32>
    %411 = vector.extract_strided_slice %30 {offsets = [7, 0, 0], sizes = [1, 8, 1], strides = [1, 1, 1]} : vector<8x8x1xf32> to vector<1x8x1xf32>
    %412 = vector.shape_cast %411 : vector<1x8x1xf32> to vector<8x1xf32>
    %cst_61 = arith.constant 0.000000e+00 : f32
    %413 = vector.broadcast %cst_61 : f32 to vector<8x1xf32>
    %414 = arith.cmpf ogt, %412, %413 : vector<8x1xf32>
    %415 = vector.shape_cast %414 : vector<8x1xi1> to vector<8x1xi1>
    %416 = vector.broadcast %415 : vector<8x1xi1> to vector<8x32xi1>
    %417 = tpu.concatenate %384, %407 in 1 : vector<8x32xf32>, vector<8x32xf32> -> vector<8x64xf32>
    %cst_62 = arith.constant dense<0.000000e+00> : vector<8x256xf32>
    %418 = tpu.matmul %417, %27, %cst_62 {dimension_numbers = #tpu.dot_dimension_numbers<[1], [0], [0], [1], [0, 0, 1, 1], [], []>} : vector<8x64xf32>, vector<64x256xf32>, vector<8x256xf32> -> vector<8x256xf32>
    %419 = vector.extract_strided_slice %418 {offsets = [0, 0], sizes = [8, 128], strides = [1, 1]} : vector<8x256xf32> to vector<8x128xf32>
    %420 = arith.addf %410, %419 : vector<8x128xf32>
    %421 = math.tanh %420 : vector<8x128xf32>
    %422 = arith.negf %420 : vector<8x128xf32>
    %423 = math.exp %422 : vector<8x128xf32>
    %cst_63 = arith.constant 1.000000e+00 : f32
    %424 = vector.broadcast %cst_63 : f32 to vector<8x128xf32>
    %425 = arith.addf %424, %423 : vector<8x128xf32>
    %426 = arith.divf %424, %425 : vector<8x128xf32>
    %427 = arith.select %36, %421, %426 : vector<8x128xi1>, vector<8x128xf32>
    %428 = vector.extract_strided_slice %427 {offsets = [0, 0], sizes = [8, 32], strides = [1, 1]} : vector<8x128xf32> to vector<8x32xf32>
    %429 = vector.extract_strided_slice %427 {offsets = [0, 32], sizes = [8, 32], strides = [1, 1]} : vector<8x128xf32> to vector<8x32xf32>
    %430 = vector.extract_strided_slice %427 {offsets = [0, 64], sizes = [8, 32], strides = [1, 1]} : vector<8x128xf32> to vector<8x32xf32>
    %431 = vector.extract_strided_slice %427 {offsets = [0, 96], sizes = [8, 32], strides = [1, 1]} : vector<8x128xf32> to vector<8x32xf32>
    %432 = arith.mulf %429, %385 : vector<8x32xf32>
    %433 = arith.mulf %428, %430 : vector<8x32xf32>
    %434 = arith.addf %432, %433 : vector<8x32xf32>
    %435 = math.tanh %434 : vector<8x32xf32>
    %436 = arith.mulf %431, %435 : vector<8x32xf32>
    %437 = arith.select %416, %436, %384 : vector<8x32xi1>, vector<8x32xf32>
    %cst_64 = arith.constant dense<0.000000e+00> : vector<8x128xf32>
    %438 = tpu.matmul %437, %28, %cst_64 {dimension_numbers = #tpu.dot_dimension_numbers<[1], [0], [0], [1], [0, 0, 1, 1], [], []>} : vector<8x32xf32>, vector<32x128xf32>, vector<8x128xf32> -> vector<8x128xf32>
    %439 = vector.extract_strided_slice %418 {offsets = [0, 128], sizes = [8, 128], strides = [1, 1]} : vector<8x256xf32> to vector<8x128xf32>
    %440 = arith.addf %438, %439 : vector<8x128xf32>
    %441 = vector.broadcast %29 : vector<1x128xf32> to vector<8x128xf32>
    %442 = arith.addf %440, %441 : vector<8x128xf32>
    %443 = math.tanh %442 : vector<8x128xf32>
    %444 = arith.negf %442 : vector<8x128xf32>
    %445 = math.exp %444 : vector<8x128xf32>
    %cst_65 = arith.constant 1.000000e+00 : f32
    %446 = vector.broadcast %cst_65 : f32 to vector<8x128xf32>
    %447 = arith.addf %446, %445 : vector<8x128xf32>
    %448 = arith.divf %446, %447 : vector<8x128xf32>
    %449 = arith.select %36, %443, %448 : vector<8x128xi1>, vector<8x128xf32>
    %450 = vector.extract_strided_slice %449 {offsets = [0, 0], sizes = [8, 32], strides = [1, 1]} : vector<8x128xf32> to vector<8x32xf32>
    %451 = vector.extract_strided_slice %449 {offsets = [0, 32], sizes = [8, 32], strides = [1, 1]} : vector<8x128xf32> to vector<8x32xf32>
    %452 = vector.extract_strided_slice %449 {offsets = [0, 64], sizes = [8, 32], strides = [1, 1]} : vector<8x128xf32> to vector<8x32xf32>
    %453 = vector.extract_strided_slice %449 {offsets = [0, 96], sizes = [8, 32], strides = [1, 1]} : vector<8x128xf32> to vector<8x32xf32>
    %454 = arith.mulf %451, %408 : vector<8x32xf32>
    %455 = arith.mulf %450, %452 : vector<8x32xf32>
    %456 = arith.addf %454, %455 : vector<8x32xf32>
    %457 = math.tanh %456 : vector<8x32xf32>
    %458 = arith.mulf %453, %457 : vector<8x32xf32>
    %459 = arith.select %416, %458, %407 : vector<8x32xi1>, vector<8x32xf32>
    %460 = tpu.concatenate %437, %459 in 0 : vector<8x32xf32>, vector<8x32xf32> -> vector<16x32xf32>
    %c0_66 = arith.constant 0 : index
    %c0_67 = arith.constant 0 : index
    %461 = vector.load %arg12[%c0_66, %c0_67] : memref<32x128xf32, #tpu.memory_space<vmem>>, vector<32x128xf32>
    %cst_68 = arith.constant dense<0.000000e+00> : vector<16x128xf32>
    %462 = tpu.matmul %460, %461, %cst_68 {dimension_numbers = #tpu.dot_dimension_numbers<[1], [0], [0], [1], [0, 0, 1, 1], [], []>} : vector<16x32xf32>, vector<32x128xf32>, vector<16x128xf32> -> vector<16x128xf32>
    %c0_69 = arith.constant 0 : index
    %c0_70 = arith.constant 0 : index
    %463 = vector.load %arg13[%c0_69, %c0_70] : memref<1x128xf32, #tpu.memory_space<vmem>>, vector<1x128xf32>
    %464 = vector.broadcast %463 : vector<1x128xf32> to vector<16x128xf32>
    %465 = arith.addf %462, %464 : vector<16x128xf32>
    %cst_71 = arith.constant 0.000000e+00 : f32
    %466 = vector.broadcast %cst_71 : f32 to vector<16x128xf32>
    %467 = arith.cmpf oge, %465, %466 : vector<16x128xf32>
    %cst_72 = arith.constant 0.229166672 : f32
    %468 = vector.broadcast %cst_72 : f32 to vector<16x128xf32>
    %469 = arith.mulf %465, %468 : vector<16x128xf32>
    %470 = arith.select %467, %465, %469 : vector<16x128xi1>, vector<16x128xf32>
    %471 = vector.shape_cast %470 : vector<16x128xf32> to vector<2x8x128xf32>
    %c0_73 = arith.constant 0 : index
    %c0_74 = arith.constant 0 : index
    %c0_75 = arith.constant 0 : index
    %472 = vector.load %arg14[%c0_73, %c0_74, %c0_75] : memref<2x8x128xf32, #tpu.memory_space<vmem>>, vector<2x8x128xf32>
    tpu.vector_store %arg14[%c0_73, %c0_74, %c0_75], %471 {strides = array<i32>} : memref<2x8x128xf32, #tpu.memory_space<vmem>>, vector<2x8x128xf32>,
    return
  }
  func.func @transform_0(%arg0: i32) -> (i32, i32, i32) {
    %c0_i32 = arith.constant 0 : i32
    %c0_i32_0 = arith.constant 0 : i32
    %c0_i32_1 = arith.constant 0 : i32
    return %c0_i32, %arg0, %c0_i32_0 : i32, i32, i32
  }
  func.func @transform_1(%arg0: i32) -> (i32, i32, i32) {
    %c0_i32 = arith.constant 0 : i32
    %c0_i32_0 = arith.constant 0 : i32
    %c0_i32_1 = arith.constant 0 : i32
    return %c0_i32, %arg0, %c0_i32_0 : i32, i32, i32
  }
  func.func @transform_2(%arg0: i32) -> (i32, i32, i32) {
    %c0_i32 = arith.constant 0 : i32
    %c0_i32_0 = arith.constant 0 : i32
    %c0_i32_1 = arith.constant 0 : i32
    return %c0_i32, %arg0, %c0_i32_0 : i32, i32, i32
  }
  func.func @transform_3(%arg0: i32) -> (i32, i32) {
    %c0_i32 = arith.constant 0 : i32
    %c0_i32_0 = arith.constant 0 : i32
    %c0_i32_1 = arith.constant 0 : i32
    return %c0_i32, %c0_i32_0 : i32, i32
  }
  func.func @transform_4(%arg0: i32) -> (i32, i32) {
    %c0_i32 = arith.constant 0 : i32
    %c0_i32_0 = arith.constant 0 : i32
    %c0_i32_1 = arith.constant 0 : i32
    return %c0_i32, %c0_i32_0 : i32, i32
  }
  func.func @transform_5(%arg0: i32) -> (i32, i32) {
    %c0_i32 = arith.constant 0 : i32
    %c0_i32_0 = arith.constant 0 : i32
    %c0_i32_1 = arith.constant 0 : i32
    return %c0_i32, %c0_i32_0 : i32, i32
  }
  func.func @transform_6(%arg0: i32) -> (i32, i32) {
    %c0_i32 = arith.constant 0 : i32
    %c0_i32_0 = arith.constant 0 : i32
    %c0_i32_1 = arith.constant 0 : i32
    return %c0_i32, %c0_i32_0 : i32, i32
  }
  func.func @transform_7(%arg0: i32) -> (i32, i32) {
    %c0_i32 = arith.constant 0 : i32
    %c0_i32_0 = arith.constant 0 : i32
    %c0_i32_1 = arith.constant 0 : i32
    return %c0_i32, %c0_i32_0 : i32, i32
  }
  func.func @transform_8(%arg0: i32) -> (i32, i32) {
    %c0_i32 = arith.constant 0 : i32
    %c0_i32_0 = arith.constant 0 : i32
    %c0_i32_1 = arith.constant 0 : i32
    return %c0_i32, %c0_i32_0 : i32, i32
  }
  func.func @transform_9(%arg0: i32) -> (i32, i32) {
    %c0_i32 = arith.constant 0 : i32
    %c0_i32_0 = arith.constant 0 : i32
    %c0_i32_1 = arith.constant 0 : i32
    return %c0_i32, %c0_i32_0 : i32, i32
  }
  func.func @transform_10(%arg0: i32) -> (i32, i32) {
    %c0_i32 = arith.constant 0 : i32
    %c0_i32_0 = arith.constant 0 : i32
    %c0_i32_1 = arith.constant 0 : i32
    return %c0_i32, %c0_i32_0 : i32, i32
  }
  func.func @transform_11(%arg0: i32) -> (i32, i32) {
    %c0_i32 = arith.constant 0 : i32
    %c0_i32_0 = arith.constant 0 : i32
    %c0_i32_1 = arith.constant 0 : i32
    return %c0_i32, %c0_i32_0 : i32, i32
  }
  func.func @transform_12(%arg0: i32) -> (i32, i32) {
    %c0_i32 = arith.constant 0 : i32
    %c0_i32_0 = arith.constant 0 : i32
    %c0_i32_1 = arith.constant 0 : i32
    return %c0_i32, %c0_i32_0 : i32, i32
  }
  func.func @transform_13(%arg0: i32) -> (i32, i32, i32) {
    %c0_i32 = arith.constant 0 : i32
    %c0_i32_0 = arith.constant 0 : i32
    %c0_i32_1 = arith.constant 0 : i32
    return %c0_i32, %arg0, %c0_i32_0 : i32, i32, i32
  }
}

</mosaic_0001>

<llo_original>
// kernel: tpu_custom_call.1
$region0: #{tpu_custom_call.1}
  #allocation0 [shape = 'u32[]', space=smem, size = 0x4, offset = 0x4, fixed_abs, tag = 'smem constant byte address 0x4 - core index']
  #allocation1 [shape = 'u32[72,128]{1,0:T(1,128)}', space=vmem, size = 0x9000, scoped, tag = 'internal scratch']
  %s0 = inlined_call_operand.vmem [shape: f32[8,8,1], index: 0, kind: input, shape index: {}]
  %s1 = inlined_call_operand.vmem [shape: f32[8,8,6], index: 1, kind: input, shape index: {}]
  %s2 = inlined_call_operand.vmem [shape: f32[8,8,1], index: 2, kind: input, shape index: {}]
  %s3 = inlined_call_operand.vmem [shape: f32[1,8], index: 3, kind: input, shape index: {}]
  %s4 = inlined_call_operand.vmem [shape: f32[1,8], index: 4, kind: input, shape index: {}]
  %s5 = inlined_call_operand.vmem [shape: f32[8,128], index: 5, kind: input, shape index: {}]
  %s6 = inlined_call_operand.hbm [shape: f32[6,128], index: 6, kind: input, shape index: {}]
  %s7 = inlined_call_operand.vmem [shape: f32[1,128], index: 7, kind: input, shape index: {}]
  %s8 = inlined_call_operand.vmem [shape: f32[64,256], index: 8, kind: input, shape index: {}]
  %s9 = inlined_call_operand.vmem [shape: f32[32,128], index: 9, kind: input, shape index: {}]
  %s10 = inlined_call_operand.vmem [shape: f32[1,128], index: 10, kind: input, shape index: {}]
  %s11 = inlined_call_operand.vmem [shape: f32[32,128], index: 11, kind: input, shape index: {}]
  %s12 = inlined_call_operand.vmem [shape: f32[1,128], index: 12, kind: input, shape index: {}]
  %s13 = inlined_call_operand.hbm [shape: f32[2,8,128], index: 13, kind: output, shape index: {}]
  %s14 = sld [smem:[#allocation0]]
  $region66: #{tpu_custom_call.1} parent=0
    _
  %s16 = ssub.s32 1, %s14
  %s17 = scalar_select 0, %s16, %s14
  $region1: #{tpu_custom_call.1} parent=0
    #allocation2 [shape = 'u8[4096]{0}', space=vmem, size = 0x1000, scoped, tag = 'input window, operand 6, single buffered']
    #allocation3 [shape = 's32[1]{0}', space=sflag, size = 0x4, scoped, tag = 'scoped memory for tpu_custom_call.1']
    #allocation4 [shape = 's32[1]{0}', space=sflag, size = 0x4, scoped, tag = 'scoped memory for tpu_custom_call.1']
    #allocation5 [shape = 'u8[8192]{0}', space=vmem, size = 0x2000, scoped, tag = 'output window, operand 0, single buffered']
    %18 = vsyncpa [#allocation3], 0
    %19 = vsyncpa [#allocation4], 0
    // Predicated region
    $region2: #{tpu_custom_call.1} parent=1 // pred_check
      _
    $region3: #{tpu_custom_call.1} parent=1 // pred_check_branch
      %21 = sbr.rel (0) target = $region5
    $region4: #{tpu_custom_call.1} parent=1 // pred_region
      _
    $region5: #{tpu_custom_call.1} parent=1 // pred_fallthru
      _
    // Predicated region
    $region6: #{tpu_custom_call.1} parent=1 // pred_check
      _
    $region7: #{tpu_custom_call.1} parent=1 // pred_check_branch
      %23 = sbr.rel (0) target = $region9
    $region8: #{tpu_custom_call.1} parent=1 // pred_region
      _
    $region9: #{tpu_custom_call.1} parent=1 // pred_fallthru
      _
    // Predicated region
    $region10: #{tpu_custom_call.1} parent=1 // pred_check
      _
    $region11: #{tpu_custom_call.1} parent=1 // pred_check_branch
      %25 = sbr.rel (0) target = $region13
    $region12: #{tpu_custom_call.1} parent=1 // pred_region
      _
    $region13: #{tpu_custom_call.1} parent=1 // pred_fallthru
      _
    // Predicated region
    $region14: #{tpu_custom_call.1} parent=1 // pred_check
      _
    $region15: #{tpu_custom_call.1} parent=1 // pred_check_branch
      %27 = sbr.rel (0) target = $region17
    $region16: #{tpu_custom_call.1} parent=1 // pred_region
      _
    $region17: #{tpu_custom_call.1} parent=1 // pred_fallthru
      _
    // Predicated region
    $region18: #{tpu_custom_call.1} parent=1 // pred_check
      _
    $region19: #{tpu_custom_call.1} parent=1 // pred_check_branch
      %29 = sbr.rel (0) target = $region21
    $region20: #{tpu_custom_call.1} parent=1 // pred_region
      _
    $region21: #{tpu_custom_call.1} parent=1 // pred_fallthru
      _
    // Predicated region
    $region22: #{tpu_custom_call.1} parent=1 // pred_check
      _
    $region23: #{tpu_custom_call.1} parent=1 // pred_check_branch
      %31 = sbr.rel (0) target = $region25
    $region24: #{tpu_custom_call.1} parent=1 // pred_region
      _
    $region25: #{tpu_custom_call.1} parent=1 // pred_fallthru
      _
    // Predicated region
    $region26: #{tpu_custom_call.1} parent=1 // pred_check
      _
    $region27: #{tpu_custom_call.1} parent=1 // pred_check_branch
      %33 = sbr.rel (0) target = $region29
    $region28: #{tpu_custom_call.1} parent=1 // pred_region
      %35 = vsyncadd [#allocation3], 0
      %s37 = sshll.u32 %s6, 4
      %s38 = int_to_ptr.hbm [resolvable:$true] %s37
      %s39 = sshll.u32 [#allocation2], 4
      %s40 = int_to_ptr.vmem [resolvable:$true] %s39
      %42 = dma.hbm_to_vmem [thread:$0]  %s38, 128, %s40, [#allocation3]
    $region29: #{tpu_custom_call.1} parent=1 // pred_fallthru
      _
    // Predicated region
    $region30: #{tpu_custom_call.1} parent=1 // pred_check
      _
    $region31: #{tpu_custom_call.1} parent=1 // pred_check_branch
      %44 = sbr.rel (0) target = $region33
    $region32: #{tpu_custom_call.1} parent=1 // pred_region
      _
    $region33: #{tpu_custom_call.1} parent=1 // pred_fallthru
      _
    // Predicated region
    $region34: #{tpu_custom_call.1} parent=1 // pred_check
      _
    $region35: #{tpu_custom_call.1} parent=1 // pred_check_branch
      %46 = sbr.rel (0) target = $region37
    $region36: #{tpu_custom_call.1} parent=1 // pred_region
      _
    $region37: #{tpu_custom_call.1} parent=1 // pred_fallthru
      _
    // Predicated region
    $region38: #{tpu_custom_call.1} parent=1 // pred_check
      _
    $region39: #{tpu_custom_call.1} parent=1 // pred_check_branch
      %48 = sbr.rel (0) target = $region41
    $region40: #{tpu_custom_call.1} parent=1 // pred_region
      _
    $region41: #{tpu_custom_call.1} parent=1 // pred_fallthru
      _
    // Predicated region
    $region42: #{tpu_custom_call.1} parent=1 // pred_check
      _
    $region43: #{tpu_custom_call.1} parent=1 // pred_check_branch
      %50 = sbr.rel (0) target = $region45
    $region44: #{tpu_custom_call.1} parent=1 // pred_region
      _
    $region45: #{tpu_custom_call.1} parent=1 // pred_fallthru
      _
    // Predicated region
    $region46: #{tpu_custom_call.1} parent=1 // pred_check
      _
    $region47: #{tpu_custom_call.1} parent=1 // pred_check_branch
      %52 = sbr.rel (0) target = $region49
    $region48: #{tpu_custom_call.1} parent=1 // pred_region
      _
    $region49: #{tpu_custom_call.1} parent=1 // pred_fallthru
      _
    // Predicated region
    $region50: #{tpu_custom_call.1} parent=1 // pred_check
      _
    $region51: #{tpu_custom_call.1} parent=1 // pred_check_branch
      %54 = sbr.rel (0) target = $region53
    $region52: #{tpu_custom_call.1} parent=1 // pred_region
      _
    $region53: #{tpu_custom_call.1} parent=1 // pred_fallthru
      _
    // Predicated region
    $region54: #{tpu_custom_call.1} parent=1 // pred_check
      _
    $region55: #{tpu_custom_call.1} parent=1 // pred_check_branch
      %56 = sbr.rel (0) target = $region57
    $region56: #{tpu_custom_call.1} parent=1 // pred_region
      %58 = dma.done [#allocation3], 128
    $region57: #{tpu_custom_call.1} parent=1 // pred_fallthru
      _
    %v59 = vld [vmem:[%s0] sm:$0xff]
    %v60 = vld [vmem:[%s0 + $0x8] sm:$0xff]
    %v61 = vld [vmem:[%s0 + $0x10] sm:$0xff]
    %v62 = vld [vmem:[%s0 + $0x18] sm:$0xff]
    %v63 = vld [vmem:[%s0 + $0x20] sm:$0xff]
    %v64 = vld [vmem:[%s0 + $0x28] sm:$0xff]
    %v65 = vld [vmem:[%s0 + $0x30] sm:$0xff]
    %v66 = vld [vmem:[%s0 + $0x38] sm:$0xff]
    %v67 = vld [vmem:[%s3] sm:$0x1]
    %v68 = vld [vmem:[%s4] sm:$0x1]
    %70 = vset.pattern.permute.xlu0 0
    %71 = vperm.xlu0 %70, %v59
    %v72 = vpop.permute.xlu0 %71
    %75 = vset.pattern.permute.xlu0 0
    %76 = vperm.xlu0 %75, %v60
    %v77 = vpop.permute.xlu0 %76
    %80 = vset.pattern.permute.xlu0 0
    %81 = vperm.xlu0 %80, %v61
    %v82 = vpop.permute.xlu0 %81
    %85 = vset.pattern.permute.xlu0 0
    %86 = vperm.xlu0 %85, %v62
    %v87 = vpop.permute.xlu0 %86
    %90 = vset.pattern.permute.xlu0 0
    %91 = vperm.xlu0 %90, %v63
    %v92 = vpop.permute.xlu0 %91
    %95 = vset.pattern.permute.xlu0 0
    %96 = vperm.xlu0 %95, %v64
    %v97 = vpop.permute.xlu0 %96
    %100 = vset.pattern.permute.xlu0 0
    %101 = vperm.xlu0 %100, %v65
    %v102 = vpop.permute.xlu0 %101
    %105 = vset.pattern.permute.xlu0 0
    %106 = vperm.xlu0 %105, %v66
    %v107 = vpop.permute.xlu0 %106
    %v110 = vperm.slane %v67, 0
    %v112 = vmul.f32 %v72, %v110
    %v113 = vmul.f32 %v77, %v110
    %v114 = vmul.f32 %v82, %v110
    %v115 = vmul.f32 %v87, %v110
    %v116 = vmul.f32 %v92, %v110
    %v117 = vmul.f32 %v97, %v110
    %v118 = vmul.f32 %v102, %v110
    %v119 = vmul.f32 %v107, %v110
    %v121 = vperm.slane %v68, 0
    %v123 = vadd.f32 %v112, %v121
    %v124 = vadd.f32 %v113, %v121
    %v125 = vadd.f32 %v114, %v121
    %v126 = vadd.f32 %v115, %v121
    %v127 = vadd.f32 %v116, %v121
    %v128 = vadd.f32 %v117, %v121
    %v129 = vadd.f32 %v118, %v121
    %v130 = vadd.f32 %v119, %v121
    %v131 = vlaneseq
    %v132 = vand.u32 %v131, 127
    %vm133 = vcmp.eq.s32.totalorder %v132, 0
    %v134 = vand.u32 2147483647, %v123
    %vm135 = vcmp.le.f32.partialorder %v134, 0.7853982
    %vm136 = vcmp.lt.s32.totalorder %v123, 0
    %v137 = vand.u32 %v123, 2139095040
    %v138 = vshrl.u32 %v137, 23
    %v139 = vsub.s32 %v138, 127
    %v140 = vand.u32 2147483647, %v123
    %v141 = vand.u32 %v140, 8388607
    %v142 = vor.u32 %v141, 8388608
    %v143 = vsub.s32 0, %v142
    %v144 = vadd.s32 %v139, 1
    %vm145 = vcmp.gt.s32.totalorder %v144, 0
    %v146 = vsel %vm145, %v144, 0
    %v147 = vshrl.u32 %v146, 5
    %v148 = vand.u32 %v146, 31
    %v149 = vsub.s32 32, %v148
    %v150 = vshrl.u32 683565275, %v149
    %v151 = vshll.u32 683565275, %v148
    %v152 = vshrl.u32 2475754826, %v149
    %v153 = vor.u32 %v151, %v152
    %v154 = vshll.u32 2475754826, %v148
    %v155 = vshrl.u32 2131351028, %v149
    %v156 = vor.u32 %v154, %v155
    %v157 = vshll.u32 2131351028, %v148
    %v158 = vshrl.u32 2102212464, %v149
    %v159 = vor.u32 %v157, %v158
    %v160 = vshll.u32 2102212464, %v148
    %v161 = vshrl.u32 920167782, %v149
    %v162 = vor.u32 %v160, %v161
    %v163 = vshll.u32 920167782, %v148
    %v164 = vshrl.u32 1326507024, %v149
    %v165 = vor.u32 %v163, %v164
    %vm166 = vcmp.lt.s32.totalorder %v147, 1
    %vm167 = vcmp.lt.s32.totalorder %v147, 2
    %vm168 = vcmp.lt.s32.totalorder %v147, 3
    %vm169 = vcmp.lt.s32.totalorder %v147, 4
    %v170 = vsel %vm166, %v150, %v153
    %v171 = vsel %vm169, %v159, 2102212464
    %v172 = vsel %vm168, %v156, %v171
    %v173 = vsel %vm167, %v170, %v172
    %v174 = vsel %vm166, %v153, %v156
    %v175 = vsel %vm169, %v162, 920167782
    %v176 = vsel %vm168, %v159, %v175
    %v177 = vsel %vm167, %v174, %v176
    %v178 = vsel %vm166, %v156, %v159
    %v179 = vsel %vm169, %v165, 1326507024
    %v180 = vsel %vm168, %v162, %v179
    %v181 = vsel %vm167, %v178, %v180
    %v182 = vshll.u32 %v142, 8
    %v183 = vand.u32 %v182, 65535
    %v184 = vshrl.u32 %v182, 16
    %v185 = vand.u32 %v181, 65535
    %v186 = vshrl.u32 %v181, 16
    %v187 = vmul.u32 %v183, %v185
    %v188 = vmul.u32 %v183, %v186
    %v189 = vmul.u32 %v184, %v185
    %v190 = vmul.u32 %v184, %v186
    %v191 = vshll.u32 %v188, 16
    %v192 = vshrl.u32 %v188, 16
    %v193 = vshll.u32 %v189, 16
    %v194 = vshrl.u32 %v189, 16
    %vm195 = vc.u32 %v187, %v191
    %v196 = vsel %vm195, 1, 0
    %v197 = vadd.s32 %v187, %v191
    %v198 = vadd.s32 %v190, %v196
    %vm199 = vc.u32 %v197, %v193
    %v200 = vsel %vm199, 1, 0
    %v201 = vadd.s32 %v197, %v193
    %v202 = vadd.s32 %v198, %v200
    %v203 = vadd.s32 %v202, %v192
    %v204 = vadd.s32 %v203, %v194
    %v205 = vand.u32 %v182, 65535
    %v206 = vshrl.u32 %v182, 16
    %v207 = vand.u32 %v177, 65535
    %v208 = vshrl.u32 %v177, 16
    %v209 = vmul.u32 %v205, %v207
    %v210 = vmul.u32 %v205, %v208
    %v211 = vmul.u32 %v206, %v207
    %v212 = vmul.u32 %v206, %v208
    %v213 = vshll.u32 %v210, 16
    %v214 = vshrl.u32 %v210, 16
    %v215 = vshll.u32 %v211, 16
    %v216 = vshrl.u32 %v211, 16
    %vm217 = vc.u32 %v209, %v213
    %v218 = vsel %vm217, 1, 0
    %v219 = vadd.s32 %v209, %v213
    %v220 = vadd.s32 %v212, %v218
    %vm221 = vc.u32 %v219, %v215
    %v222 = vsel %vm221, 1, 0
    %v223 = vadd.s32 %v219, %v215
    %v224 = vadd.s32 %v220, %v222
    %v225 = vadd.s32 %v224, %v214
    %v226 = vadd.s32 %v225, %v216
    %v227 = vmul.u32 %v182, %v173
    %v228 = vadd.s32 %v204, %v223
    %vm229 = vc.u32 %v204, %v223
    %v230 = vadd.s32 %v226, 1
    %v231 = vsel %vm229, %v230, %v226
    %v232 = vadd.s32 %v227, %v231
    %v233 = vadd.s32 %v232, 536870912
    %v234 = vshrl.u32 %v233, 30
    %v235 = vshll.u32 %v234, 30
    %v236 = vsub.s32 %v232, %v235
    %vm237 = vcmp.lt.s32.totalorder %v236, 0
    %v238 = vsub.s32 0, %v236
    %v239 = vsel %vm237, %v238, %v236
    %v240 = vclz %v239
    %v241 = vsub.s32 %v240, 2
    %vm242 = vcmp.gt.s32.totalorder 0, %v241
    %v243 = vsel %vm242, 0, %v241
    %v244 = vsub.s32 32, %v243
    %v245 = vshll.u32 %v236, %v243
    %v246 = vshrl.u32 %v228, %v244
    %v247 = vor.u32 %v245, %v246
    %v248 = vsub.s32 4294967266, %v243
    %v249 = vadd.s32 %v248, 127
    %v250 = vshll.u32 %v249, 23
    %v251 = vor.u32 4788187, %v250
    %v252 = vand.u32 2147483647, %v251
    %v254 = vcvt.s32.f32 %v247
    %v255 = vmul.f32 %v254, %v252
    %v256 = vxor.u32 %v255, 2147483648
    %v257 = vsel %vm136, %v256, %v255
    %v258 = vsub.s32 4, %v234
    %v259 = vsel %vm136, %v258, %v234
    %v260 = vsel %vm135, %v123, %v257
    %v261 = vsel %vm135, 0, %v259
    %v262 = vmul.f32 %v260, %v260
    %v263 = vmul.f32 %v262, -0.001358992
    %v264 = vadd.f32 %v263, 0.041655596
    %v265 = vmul.f32 %v262, %v264
    %v266 = vadd.f32 %v265, -0.4999988
    %v267 = vmul.f32 %v262, %v266
    %v268 = vadd.f32 1.0, %v267
    %v269 = vmul.f32 %v260, %v260
    %v270 = vmul.f32 %v269, -0.00019511016
    %v271 = vadd.f32 %v270, 0.008332121
    %v272 = vmul.f32 %v269, %v271
    %v273 = vadd.f32 %v272, -0.16666654
    %v274 = vmul.f32 %v269, %v273
    %v275 = vadd.f32 %v274, 1.0
    %v276 = vmul.f32 %v275, %v260
    %vm277 = vweird.f32 %v123
    %v278 = vadd.s32 %v261, 3
    %v279 = vand.u32 %v278, 3
    %vm280 = vcmp.lt.s32.totalorder %v279, 2
    %vm281 = vcmp.eq.s32.totalorder %v279, 0
    %v282 = vxor.u32 %v276, 2147483648
    %v283 = vsel %vm281, %v268, %v282
    %vm284 = vcmp.eq.s32.totalorder %v279, 2
    %v285 = vxor.u32 %v268, 2147483648
    %v286 = vsel %vm284, %v285, %v276
    %v287 = vsel %vm280, %v283, %v286
    %v288 = vsel %vm277, nan, %v287
    %v289 = vand.u32 2147483647, %v124
    %vm290 = vcmp.le.f32.partialorder %v289, 0.7853982
    %vm291 = vcmp.lt.s32.totalorder %v124, 0
    %v292 = vand.u32 %v124, 2139095040
    %v293 = vshrl.u32 %v292, 23
    %v294 = vsub.s32 %v293, 127
    %v295 = vand.u32 2147483647, %v124
    %v296 = vand.u32 %v295, 8388607
    %v297 = vor.u32 %v296, 8388608
    %v298 = vsub.s32 0, %v297
    %v299 = vadd.s32 %v294, 1
    %vm300 = vcmp.gt.s32.totalorder %v299, 0
    %v301 = vsel %vm300, %v299, 0
    %v302 = vshrl.u32 %v301, 5
    %v303 = vand.u32 %v301, 31
    %v304 = vsub.s32 32, %v303
    %v305 = vshrl.u32 683565275, %v304
    %v306 = vshll.u32 683565275, %v303
    %v307 = vshrl.u32 2475754826, %v304
    %v308 = vor.u32 %v306, %v307
    %v309 = vshll.u32 2475754826, %v303
    %v310 = vshrl.u32 2131351028, %v304
    %v311 = vor.u32 %v309, %v310
    %v312 = vshll.u32 2131351028, %v303
    %v313 = vshrl.u32 2102212464, %v304
    %v314 = vor.u32 %v312, %v313
    %v315 = vshll.u32 2102212464, %v303
    %v316 = vshrl.u32 920167782, %v304
    %v317 = vor.u32 %v315, %v316
    %v318 = vshll.u32 920167782, %v303
    %v319 = vshrl.u32 1326507024, %v304
    %v320 = vor.u32 %v318, %v319
    %vm321 = vcmp.lt.s32.totalorder %v302, 1
    %vm322 = vcmp.lt.s32.totalorder %v302, 2
    %vm323 = vcmp.lt.s32.totalorder %v302, 3
    %vm324 = vcmp.lt.s32.totalorder %v302, 4
    %v325 = vsel %vm321, %v305, %v308
    %v326 = vsel %vm324, %v314, 2102212464
    %v327 = vsel %vm323, %v311, %v326
    %v328 = vsel %vm322, %v325, %v327
    %v329 = vsel %vm321, %v308, %v311
    %v330 = vsel %vm324, %v317, 920167782
    %v331 = vsel %vm323, %v314, %v330
    %v332 = vsel %vm322, %v329, %v331
    %v333 = vsel %vm321, %v311, %v314
    %v334 = vsel %vm324, %v320, 1326507024
    %v335 = vsel %vm323, %v317, %v334
    %v336 = vsel %vm322, %v333, %v335
    %v337 = vshll.u32 %v297, 8
    %v338 = vand.u32 %v337, 65535
    %v339 = vshrl.u32 %v337, 16
    %v340 = vand.u32 %v336, 65535
    %v341 = vshrl.u32 %v336, 16
    %v342 = vmul.u32 %v338, %v340
    %v343 = vmul.u32 %v338, %v341
    %v344 = vmul.u32 %v339, %v340
    %v345 = vmul.u32 %v339, %v341
    %v346 = vshll.u32 %v343, 16
    %v347 = vshrl.u32 %v343, 16
    %v348 = vshll.u32 %v344, 16
    %v349 = vshrl.u32 %v344, 16
    %vm350 = vc.u32 %v342, %v346
    %v351 = vsel %vm350, 1, 0
    %v352 = vadd.s32 %v342, %v346
    %v353 = vadd.s32 %v345, %v351
    %vm354 = vc.u32 %v352, %v348
    %v355 = vsel %vm354, 1, 0
    %v356 = vadd.s32 %v352, %v348
    %v357 = vadd.s32 %v353, %v355
    %v358 = vadd.s32 %v357, %v347
    %v359 = vadd.s32 %v358, %v349
    %v360 = vand.u32 %v337, 65535
    %v361 = vshrl.u32 %v337, 16
    %v362 = vand.u32 %v332, 65535
    %v363 = vshrl.u32 %v332, 16
    %v364 = vmul.u32 %v360, %v362
    %v365 = vmul.u32 %v360, %v363
    %v366 = vmul.u32 %v361, %v362
    %v367 = vmul.u32 %v361, %v363
    %v368 = vshll.u32 %v365, 16
    %v369 = vshrl.u32 %v365, 16
    %v370 = vshll.u32 %v366, 16
    %v371 = vshrl.u32 %v366, 16
    %vm372 = vc.u32 %v364, %v368
    %v373 = vsel %vm372, 1, 0
    %v374 = vadd.s32 %v364, %v368
    %v375 = vadd.s32 %v367, %v373
    %vm376 = vc.u32 %v374, %v370
    %v377 = vsel %vm376, 1, 0
    %v378 = vadd.s32 %v374, %v370
    %v379 = vadd.s32 %v375, %v377
    %v380 = vadd.s32 %v379, %v369
    %v381 = vadd.s32 %v380, %v371
    %v382 = vmul.u32 %v337, %v328
    %v383 = vadd.s32 %v359, %v378
    %vm384 = vc.u32 %v359, %v378
    %v385 = vadd.s32 %v381, 1
    %v386 = vsel %vm384, %v385, %v381
    %v387 = vadd.s32 %v382, %v386
    %v388 = vadd.s32 %v387, 536870912
    %v389 = vshrl.u32 %v388, 30
    %v390 = vshll.u32 %v389, 30
    %v391 = vsub.s32 %v387, %v390
    %vm392 = vcmp.lt.s32.totalorder %v391, 0
    %v393 = vsub.s32 0, %v391
    %v394 = vsel %vm392, %v393, %v391
    %v395 = vclz %v394
    %v396 = vsub.s32 %v395, 2
    %vm397 = vcmp.gt.s32.totalorder 0, %v396
    %v398 = vsel %vm397, 0, %v396
    %v399 = vsub.s32 32, %v398
    %v400 = vshll.u32 %v391, %v398
    %v401 = vshrl.u32 %v383, %v399
    %v402 = vor.u32 %v400, %v401
    %v403 = vsub.s32 4294967266, %v398
    %v404 = vadd.s32 %v403, 127
    %v405 = vshll.u32 %v404, 23
    %v406 = vor.u32 4788187, %v405
    %v407 = vand.u32 2147483647, %v406
    %v409 = vcvt.s32.f32 %v402
    %v410 = vmul.f32 %v409, %v407
    %v411 = vxor.u32 %v410, 2147483648
    %v412 = vsel %vm291, %v411, %v410
    %v413 = vsub.s32 4, %v389
    %v414 = vsel %vm291, %v413, %v389
    %v415 = vsel %vm290, %v124, %v412
    %v416 = vsel %vm290, 0, %v414
    %v417 = vmul.f32 %v415, %v415
    %v418 = vmul.f32 %v417, -0.001358992
    %v419 = vadd.f32 %v418, 0.041655596
    %v420 = vmul.f32 %v417, %v419
    %v421 = vadd.f32 %v420, -0.4999988
    %v422 = vmul.f32 %v417, %v421
    %v423 = vadd.f32 1.0, %v422
    %v424 = vmul.f32 %v415, %v415
    %v425 = vmul.f32 %v424, -0.00019511016
    %v426 = vadd.f32 %v425, 0.008332121
    %v427 = vmul.f32 %v424, %v426
    %v428 = vadd.f32 %v427, -0.16666654
    %v429 = vmul.f32 %v424, %v428
    %v430 = vadd.f32 %v429, 1.0
    %v431 = vmul.f32 %v430, %v415
    %vm432 = vweird.f32 %v124
    %v433 = vadd.s32 %v416, 3
    %v434 = vand.u32 %v433, 3
    %vm435 = vcmp.lt.s32.totalorder %v434, 2
    %vm436 = vcmp.eq.s32.totalorder %v434, 0
    %v437 = vxor.u32 %v431, 2147483648
    %v438 = vsel %vm436, %v423, %v437
    %vm439 = vcmp.eq.s32.totalorder %v434, 2
    %v440 = vxor.u32 %v423, 2147483648
    %v441 = vsel %vm439, %v440, %v431
    %v442 = vsel %vm435, %v438, %v441
    %v443 = vsel %vm432, nan, %v442
    %v444 = vand.u32 2147483647, %v125
    %vm445 = vcmp.le.f32.partialorder %v444, 0.7853982
    %vm446 = vcmp.lt.s32.totalorder %v125, 0
    %v447 = vand.u32 %v125, 2139095040
    %v448 = vshrl.u32 %v447, 23
    %v449 = vsub.s32 %v448, 127
    %v450 = vand.u32 2147483647, %v125
    %v451 = vand.u32 %v450, 8388607
    %v452 = vor.u32 %v451, 8388608
    %v453 = vsub.s32 0, %v452
    %v454 = vadd.s32 %v449, 1
    %vm455 = vcmp.gt.s32.totalorder %v454, 0
    %v456 = vsel %vm455, %v454, 0
    %v457 = vshrl.u32 %v456, 5
    %v458 = vand.u32 %v456, 31
    %v459 = vsub.s32 32, %v458
    %v460 = vshrl.u32 683565275, %v459
    %v461 = vshll.u32 683565275, %v458
    %v462 = vshrl.u32 2475754826, %v459
    %v463 = vor.u32 %v461, %v462
    %v464 = vshll.u32 2475754826, %v458
    %v465 = vshrl.u32 2131351028, %v459
    %v466 = vor.u32 %v464, %v465
    %v467 = vshll.u32 2131351028, %v458
    %v468 = vshrl.u32 2102212464, %v459
    %v469 = vor.u32 %v467, %v468
    %v470 = vshll.u32 2102212464, %v458
    %v471 = vshrl.u32 920167782, %v459
    %v472 = vor.u32 %v470, %v471
    %v473 = vshll.u32 920167782, %v458
    %v474 = vshrl.u32 1326507024, %v459
    %v475 = vor.u32 %v473, %v474
    %vm476 = vcmp.lt.s32.totalorder %v457, 1
    %vm477 = vcmp.lt.s32.totalorder %v457, 2
    %vm478 = vcmp.lt.s32.totalorder %v457, 3
    %vm479 = vcmp.lt.s32.totalorder %v457, 4
    %v480 = vsel %vm476, %v460, %v463
    %v481 = vsel %vm479, %v469, 2102212464
    %v482 = vsel %vm478, %v466, %v481
    %v483 = vsel %vm477, %v480, %v482
    %v484 = vsel %vm476, %v463, %v466
    %v485 = vsel %vm479, %v472, 920167782
    %v486 = vsel %vm478, %v469, %v485
    %v487 = vsel %vm477, %v484, %v486
    %v488 = vsel %vm476, %v466, %v469
    %v489 = vsel %vm479, %v475, 1326507024
    %v490 = vsel %vm478, %v472, %v489
    %v491 = vsel %vm477, %v488, %v490
    %v492 = vshll.u32 %v452, 8
    %v493 = vand.u32 %v492, 65535
    %v494 = vshrl.u32 %v492, 16
    %v495 = vand.u32 %v491, 65535
    %v496 = vshrl.u32 %v491, 16
    %v497 = vmul.u32 %v493, %v495
    %v498 = vmul.u32 %v493, %v496
    %v499 = vmul.u32 %v494, %v495
    %v500 = vmul.u32 %v494, %v496
    %v501 = vshll.u32 %v498, 16
    %v502 = vshrl.u32 %v498, 16
    %v503 = vshll.u32 %v499, 16
    %v504 = vshrl.u32 %v499, 16
    %vm505 = vc.u32 %v497, %v501
    %v506 = vsel %vm505, 1, 0
    %v507 = vadd.s32 %v497, %v501
    %v508 = vadd.s32 %v500, %v506
    %vm509 = vc.u32 %v507, %v503
    %v510 = vsel %vm509, 1, 0
    %v511 = vadd.s32 %v507, %v503
    %v512 = vadd.s32 %v508, %v510
    %v513 = vadd.s32 %v512, %v502
    %v514 = vadd.s32 %v513, %v504
    %v515 = vand.u32 %v492, 65535
    %v516 = vshrl.u32 %v492, 16
    %v517 = vand.u32 %v487, 65535
    %v518 = vshrl.u32 %v487, 16
    %v519 = vmul.u32 %v515, %v517
    %v520 = vmul.u32 %v515, %v518
    %v521 = vmul.u32 %v516, %v517
    %v522 = vmul.u32 %v516, %v518
    %v523 = vshll.u32 %v520, 16
    %v524 = vshrl.u32 %v520, 16
    %v525 = vshll.u32 %v521, 16
    %v526 = vshrl.u32 %v521, 16
    %vm527 = vc.u32 %v519, %v523
    %v528 = vsel %vm527, 1, 0
    %v529 = vadd.s32 %v519, %v523
    %v530 = vadd.s32 %v522, %v528
    %vm531 = vc.u32 %v529, %v525
    %v532 = vsel %vm531, 1, 0
    %v533 = vadd.s32 %v529, %v525
    %v534 = vadd.s32 %v530, %v532
    %v535 = vadd.s32 %v534, %v524
    %v536 = vadd.s32 %v535, %v526
    %v537 = vmul.u32 %v492, %v483
    %v538 = vadd.s32 %v514, %v533
    %vm539 = vc.u32 %v514, %v533
    %v540 = vadd.s32 %v536, 1
    %v541 = vsel %vm539, %v540, %v536
    %v542 = vadd.s32 %v537, %v541
    %v543 = vadd.s32 %v542, 536870912
    %v544 = vshrl.u32 %v543, 30
    %v545 = vshll.u32 %v544, 30
    %v546 = vsub.s32 %v542, %v545
    %vm547 = vcmp.lt.s32.totalorder %v546, 0
    %v548 = vsub.s32 0, %v546
    %v549 = vsel %vm547, %v548, %v546
    %v550 = vclz %v549
    %v551 = vsub.s32 %v550, 2
    %vm552 = vcmp.gt.s32.totalorder 0, %v551
    %v553 = vsel %vm552, 0, %v551
    %v554 = vsub.s32 32, %v553
    %v555 = vshll.u32 %v546, %v553
    %v556 = vshrl.u32 %v538, %v554
    %v557 = vor.u32 %v555, %v556
    %v558 = vsub.s32 4294967266, %v553
    %v559 = vadd.s32 %v558, 127
    %v560 = vshll.u32 %v559, 23
    %v561 = vor.u32 4788187, %v560
    %v562 = vand.u32 2147483647, %v561
    %v564 = vcvt.s32.f32 %v557
    %v565 = vmul.f32 %v564, %v562
    %v566 = vxor.u32 %v565, 2147483648
    %v567 = vsel %vm446, %v566, %v565
    %v568 = vsub.s32 4, %v544
    %v569 = vsel %vm446, %v568, %v544
    %v570 = vsel %vm445, %v125, %v567
    %v571 = vsel %vm445, 0, %v569
    %v572 = vmul.f32 %v570, %v570
    %v573 = vmul.f32 %v572, -0.001358992
    %v574 = vadd.f32 %v573, 0.041655596
    %v575 = vmul.f32 %v572, %v574
    %v576 = vadd.f32 %v575, -0.4999988
    %v577 = vmul.f32 %v572, %v576
    %v578 = vadd.f32 1.0, %v577
    %v579 = vmul.f32 %v570, %v570
    %v580 = vmul.f32 %v579, -0.00019511016
    %v581 = vadd.f32 %v580, 0.008332121
    %v582 = vmul.f32 %v579, %v581
    %v583 = vadd.f32 %v582, -0.16666654
    %v584 = vmul.f32 %v579, %v583
    %v585 = vadd.f32 %v584, 1.0
    %v586 = vmul.f32 %v585, %v570
    %vm587 = vweird.f32 %v125
    %v588 = vadd.s32 %v571, 3
    %v589 = vand.u32 %v588, 3
    %vm590 = vcmp.lt.s32.totalorder %v589, 2
    %vm591 = vcmp.eq.s32.totalorder %v589, 0
    %v592 = vxor.u32 %v586, 2147483648
    %v593 = vsel %vm591, %v578, %v592
    %vm594 = vcmp.eq.s32.totalorder %v589, 2
    %v595 = vxor.u32 %v578, 2147483648
    %v596 = vsel %vm594, %v595, %v586
    %v597 = vsel %vm590, %v593, %v596
    %v598 = vsel %vm587, nan, %v597
    %v599 = vand.u32 2147483647, %v126
    %vm600 = vcmp.le.f32.partialorder %v599, 0.7853982
    %vm601 = vcmp.lt.s32.totalorder %v126, 0
    %v602 = vand.u32 %v126, 2139095040
    %v603 = vshrl.u32 %v602, 23
    %v604 = vsub.s32 %v603, 127
    %v605 = vand.u32 2147483647, %v126
    %v606 = vand.u32 %v605, 8388607
    %v607 = vor.u32 %v606, 8388608
    %v608 = vsub.s32 0, %v607
    %v609 = vadd.s32 %v604, 1
    %vm610 = vcmp.gt.s32.totalorder %v609, 0
    %v611 = vsel %vm610, %v609, 0
    %v612 = vshrl.u32 %v611, 5
    %v613 = vand.u32 %v611, 31
    %v614 = vsub.s32 32, %v613
    %v615 = vshrl.u32 683565275, %v614
    %v616 = vshll.u32 683565275, %v613
    %v617 = vshrl.u32 2475754826, %v614
    %v618 = vor.u32 %v616, %v617
    %v619 = vshll.u32 2475754826, %v613
    %v620 = vshrl.u32 2131351028, %v614
    %v621 = vor.u32 %v619, %v620
    %v622 = vshll.u32 2131351028, %v613
    %v623 = vshrl.u32 2102212464, %v614
    %v624 = vor.u32 %v622, %v623
    %v625 = vshll.u32 2102212464, %v613
    %v626 = vshrl.u32 920167782, %v614
    %v627 = vor.u32 %v625, %v626
    %v628 = vshll.u32 920167782, %v613
    %v629 = vshrl.u32 1326507024, %v614
    %v630 = vor.u32 %v628, %v629
    %vm631 = vcmp.lt.s32.totalorder %v612, 1
    %vm632 = vcmp.lt.s32.totalorder %v612, 2
    %vm633 = vcmp.lt.s32.totalorder %v612, 3
    %vm634 = vcmp.lt.s32.totalorder %v612, 4
    %v635 = vsel %vm631, %v615, %v618
    %v636 = vsel %vm634, %v624, 2102212464
    %v637 = vsel %vm633, %v621, %v636
    %v638 = vsel %vm632, %v635, %v637
    %v639 = vsel %vm631, %v618, %v621
    %v640 = vsel %vm634, %v627, 920167782
    %v641 = vsel %vm633, %v624, %v640
    %v642 = vsel %vm632, %v639, %v641
    %v643 = vsel %vm631, %v621, %v624
    %v644 = vsel %vm634, %v630, 1326507024
    %v645 = vsel %vm633, %v627, %v644
    %v646 = vsel %vm632, %v643, %v645
    %v647 = vshll.u32 %v607, 8
    %v648 = vand.u32 %v647, 65535
    %v649 = vshrl.u32 %v647, 16
    %v650 = vand.u32 %v646, 65535
    %v651 = vshrl.u32 %v646, 16
    %v652 = vmul.u32 %v648, %v650
    %v653 = vmul.u32 %v648, %v651
    %v654 = vmul.u32 %v649, %v650
    %v655 = vmul.u32 %v649, %v651
    %v656 = vshll.u32 %v653, 16
    %v657 = vshrl.u32 %v653, 16
    %v658 = vshll.u32 %v654, 16
    %v659 = vshrl.u32 %v654, 16
    %vm660 = vc.u32 %v652, %v656
    %v661 = vsel %vm660, 1, 0
    %v662 = vadd.s32 %v652, %v656
    %v663 = vadd.s32 %v655, %v661
    %vm664 = vc.u32 %v662, %v658
    %v665 = vsel %vm664, 1, 0
    %v666 = vadd.s32 %v662, %v658
    %v667 = vadd.s32 %v663, %v665
    %v668 = vadd.s32 %v667, %v657
    %v669 = vadd.s32 %v668, %v659
    %v670 = vand.u32 %v647, 65535
    %v671 = vshrl.u32 %v647, 16
    %v672 = vand.u32 %v642, 65535
    %v673 = vshrl.u32 %v642, 16
    %v674 = vmul.u32 %v670, %v672
    %v675 = vmul.u32 %v670, %v673
    %v676 = vmul.u32 %v671, %v672
    %v677 = vmul.u32 %v671, %v673
    %v678 = vshll.u32 %v675, 16
    %v679 = vshrl.u32 %v675, 16
    %v680 = vshll.u32 %v676, 16
    %v681 = vshrl.u32 %v676, 16
    %vm682 = vc.u32 %v674, %v678
    %v683 = vsel %vm682, 1, 0
    %v684 = vadd.s32 %v674, %v678
    %v685 = vadd.s32 %v677, %v683
    %vm686 = vc.u32 %v684, %v680
    %v687 = vsel %vm686, 1, 0
    %v688 = vadd.s32 %v684, %v680
    %v689 = vadd.s32 %v685, %v687
    %v690 = vadd.s32 %v689, %v679
    %v691 = vadd.s32 %v690, %v681
    %v692 = vmul.u32 %v647, %v638
    %v693 = vadd.s32 %v669, %v688
    %vm694 = vc.u32 %v669, %v688
    %v695 = vadd.s32 %v691, 1
    %v696 = vsel %vm694, %v695, %v691
    %v697 = vadd.s32 %v692, %v696
    %v698 = vadd.s32 %v697, 536870912
    %v699 = vshrl.u32 %v698, 30
    %v700 = vshll.u32 %v699, 30
    %v701 = vsub.s32 %v697, %v700
    %vm702 = vcmp.lt.s32.totalorder %v701, 0
    %v703 = vsub.s32 0, %v701
    %v704 = vsel %vm702, %v703, %v701
    %v705 = vclz %v704
    %v706 = vsub.s32 %v705, 2
    %vm707 = vcmp.gt.s32.totalorder 0, %v706
    %v708 = vsel %vm707, 0, %v706
    %v709 = vsub.s32 32, %v708
    %v710 = vshll.u32 %v701, %v708
    %v711 = vshrl.u32 %v693, %v709
    %v712 = vor.u32 %v710, %v711
    %v713 = vsub.s32 4294967266, %v708
    %v714 = vadd.s32 %v713, 127
    %v715 = vshll.u32 %v714, 23
    %v716 = vor.u32 4788187, %v715
    %v717 = vand.u32 2147483647, %v716
    %v719 = vcvt.s32.f32 %v712
    %v720 = vmul.f32 %v719, %v717
    %v721 = vxor.u32 %v720, 2147483648
    %v722 = vsel %vm601, %v721, %v720
    %v723 = vsub.s32 4, %v699
    %v724 = vsel %vm601, %v723, %v699
    %v725 = vsel %vm600, %v126, %v722
    %v726 = vsel %vm600, 0, %v724
    %v727 = vmul.f32 %v725, %v725
    %v728 = vmul.f32 %v727, -0.001358992
    %v729 = vadd.f32 %v728, 0.041655596
    %v730 = vmul.f32 %v727, %v729
    %v731 = vadd.f32 %v730, -0.4999988
    %v732 = vmul.f32 %v727, %v731
    %v733 = vadd.f32 1.0, %v732
    %v734 = vmul.f32 %v725, %v725
    %v735 = vmul.f32 %v734, -0.00019511016
    %v736 = vadd.f32 %v735, 0.008332121
    %v737 = vmul.f32 %v734, %v736
    %v738 = vadd.f32 %v737, -0.16666654
    %v739 = vmul.f32 %v734, %v738
    %v740 = vadd.f32 %v739, 1.0
    %v741 = vmul.f32 %v740, %v725
    %vm742 = vweird.f32 %v126
    %v743 = vadd.s32 %v726, 3
    %v744 = vand.u32 %v743, 3
    %vm745 = vcmp.lt.s32.totalorder %v744, 2
    %vm746 = vcmp.eq.s32.totalorder %v744, 0
    %v747 = vxor.u32 %v741, 2147483648
    %v748 = vsel %vm746, %v733, %v747
    %vm749 = vcmp.eq.s32.totalorder %v744, 2
    %v750 = vxor.u32 %v733, 2147483648
    %v751 = vsel %vm749, %v750, %v741
    %v752 = vsel %vm745, %v748, %v751
    %v753 = vsel %vm742, nan, %v752
    %v754 = vand.u32 2147483647, %v127
    %vm755 = vcmp.le.f32.partialorder %v754, 0.7853982
    %vm756 = vcmp.lt.s32.totalorder %v127, 0
    %v757 = vand.u32 %v127, 2139095040
    %v758 = vshrl.u32 %v757, 23
    %v759 = vsub.s32 %v758, 127
    %v760 = vand.u32 2147483647, %v127
    %v761 = vand.u32 %v760, 8388607
    %v762 = vor.u32 %v761, 8388608
    %v763 = vsub.s32 0, %v762
    %v764 = vadd.s32 %v759, 1
    %vm765 = vcmp.gt.s32.totalorder %v764, 0
    %v766 = vsel %vm765, %v764, 0
    %v767 = vshrl.u32 %v766, 5
    %v768 = vand.u32 %v766, 31
    %v769 = vsub.s32 32, %v768
    %v770 = vshrl.u32 683565275, %v769
    %v771 = vshll.u32 683565275, %v768
    %v772 = vshrl.u32 2475754826, %v769
    %v773 = vor.u32 %v771, %v772
    %v774 = vshll.u32 2475754826, %v768
    %v775 = vshrl.u32 2131351028, %v769
    %v776 = vor.u32 %v774, %v775
    %v777 = vshll.u32 2131351028, %v768
    %v778 = vshrl.u32 2102212464, %v769
    %v779 = vor.u32 %v777, %v778
    %v780 = vshll.u32 2102212464, %v768
    %v781 = vshrl.u32 920167782, %v769
    %v782 = vor.u32 %v780, %v781
    %v783 = vshll.u32 920167782, %v768
    %v784 = vshrl.u32 1326507024, %v769
    %v785 = vor.u32 %v783, %v784
    %vm786 = vcmp.lt.s32.totalorder %v767, 1
    %vm787 = vcmp.lt.s32.totalorder %v767, 2
    %vm788 = vcmp.lt.s32.totalorder %v767, 3
    %vm789 = vcmp.lt.s32.totalorder %v767, 4
    %v790 = vsel %vm786, %v770, %v773
    %v791 = vsel %vm789, %v779, 2102212464
    %v792 = vsel %vm788, %v776, %v791
    %v793 = vsel %vm787, %v790, %v792
    %v794 = vsel %vm786, %v773, %v776
    %v795 = vsel %vm789, %v782, 920167782
    %v796 = vsel %vm788, %v779, %v795
    %v797 = vsel %vm787, %v794, %v796
    %v798 = vsel %vm786, %v776, %v779
    %v799 = vsel %vm789, %v785, 1326507024
    %v800 = vsel %vm788, %v782, %v799
    %v801 = vsel %vm787, %v798, %v800
    %v802 = vshll.u32 %v762, 8
    %v803 = vand.u32 %v802, 65535
    %v804 = vshrl.u32 %v802, 16
    %v805 = vand.u32 %v801, 65535
    %v806 = vshrl.u32 %v801, 16
    %v807 = vmul.u32 %v803, %v805
    %v808 = vmul.u32 %v803, %v806
    %v809 = vmul.u32 %v804, %v805
    %v810 = vmul.u32 %v804, %v806
    %v811 = vshll.u32 %v808, 16
    %v812 = vshrl.u32 %v808, 16
    %v813 = vshll.u32 %v809, 16
    %v814 = vshrl.u32 %v809, 16
    %vm815 = vc.u32 %v807, %v811
    %v816 = vsel %vm815, 1, 0
    %v817 = vadd.s32 %v807, %v811
    %v818 = vadd.s32 %v810, %v816
    %vm819 = vc.u32 %v817, %v813
    %v820 = vsel %vm819, 1, 0
    %v821 = vadd.s32 %v817, %v813
    %v822 = vadd.s32 %v818, %v820
    %v823 = vadd.s32 %v822, %v812
    %v824 = vadd.s32 %v823, %v814
    %v825 = vand.u32 %v802, 65535
    %v826 = vshrl.u32 %v802, 16
    %v827 = vand.u32 %v797, 65535
    %v828 = vshrl.u32 %v797, 16
    %v829 = vmul.u32 %v825, %v827
    %v830 = vmul.u32 %v825, %v828
    %v831 = vmul.u32 %v826, %v827
    %v832 = vmul.u32 %v826, %v828
    %v833 = vshll.u32 %v830, 16
    %v834 = vshrl.u32 %v830, 16
    %v835 = vshll.u32 %v831, 16
    %v836 = vshrl.u32 %v831, 16
    %vm837 = vc.u32 %v829, %v833
    %v838 = vsel %vm837, 1, 0
    %v839 = vadd.s32 %v829, %v833
    %v840 = vadd.s32 %v832, %v838
    %vm841 = vc.u32 %v839, %v835
    %v842 = vsel %vm841, 1, 0
    %v843 = vadd.s32 %v839, %v835
    %v844 = vadd.s32 %v840, %v842
    %v845 = vadd.s32 %v844, %v834
    %v846 = vadd.s32 %v845, %v836
    %v847 = vmul.u32 %v802, %v793
    %v848 = vadd.s32 %v824, %v843
    %vm849 = vc.u32 %v824, %v843
    %v850 = vadd.s32 %v846, 1
    %v851 = vsel %vm849, %v850, %v846
    %v852 = vadd.s32 %v847, %v851
    %v853 = vadd.s32 %v852, 536870912
    %v854 = vshrl.u32 %v853, 30
    %v855 = vshll.u32 %v854, 30
    %v856 = vsub.s32 %v852, %v855
    %vm857 = vcmp.lt.s32.totalorder %v856, 0
    %v858 = vsub.s32 0, %v856
    %v859 = vsel %vm857, %v858, %v856
    %v860 = vclz %v859
    %v861 = vsub.s32 %v860, 2
    %vm862 = vcmp.gt.s32.totalorder 0, %v861
    %v863 = vsel %vm862, 0, %v861
    %v864 = vsub.s32 32, %v863
    %v865 = vshll.u32 %v856, %v863
    %v866 = vshrl.u32 %v848, %v864
    %v867 = vor.u32 %v865, %v866
    %v868 = vsub.s32 4294967266, %v863
    %v869 = vadd.s32 %v868, 127
    %v870 = vshll.u32 %v869, 23
    %v871 = vor.u32 4788187, %v870
    %v872 = vand.u32 2147483647, %v871
    %v874 = vcvt.s32.f32 %v867
    %v875 = vmul.f32 %v874, %v872
    %v876 = vxor.u32 %v875, 2147483648
    %v877 = vsel %vm756, %v876, %v875
    %v878 = vsub.s32 4, %v854
    %v879 = vsel %vm756, %v878, %v854
    %v880 = vsel %vm755, %v127, %v877
    %v881 = vsel %vm755, 0, %v879
    %v882 = vmul.f32 %v880, %v880
    %v883 = vmul.f32 %v882, -0.001358992
    %v884 = vadd.f32 %v883, 0.041655596
    %v885 = vmul.f32 %v882, %v884
    %v886 = vadd.f32 %v885, -0.4999988
    %v887 = vmul.f32 %v882, %v886
    %v888 = vadd.f32 1.0, %v887
    %v889 = vmul.f32 %v880, %v880
    %v890 = vmul.f32 %v889, -0.00019511016
    %v891 = vadd.f32 %v890, 0.008332121
    %v892 = vmul.f32 %v889, %v891
    %v893 = vadd.f32 %v892, -0.16666654
    %v894 = vmul.f32 %v889, %v893
    %v895 = vadd.f32 %v894, 1.0
    %v896 = vmul.f32 %v895, %v880
    %vm897 = vweird.f32 %v127
    %v898 = vadd.s32 %v881, 3
    %v899 = vand.u32 %v898, 3
    %vm900 = vcmp.lt.s32.totalorder %v899, 2
    %vm901 = vcmp.eq.s32.totalorder %v899, 0
    %v902 = vxor.u32 %v896, 2147483648
    %v903 = vsel %vm901, %v888, %v902
    %vm904 = vcmp.eq.s32.totalorder %v899, 2
    %v905 = vxor.u32 %v888, 2147483648
    %v906 = vsel %vm904, %v905, %v896
    %v907 = vsel %vm900, %v903, %v906
    %v908 = vsel %vm897, nan, %v907
    %v909 = vand.u32 2147483647, %v128
    %vm910 = vcmp.le.f32.partialorder %v909, 0.7853982
    %vm911 = vcmp.lt.s32.totalorder %v128, 0
    %v912 = vand.u32 %v128, 2139095040
    %v913 = vshrl.u32 %v912, 23
    %v914 = vsub.s32 %v913, 127
    %v915 = vand.u32 2147483647, %v128
    %v916 = vand.u32 %v915, 8388607
    %v917 = vor.u32 %v916, 8388608
    %v918 = vsub.s32 0, %v917
    %v919 = vadd.s32 %v914, 1
    %vm920 = vcmp.gt.s32.totalorder %v919, 0
    %v921 = vsel %vm920, %v919, 0
    %v922 = vshrl.u32 %v921, 5
    %v923 = vand.u32 %v921, 31
    %v924 = vsub.s32 32, %v923
    %v925 = vshrl.u32 683565275, %v924
    %v926 = vshll.u32 683565275, %v923
    %v927 = vshrl.u32 2475754826, %v924
    %v928 = vor.u32 %v926, %v927
    %v929 = vshll.u32 2475754826, %v923
    %v930 = vshrl.u32 2131351028, %v924
    %v931 = vor.u32 %v929, %v930
    %v932 = vshll.u32 2131351028, %v923
    %v933 = vshrl.u32 2102212464, %v924
    %v934 = vor.u32 %v932, %v933
    %v935 = vshll.u32 2102212464, %v923
    %v936 = vshrl.u32 920167782, %v924
    %v937 = vor.u32 %v935, %v936
    %v938 = vshll.u32 920167782, %v923
    %v939 = vshrl.u32 1326507024, %v924
    %v940 = vor.u32 %v938, %v939
    %vm941 = vcmp.lt.s32.totalorder %v922, 1
    %vm942 = vcmp.lt.s32.totalorder %v922, 2
    %vm943 = vcmp.lt.s32.totalorder %v922, 3
    %vm944 = vcmp.lt.s32.totalorder %v922, 4
    %v945 = vsel %vm941, %v925, %v928
    %v946 = vsel %vm944, %v934, 2102212464
    %v947 = vsel %vm943, %v931, %v946
    %v948 = vsel %vm942, %v945, %v947
    %v949 = vsel %vm941, %v928, %v931
    %v950 = vsel %vm944, %v937, 920167782
    %v951 = vsel %vm943, %v934, %v950
    %v952 = vsel %vm942, %v949, %v951
    %v953 = vsel %vm941, %v931, %v934
    %v954 = vsel %vm944, %v940, 1326507024
    %v955 = vsel %vm943, %v937, %v954
    %v956 = vsel %vm942, %v953, %v955
    %v957 = vshll.u32 %v917, 8
    %v958 = vand.u32 %v957, 65535
    %v959 = vshrl.u32 %v957, 16
    %v960 = vand.u32 %v956, 65535
    %v961 = vshrl.u32 %v956, 16
    %v962 = vmul.u32 %v958, %v960
    %v963 = vmul.u32 %v958, %v961
    %v964 = vmul.u32 %v959, %v960
    %v965 = vmul.u32 %v959, %v961
    %v966 = vshll.u32 %v963, 16
    %v967 = vshrl.u32 %v963, 16
    %v968 = vshll.u32 %v964, 16
    %v969 = vshrl.u32 %v964, 16
    %vm970 = vc.u32 %v962, %v966
    %v971 = vsel %vm970, 1, 0
    %v972 = vadd.s32 %v962, %v966
    %v973 = vadd.s32 %v965, %v971
    %vm974 = vc.u32 %v972, %v968
    %v975 = vsel %vm974, 1, 0
    %v976 = vadd.s32 %v972, %v968
    %v977 = vadd.s32 %v973, %v975
    %v978 = vadd.s32 %v977, %v967
    %v979 = vadd.s32 %v978, %v969
    %v980 = vand.u32 %v957, 65535
    %v981 = vshrl.u32 %v957, 16
    %v982 = vand.u32 %v952, 65535
    %v983 = vshrl.u32 %v952, 16
    %v984 = vmul.u32 %v980, %v982
    %v985 = vmul.u32 %v980, %v983
    %v986 = vmul.u32 %v981, %v982
    %v987 = vmul.u32 %v981, %v983
    %v988 = vshll.u32 %v985, 16
    %v989 = vshrl.u32 %v985, 16
    %v990 = vshll.u32 %v986, 16
    %v991 = vshrl.u32 %v986, 16
    %vm992 = vc.u32 %v984, %v988
    %v993 = vsel %vm992, 1, 0
    %v994 = vadd.s32 %v984, %v988
    %v995 = vadd.s32 %v987, %v993
    %vm996 = vc.u32 %v994, %v990
    %v997 = vsel %vm996, 1, 0
    %v998 = vadd.s32 %v994, %v990
    %v999 = vadd.s32 %v995, %v997
    %v1000 = vadd.s32 %v999, %v989
    %v1001 = vadd.s32 %v1000, %v991
    %v1002 = vmul.u32 %v957, %v948
    %v1003 = vadd.s32 %v979, %v998
    %vm1004 = vc.u32 %v979, %v998
    %v1005 = vadd.s32 %v1001, 1
    %v1006 = vsel %vm1004, %v1005, %v1001
    %v1007 = vadd.s32 %v1002, %v1006
    %v1008 = vadd.s32 %v1007, 536870912
    %v1009 = vshrl.u32 %v1008, 30
    %v1010 = vshll.u32 %v1009, 30
    %v1011 = vsub.s32 %v1007, %v1010
    %vm1012 = vcmp.lt.s32.totalorder %v1011, 0
    %v1013 = vsub.s32 0, %v1011
    %v1014 = vsel %vm1012, %v1013, %v1011
    %v1015 = vclz %v1014
    %v1016 = vsub.s32 %v1015, 2
    %vm1017 = vcmp.gt.s32.totalorder 0, %v1016
    %v1018 = vsel %vm1017, 0, %v1016
    %v1019 = vsub.s32 32, %v1018
    %v1020 = vshll.u32 %v1011, %v1018
    %v1021 = vshrl.u32 %v1003, %v1019
    %v1022 = vor.u32 %v1020, %v1021
    %v1023 = vsub.s32 4294967266, %v1018
    %v1024 = vadd.s32 %v1023, 127
    %v1025 = vshll.u32 %v1024, 23
    %v1026 = vor.u32 4788187, %v1025
    %v1027 = vand.u32 2147483647, %v1026
    %v1029 = vcvt.s32.f32 %v1022
    %v1030 = vmul.f32 %v1029, %v1027
    %v1031 = vxor.u32 %v1030, 2147483648
    %v1032 = vsel %vm911, %v1031, %v1030
    %v1033 = vsub.s32 4, %v1009
    %v1034 = vsel %vm911, %v1033, %v1009
    %v1035 = vsel %vm910, %v128, %v1032
    %v1036 = vsel %vm910, 0, %v1034
    %v1037 = vmul.f32 %v1035, %v1035
    %v1038 = vmul.f32 %v1037, -0.001358992
    %v1039 = vadd.f32 %v1038, 0.041655596
    %v1040 = vmul.f32 %v1037, %v1039
    %v1041 = vadd.f32 %v1040, -0.4999988
    %v1042 = vmul.f32 %v1037, %v1041
    %v1043 = vadd.f32 1.0, %v1042
    %v1044 = vmul.f32 %v1035, %v1035
    %v1045 = vmul.f32 %v1044, -0.00019511016
    %v1046 = vadd.f32 %v1045, 0.008332121
    %v1047 = vmul.f32 %v1044, %v1046
    %v1048 = vadd.f32 %v1047, -0.16666654
    %v1049 = vmul.f32 %v1044, %v1048
    %v1050 = vadd.f32 %v1049, 1.0
    %v1051 = vmul.f32 %v1050, %v1035
    %vm1052 = vweird.f32 %v128
    %v1053 = vadd.s32 %v1036, 3
    %v1054 = vand.u32 %v1053, 3
    %vm1055 = vcmp.lt.s32.totalorder %v1054, 2
    %vm1056 = vcmp.eq.s32.totalorder %v1054, 0
    %v1057 = vxor.u32 %v1051, 2147483648
    %v1058 = vsel %vm1056, %v1043, %v1057
    %vm1059 = vcmp.eq.s32.totalorder %v1054, 2
    %v1060 = vxor.u32 %v1043, 2147483648
    %v1061 = vsel %vm1059, %v1060, %v1051
    %v1062 = vsel %vm1055, %v1058, %v1061
    %v1063 = vsel %vm1052, nan, %v1062
    %v1064 = vand.u32 2147483647, %v129
    %vm1065 = vcmp.le.f32.partialorder %v1064, 0.7853982
    %vm1066 = vcmp.lt.s32.totalorder %v129, 0
    %v1067 = vand.u32 %v129, 2139095040
    %v1068 = vshrl.u32 %v1067, 23
    %v1069 = vsub.s32 %v1068, 127
    %v1070 = vand.u32 2147483647, %v129
    %v1071 = vand.u32 %v1070, 8388607
    %v1072 = vor.u32 %v1071, 8388608
    %v1073 = vsub.s32 0, %v1072
    %v1074 = vadd.s32 %v1069, 1
    %vm1075 = vcmp.gt.s32.totalorder %v1074, 0
    %v1076 = vsel %vm1075, %v1074, 0
    %v1077 = vshrl.u32 %v1076, 5
    %v1078 = vand.u32 %v1076, 31
    %v1079 = vsub.s32 32, %v1078
    %v1080 = vshrl.u32 683565275, %v1079
    %v1081 = vshll.u32 683565275, %v1078
    %v1082 = vshrl.u32 2475754826, %v1079
    %v1083 = vor.u32 %v1081, %v1082
    %v1084 = vshll.u32 2475754826, %v1078
    %v1085 = vshrl.u32 2131351028, %v1079
    %v1086 = vor.u32 %v1084, %v1085
    %v1087 = vshll.u32 2131351028, %v1078
    %v1088 = vshrl.u32 2102212464, %v1079
    %v1089 = vor.u32 %v1087, %v1088
    %v1090 = vshll.u32 2102212464, %v1078
    %v1091 = vshrl.u32 920167782, %v1079
    %v1092 = vor.u32 %v1090, %v1091
    %v1093 = vshll.u32 920167782, %v1078
    %v1094 = vshrl.u32 1326507024, %v1079
    %v1095 = vor.u32 %v1093, %v1094
    %vm1096 = vcmp.lt.s32.totalorder %v1077, 1
    %vm1097 = vcmp.lt.s32.totalorder %v1077, 2
    %vm1098 = vcmp.lt.s32.totalorder %v1077, 3
    %vm1099 = vcmp.lt.s32.totalorder %v1077, 4
    %v1100 = vsel %vm1096, %v1080, %v1083
    %v1101 = vsel %vm1099, %v1089, 2102212464
    %v1102 = vsel %vm1098, %v1086, %v1101
    %v1103 = vsel %vm1097, %v1100, %v1102
    %v1104 = vsel %vm1096, %v1083, %v1086
    %v1105 = vsel %vm1099, %v1092, 920167782
    %v1106 = vsel %vm1098, %v1089, %v1105
    %v1107 = vsel %vm1097, %v1104, %v1106
    %v1108 = vsel %vm1096, %v1086, %v1089
    %v1109 = vsel %vm1099, %v1095, 1326507024
    %v1110 = vsel %vm1098, %v1092, %v1109
    %v1111 = vsel %vm1097, %v1108, %v1110
    %v1112 = vshll.u32 %v1072, 8
    %v1113 = vand.u32 %v1112, 65535
    %v1114 = vshrl.u32 %v1112, 16
    %v1115 = vand.u32 %v1111, 65535
    %v1116 = vshrl.u32 %v1111, 16
    %v1117 = vmul.u32 %v1113, %v1115
    %v1118 = vmul.u32 %v1113, %v1116
    %v1119 = vmul.u32 %v1114, %v1115
    %v1120 = vmul.u32 %v1114, %v1116
    %v1121 = vshll.u32 %v1118, 16
    %v1122 = vshrl.u32 %v1118, 16
    %v1123 = vshll.u32 %v1119, 16
    %v1124 = vshrl.u32 %v1119, 16
    %vm1125 = vc.u32 %v1117, %v1121
    %v1126 = vsel %vm1125, 1, 0
    %v1127 = vadd.s32 %v1117, %v1121
    %v1128 = vadd.s32 %v1120, %v1126
    %vm1129 = vc.u32 %v1127, %v1123
    %v1130 = vsel %vm1129, 1, 0
    %v1131 = vadd.s32 %v1127, %v1123
    %v1132 = vadd.s32 %v1128, %v1130
    %v1133 = vadd.s32 %v1132, %v1122
    %v1134 = vadd.s32 %v1133, %v1124
    %v1135 = vand.u32 %v1112, 65535
    %v1136 = vshrl.u32 %v1112, 16
    %v1137 = vand.u32 %v1107, 65535
    %v1138 = vshrl.u32 %v1107, 16
    %v1139 = vmul.u32 %v1135, %v1137
    %v1140 = vmul.u32 %v1135, %v1138
    %v1141 = vmul.u32 %v1136, %v1137
    %v1142 = vmul.u32 %v1136, %v1138
    %v1143 = vshll.u32 %v1140, 16
    %v1144 = vshrl.u32 %v1140, 16
    %v1145 = vshll.u32 %v1141, 16
    %v1146 = vshrl.u32 %v1141, 16
    %vm1147 = vc.u32 %v1139, %v1143
    %v1148 = vsel %vm1147, 1, 0
    %v1149 = vadd.s32 %v1139, %v1143
    %v1150 = vadd.s32 %v1142, %v1148
    %vm1151 = vc.u32 %v1149, %v1145
    %v1152 = vsel %vm1151, 1, 0
    %v1153 = vadd.s32 %v1149, %v1145
    %v1154 = vadd.s32 %v1150, %v1152
    %v1155 = vadd.s32 %v1154, %v1144
    %v1156 = vadd.s32 %v1155, %v1146
    %v1157 = vmul.u32 %v1112, %v1103
    %v1158 = vadd.s32 %v1134, %v1153
    %vm1159 = vc.u32 %v1134, %v1153
    %v1160 = vadd.s32 %v1156, 1
    %v1161 = vsel %vm1159, %v1160, %v1156
    %v1162 = vadd.s32 %v1157, %v1161
    %v1163 = vadd.s32 %v1162, 536870912
    %v1164 = vshrl.u32 %v1163, 30
    %v1165 = vshll.u32 %v1164, 30
    %v1166 = vsub.s32 %v1162, %v1165
    %vm1167 = vcmp.lt.s32.totalorder %v1166, 0
    %v1168 = vsub.s32 0, %v1166
    %v1169 = vsel %vm1167, %v1168, %v1166
    %v1170 = vclz %v1169
    %v1171 = vsub.s32 %v1170, 2
    %vm1172 = vcmp.gt.s32.totalorder 0, %v1171
    %v1173 = vsel %vm1172, 0, %v1171
    %v1174 = vsub.s32 32, %v1173
    %v1175 = vshll.u32 %v1166, %v1173
    %v1176 = vshrl.u32 %v1158, %v1174
    %v1177 = vor.u32 %v1175, %v1176
    %v1178 = vsub.s32 4294967266, %v1173
    %v1179 = vadd.s32 %v1178, 127
    %v1180 = vshll.u32 %v1179, 23
    %v1181 = vor.u32 4788187, %v1180
    %v1182 = vand.u32 2147483647, %v1181
    %v1184 = vcvt.s32.f32 %v1177
    %v1185 = vmul.f32 %v1184, %v1182
    %v1186 = vxor.u32 %v1185, 2147483648
    %v1187 = vsel %vm1066, %v1186, %v1185
    %v1188 = vsub.s32 4, %v1164
    %v1189 = vsel %vm1066, %v1188, %v1164
    %v1190 = vsel %vm1065, %v129, %v1187
    %v1191 = vsel %vm1065, 0, %v1189
    %v1192 = vmul.f32 %v1190, %v1190
    %v1193 = vmul.f32 %v1192, -0.001358992
    %v1194 = vadd.f32 %v1193, 0.041655596
    %v1195 = vmul.f32 %v1192, %v1194
    %v1196 = vadd.f32 %v1195, -0.4999988
    %v1197 = vmul.f32 %v1192, %v1196
    %v1198 = vadd.f32 1.0, %v1197
    %v1199 = vmul.f32 %v1190, %v1190
    %v1200 = vmul.f32 %v1199, -0.00019511016
    %v1201 = vadd.f32 %v1200, 0.008332121
    %v1202 = vmul.f32 %v1199, %v1201
    %v1203 = vadd.f32 %v1202, -0.16666654
    %v1204 = vmul.f32 %v1199, %v1203
    %v1205 = vadd.f32 %v1204, 1.0
    %v1206 = vmul.f32 %v1205, %v1190
    %vm1207 = vweird.f32 %v129
    %v1208 = vadd.s32 %v1191, 3
    %v1209 = vand.u32 %v1208, 3
    %vm1210 = vcmp.lt.s32.totalorder %v1209, 2
    %vm1211 = vcmp.eq.s32.totalorder %v1209, 0
    %v1212 = vxor.u32 %v1206, 2147483648
    %v1213 = vsel %vm1211, %v1198, %v1212
    %vm1214 = vcmp.eq.s32.totalorder %v1209, 2
    %v1215 = vxor.u32 %v1198, 2147483648
    %v1216 = vsel %vm1214, %v1215, %v1206
    %v1217 = vsel %vm1210, %v1213, %v1216
    %v1218 = vsel %vm1207, nan, %v1217
    %v1219 = vand.u32 2147483647, %v130
    %vm1220 = vcmp.le.f32.partialorder %v1219, 0.7853982
    %vm1221 = vcmp.lt.s32.totalorder %v130, 0
    %v1222 = vand.u32 %v130, 2139095040
    %v1223 = vshrl.u32 %v1222, 23
    %v1224 = vsub.s32 %v1223, 127
    %v1225 = vand.u32 2147483647, %v130
    %v1226 = vand.u32 %v1225, 8388607
    %v1227 = vor.u32 %v1226, 8388608
    %v1228 = vsub.s32 0, %v1227
    %v1229 = vadd.s32 %v1224, 1
    %vm1230 = vcmp.gt.s32.totalorder %v1229, 0
    %v1231 = vsel %vm1230, %v1229, 0
    %v1232 = vshrl.u32 %v1231, 5
    %v1233 = vand.u32 %v1231, 31
    %v1234 = vsub.s32 32, %v1233
    %v1235 = vshrl.u32 683565275, %v1234
    %v1236 = vshll.u32 683565275, %v1233
    %v1237 = vshrl.u32 2475754826, %v1234
    %v1238 = vor.u32 %v1236, %v1237
    %v1239 = vshll.u32 2475754826, %v1233
    %v1240 = vshrl.u32 2131351028, %v1234
    %v1241 = vor.u32 %v1239, %v1240
    %v1242 = vshll.u32 2131351028, %v1233
    %v1243 = vshrl.u32 2102212464, %v1234
    %v1244 = vor.u32 %v1242, %v1243
    %v1245 = vshll.u32 2102212464, %v1233
    %v1246 = vshrl.u32 920167782, %v1234
    %v1247 = vor.u32 %v1245, %v1246
    %v1248 = vshll.u32 920167782, %v1233
    %v1249 = vshrl.u32 1326507024, %v1234
    %v1250 = vor.u32 %v1248, %v1249
    %vm1251 = vcmp.lt.s32.totalorder %v1232, 1
    %vm1252 = vcmp.lt.s32.totalorder %v1232, 2
    %vm1253 = vcmp.lt.s32.totalorder %v1232, 3
    %vm1254 = vcmp.lt.s32.totalorder %v1232, 4
    %v1255 = vsel %vm1251, %v1235, %v1238
    %v1256 = vsel %vm1254, %v1244, 2102212464
    %v1257 = vsel %vm1253, %v1241, %v1256
    %v1258 = vsel %vm1252, %v1255, %v1257
    %v1259 = vsel %vm1251, %v1238, %v1241
    %v1260 = vsel %vm1254, %v1247, 920167782
    %v1261 = vsel %vm1253, %v1244, %v1260
    %v1262 = vsel %vm1252, %v1259, %v1261
    %v1263 = vsel %vm1251, %v1241, %v1244
    %v1264 = vsel %vm1254, %v1250, 1326507024
    %v1265 = vsel %vm1253, %v1247, %v1264
    %v1266 = vsel %vm1252, %v1263, %v1265
    %v1267 = vshll.u32 %v1227, 8
    %v1268 = vand.u32 %v1267, 65535
    %v1269 = vshrl.u32 %v1267, 16
    %v1270 = vand.u32 %v1266, 65535
    %v1271 = vshrl.u32 %v1266, 16
    %v1272 = vmul.u32 %v1268, %v1270
    %v1273 = vmul.u32 %v1268, %v1271
    %v1274 = vmul.u32 %v1269, %v1270
    %v1275 = vmul.u32 %v1269, %v1271
    %v1276 = vshll.u32 %v1273, 16
    %v1277 = vshrl.u32 %v1273, 16
    %v1278 = vshll.u32 %v1274, 16
    %v1279 = vshrl.u32 %v1274, 16
    %vm1280 = vc.u32 %v1272, %v1276
    %v1281 = vsel %vm1280, 1, 0
    %v1282 = vadd.s32 %v1272, %v1276
    %v1283 = vadd.s32 %v1275, %v1281
    %vm1284 = vc.u32 %v1282, %v1278
    %v1285 = vsel %vm1284, 1, 0
    %v1286 = vadd.s32 %v1282, %v1278
    %v1287 = vadd.s32 %v1283, %v1285
    %v1288 = vadd.s32 %v1287, %v1277
    %v1289 = vadd.s32 %v1288, %v1279
    %v1290 = vand.u32 %v1267, 65535
    %v1291 = vshrl.u32 %v1267, 16
    %v1292 = vand.u32 %v1262, 65535
    %v1293 = vshrl.u32 %v1262, 16
    %v1294 = vmul.u32 %v1290, %v1292
    %v1295 = vmul.u32 %v1290, %v1293
    %v1296 = vmul.u32 %v1291, %v1292
    %v1297 = vmul.u32 %v1291, %v1293
    %v1298 = vshll.u32 %v1295, 16
    %v1299 = vshrl.u32 %v1295, 16
    %v1300 = vshll.u32 %v1296, 16
    %v1301 = vshrl.u32 %v1296, 16
    %vm1302 = vc.u32 %v1294, %v1298
    %v1303 = vsel %vm1302, 1, 0
    %v1304 = vadd.s32 %v1294, %v1298
    %v1305 = vadd.s32 %v1297, %v1303
    %vm1306 = vc.u32 %v1304, %v1300
    %v1307 = vsel %vm1306, 1, 0
    %v1308 = vadd.s32 %v1304, %v1300
    %v1309 = vadd.s32 %v1305, %v1307
    %v1310 = vadd.s32 %v1309, %v1299
    %v1311 = vadd.s32 %v1310, %v1301
    %v1312 = vmul.u32 %v1267, %v1258
    %v1313 = vadd.s32 %v1289, %v1308
    %vm1314 = vc.u32 %v1289, %v1308
    %v1315 = vadd.s32 %v1311, 1
    %v1316 = vsel %vm1314, %v1315, %v1311
    %v1317 = vadd.s32 %v1312, %v1316
    %v1318 = vadd.s32 %v1317, 536870912
    %v1319 = vshrl.u32 %v1318, 30
    %v1320 = vshll.u32 %v1319, 30
    %v1321 = vsub.s32 %v1317, %v1320
    %vm1322 = vcmp.lt.s32.totalorder %v1321, 0
    %v1323 = vsub.s32 0, %v1321
    %v1324 = vsel %vm1322, %v1323, %v1321
    %v1325 = vclz %v1324
    %v1326 = vsub.s32 %v1325, 2
    %vm1327 = vcmp.gt.s32.totalorder 0, %v1326
    %v1328 = vsel %vm1327, 0, %v1326
    %v1329 = vsub.s32 32, %v1328
    %v1330 = vshll.u32 %v1321, %v1328
    %v1331 = vshrl.u32 %v1313, %v1329
    %v1332 = vor.u32 %v1330, %v1331
    %v1333 = vsub.s32 4294967266, %v1328
    %v1334 = vadd.s32 %v1333, 127
    %v1335 = vshll.u32 %v1334, 23
    %v1336 = vor.u32 4788187, %v1335
    %v1337 = vand.u32 2147483647, %v1336
    %v1339 = vcvt.s32.f32 %v1332
    %v1340 = vmul.f32 %v1339, %v1337
    %v1341 = vxor.u32 %v1340, 2147483648
    %v1342 = vsel %vm1221, %v1341, %v1340
    %v1343 = vsub.s32 4, %v1319
    %v1344 = vsel %vm1221, %v1343, %v1319
    %v1345 = vsel %vm1220, %v130, %v1342
    %v1346 = vsel %vm1220, 0, %v1344
    %v1347 = vmul.f32 %v1345, %v1345
    %v1348 = vmul.f32 %v1347, -0.001358992
    %v1349 = vadd.f32 %v1348, 0.041655596
    %v1350 = vmul.f32 %v1347, %v1349
    %v1351 = vadd.f32 %v1350, -0.4999988
    %v1352 = vmul.f32 %v1347, %v1351
    %v1353 = vadd.f32 1.0, %v1352
    %v1354 = vmul.f32 %v1345, %v1345
    %v1355 = vmul.f32 %v1354, -0.00019511016
    %v1356 = vadd.f32 %v1355, 0.008332121
    %v1357 = vmul.f32 %v1354, %v1356
    %v1358 = vadd.f32 %v1357, -0.16666654
    %v1359 = vmul.f32 %v1354, %v1358
    %v1360 = vadd.f32 %v1359, 1.0
    %v1361 = vmul.f32 %v1360, %v1345
    %vm1362 = vweird.f32 %v130
    %v1363 = vadd.s32 %v1346, 3
    %v1364 = vand.u32 %v1363, 3
    %vm1365 = vcmp.lt.s32.totalorder %v1364, 2
    %vm1366 = vcmp.eq.s32.totalorder %v1364, 0
    %v1367 = vxor.u32 %v1361, 2147483648
    %v1368 = vsel %vm1366, %v1353, %v1367
    %vm1369 = vcmp.eq.s32.totalorder %v1364, 2
    %v1370 = vxor.u32 %v1353, 2147483648
    %v1371 = vsel %vm1369, %v1370, %v1361
    %v1372 = vsel %vm1365, %v1368, %v1371
    %v1373 = vsel %vm1362, nan, %v1372
    %v1374 = vsel %vm133, %v123, %v288
    %v1375 = vsel %vm133, %v124, %v443
    %v1376 = vsel %vm133, %v125, %v598
    %v1377 = vsel %vm133, %v126, %v753
    %v1378 = vsel %vm133, %v127, %v908
    %v1379 = vsel %vm133, %v128, %v1063
    %v1380 = vsel %vm133, %v129, %v1218
    %v1381 = vsel %vm133, %v130, %v1373
    %v1382 = vld [vmem:[%s1] sm:$0xff]
    %v1383 = vld [vmem:[%s1 + $0x8] sm:$0xff]
    %v1384 = vld [vmem:[%s1 + $0x10] sm:$0xff]
    %v1385 = vld [vmem:[%s1 + $0x18] sm:$0xff]
    %v1386 = vld [vmem:[%s1 + $0x20] sm:$0xff]
    %v1387 = vld [vmem:[%s1 + $0x28] sm:$0xff]
    %v1388 = vld [vmem:[%s1 + $0x30] sm:$0xff]
    %v1389 = vld [vmem:[%s1 + $0x38] sm:$0xff]
    %v1390 = vld [vmem:[%s5] sm:$0xff]
    %v1391 = vld [vmem:[#allocation2] sm:$0x3f]
    %vm1392 = vcmask 48128
    %v1394 = vsel %vm1392, %v1382, 0
    %v1397 = vsel %vm1392, %v1383, 0
    %v1400 = vsel %vm1392, %v1384, 0
    %v1403 = vsel %vm1392, %v1385, 0
    %v1406 = vsel %vm1392, %v1386, 0
    %v1409 = vsel %vm1392, %v1387, 0
    %v1412 = vsel %vm1392, %v1388, 0
    %v1415 = vsel %vm1392, %v1389, 0
    %vm1417 = vcmask 1045504
    %v1419 = vsel %vm1417, %v1391, 0
    %1421 = vmatpush.msra.mxu0 0.0
    %1422 = vmatpush.msra.mxu0 0.0
    %1423 = vmatpush.msra.mxu0 0.0
    %1424 = vmatpush.msra.mxu0 0.0
    %1425 = vmatpush.msra.mxu0 0.0
    %1426 = vmatpush.msra.mxu0 0.0
    %1427 = vmatpush.msra.mxu0 0.0
    %1428 = vmatpush.msra.mxu0 0.0
    %1429 = vmatpush.msra.mxu0 0.0
    %1430 = vmatpush.msra.mxu0 0.0
    %1431 = vmatpush.msra.mxu0 0.0
    %1432 = vmatpush.msra.mxu0 0.0
    %1433 = vmatpush.msra.mxu0 0.0
    %1434 = vmatpush.msra.mxu0 0.0
    %1435 = vmatpush.msra.mxu0 0.0
    %1436 = vmatpush.msra.mxu0 %v1419
    %1437 = vmatmul.f32.gmra.mxu0 %v1394
    %v1438 = vpop.f32.mrf.mxu0
    %v1439 = vadd.f32 0.0, %v1438
    %1440 = vmatmul.f32.gmra.mxu0 %v1397
    %v1441 = vpop.f32.mrf.mxu0
    %v1442 = vadd.f32 0.0, %v1441
    %1443 = vmatmul.f32.gmra.mxu0 %v1400
    %v1444 = vpop.f32.mrf.mxu0
    %v1445 = vadd.f32 0.0, %v1444
    %1446 = vmatmul.f32.gmra.mxu0 %v1403
    %v1447 = vpop.f32.mrf.mxu0
    %v1448 = vadd.f32 0.0, %v1447
    %1449 = vmatmul.f32.gmra.mxu0 %v1406
    %v1450 = vpop.f32.mrf.mxu0
    %v1451 = vadd.f32 0.0, %v1450
    %1452 = vmatmul.f32.gmra.mxu0 %v1409
    %v1453 = vpop.f32.mrf.mxu0
    %v1454 = vadd.f32 0.0, %v1453
    %1455 = vmatmul.f32.gmra.mxu0 %v1412
    %v1456 = vpop.f32.mrf.mxu0
    %v1457 = vadd.f32 0.0, %v1456
    %1458 = vmatmul.f32.gmra.mxu0 %v1415
    %v1459 = vpop.f32.mrf.mxu0
    %v1460 = vadd.f32 0.0, %v1459
    %1461 = vdwg.mxu0
    %vm1462 = vcmask 64512
    %v1464 = vsel %vm1462, %v1374, 0
    %v1467 = vsel %vm1462, %v1375, 0
    %v1470 = vsel %vm1462, %v1376, 0
    %v1473 = vsel %vm1462, %v1377, 0
    %v1476 = vsel %vm1462, %v1378, 0
    %v1479 = vsel %vm1462, %v1379, 0
    %v1482 = vsel %vm1462, %v1380, 0
    %v1485 = vsel %vm1462, %v1381, 0
    %1487 = vmatpush.msra.mxu0 0.0
    %1488 = vmatpush.msra.mxu0 0.0
    %1489 = vmatpush.msra.mxu0 0.0
    %1490 = vmatpush.msra.mxu0 0.0
    %1491 = vmatpush.msra.mxu0 0.0
    %1492 = vmatpush.msra.mxu0 0.0
    %1493 = vmatpush.msra.mxu0 0.0
    %1494 = vmatpush.msra.mxu0 0.0
    %1495 = vmatpush.msra.mxu0 0.0
    %1496 = vmatpush.msra.mxu0 0.0
    %1497 = vmatpush.msra.mxu0 0.0
    %1498 = vmatpush.msra.mxu0 0.0
    %1499 = vmatpush.msra.mxu0 0.0
    %1500 = vmatpush.msra.mxu0 0.0
    %1501 = vmatpush.msra.mxu0 0.0
    %1502 = vmatpush.msra.mxu0 %v1390
    %1503 = vmatmul.f32.gmra.mxu0 %v1464
    %v1504 = vpop.f32.mrf.mxu0
    %v1505 = vadd.f32 %v1439, %v1504
    %1506 = vmatmul.f32.gmra.mxu0 %v1467
    %v1507 = vpop.f32.mrf.mxu0
    %v1508 = vadd.f32 %v1442, %v1507
    %1509 = vmatmul.f32.gmra.mxu0 %v1470
    %v1510 = vpop.f32.mrf.mxu0
    %v1511 = vadd.f32 %v1445, %v1510
    %1512 = vmatmul.f32.gmra.mxu0 %v1473
    %v1513 = vpop.f32.mrf.mxu0
    %v1514 = vadd.f32 %v1448, %v1513
    %1515 = vmatmul.f32.gmra.mxu0 %v1476
    %v1516 = vpop.f32.mrf.mxu0
    %v1517 = vadd.f32 %v1451, %v1516
    %1518 = vmatmul.f32.gmra.mxu0 %v1479
    %v1519 = vpop.f32.mrf.mxu0
    %v1520 = vadd.f32 %v1454, %v1519
    %1521 = vmatmul.f32.gmra.mxu0 %v1482
    %v1522 = vpop.f32.mrf.mxu0
    %v1523 = vadd.f32 %v1457, %v1522
    %1524 = vmatmul.f32.gmra.mxu0 %v1485
    %v1525 = vpop.f32.mrf.mxu0
    %v1526 = vadd.f32 %v1460, %v1525
    %1527 = vdwg.mxu0
    %v1528 = vld [vmem:[%s7] sm:$0x1]
    %v1530 = vperm.slane %v1528, 0
    %v1532 = vadd.f32 %v1505, %v1530
    %v1533 = vadd.f32 %v1508, %v1530
    %v1534 = vadd.f32 %v1511, %v1530
    %v1535 = vadd.f32 %v1514, %v1530
    %v1536 = vadd.f32 %v1517, %v1530
    %v1537 = vadd.f32 %v1520, %v1530
    %v1538 = vadd.f32 %v1523, %v1530
    %v1539 = vadd.f32 %v1526, %v1530
    %v1540 = vld [vmem:[%s8] sm:$0xff]
    %v1541 = vld [vmem:[%s8 + $0x8] sm:$0xff]
    %v1542 = vld [vmem:[%s8 + $0x10] sm:$0xff]
    %v1543 = vld [vmem:[%s8 + $0x18] sm:$0xff]
    %v1544 = vld [vmem:[%s8 + $0x20] sm:$0xff]
    %v1545 = vld [vmem:[%s8 + $0x28] sm:$0xff]
    %v1546 = vld [vmem:[%s8 + $0x30] sm:$0xff]
    %v1547 = vld [vmem:[%s8 + $0x38] sm:$0xff]
    %v1548 = vld [vmem:[%s8 + $0x40] sm:$0xff]
    %v1549 = vld [vmem:[%s8 + $0x48] sm:$0xff]
    %v1550 = vld [vmem:[%s8 + $0x50] sm:$0xff]
    %v1551 = vld [vmem:[%s8 + $0x58] sm:$0xff]
    %v1552 = vld [vmem:[%s8 + $0x60] sm:$0xff]
    %v1553 = vld [vmem:[%s8 + $0x68] sm:$0xff]
    %v1554 = vld [vmem:[%s8 + $0x70] sm:$0xff]
    %v1555 = vld [vmem:[%s8 + $0x78] sm:$0xff]
    %v1556 = vld [vmem:[%s9] sm:$0xff]
    %v1557 = vld [vmem:[%s9 + $0x8] sm:$0xff]
    %v1558 = vld [vmem:[%s9 + $0x10] sm:$0xff]
    %v1559 = vld [vmem:[%s9 + $0x18] sm:$0xff]
    %v1560 = vld [vmem:[%s10] sm:$0x1]
    %v1561 = vld [vmem:[%s2] sm:$0xff]
    %v1562 = vld [vmem:[%s2 + $0x8] sm:$0xff]
    %v1563 = vld [vmem:[%s2 + $0x10] sm:$0xff]
    %v1564 = vld [vmem:[%s2 + $0x18] sm:$0xff]
    %v1565 = vld [vmem:[%s2 + $0x20] sm:$0xff]
    %v1566 = vld [vmem:[%s2 + $0x28] sm:$0xff]
    %v1567 = vld [vmem:[%s2 + $0x30] sm:$0xff]
    %v1568 = vld [vmem:[%s2 + $0x38] sm:$0xff]
    %vm1569 = vcmp.ge.s32.totalorder %v132, 64
    %vm1570 = vcmp.lt.s32.totalorder %v132, 96
    %vm1571 = vmand %vm1569, %vm1570
    %vm1572 = vcmp.gt.f32.partialorder %v1561, 0.0
    %v1573 = vsel %vm1572, 1, 0
    %1574 = vset.pattern.permute.xlu0 0
    %1575 = vperm.xlu0 %1574, %v1573
    %v1576 = vpop.permute.xlu0 %1575
    %vm1577 = vcmp.eq.s32.totalorder %v1576, 1
    %vm1578 = vcmask 523264
    %v1580 = vsel %vm1578, 0.0, 0
    %1582 = vmatpush.msra.mxu0 0.0
    %1583 = vmatpush.msra.mxu0 0.0
    %1584 = vmatpush.msra.mxu0 0.0
    %1585 = vmatpush.msra.mxu0 0.0
    %1586 = vmatpush.msra.mxu0 0.0
    %1587 = vmatpush.msra.mxu0 0.0
    %1588 = vmatpush.msra.mxu0 0.0
    %1589 = vmatpush.msra.mxu0 0.0
    %1590 = vmatpush.msra.mxu0 %v1554
    %1591 = vmatpush.msra.mxu0 %v1552
    %1592 = vmatpush.msra.mxu0 %v1550
    %1593 = vmatpush.msra.mxu0 %v1548
    %1594 = vmatpush.msra.mxu0 %v1546
    %1595 = vmatpush.msra.mxu0 %v1544
    %1596 = vmatpush.msra.mxu0 %v1542
    %1597 = vmatpush.msra.mxu0 %v1540
    %1598 = vmatmul.f32.gmra.mxu0 %v1580
    %v1599 = vpop.f32.mrf.mxu0
    %v1600 = vadd.f32 0.0, %v1599
    %1601 = vdwg.mxu0
    %1602 = vmatpush.msra.mxu0 0.0
    %1603 = vmatpush.msra.mxu0 0.0
    %1604 = vmatpush.msra.mxu0 0.0
    %1605 = vmatpush.msra.mxu0 0.0
    %1606 = vmatpush.msra.mxu0 0.0
    %1607 = vmatpush.msra.mxu0 0.0
    %1608 = vmatpush.msra.mxu0 0.0
    %1609 = vmatpush.msra.mxu0 0.0
    %1610 = vmatpush.msra.mxu0 %v1555
    %1611 = vmatpush.msra.mxu0 %v1553
    %1612 = vmatpush.msra.mxu0 %v1551
    %1613 = vmatpush.msra.mxu0 %v1549
    %1614 = vmatpush.msra.mxu0 %v1547
    %1615 = vmatpush.msra.mxu0 %v1545
    %1616 = vmatpush.msra.mxu0 %v1543
    %1617 = vmatpush.msra.mxu0 %v1541
    %1618 = vmatmul.f32.gmra.mxu0 %v1580
    %v1619 = vpop.f32.mrf.mxu0
    %v1620 = vadd.f32 0.0, %v1619
    %1621 = vdwg.mxu0
    %v1622 = vadd.f32 %v1532, %v1600
    %v1623 = vtanh.pop %v1622
    %v1624 = vxor.u32 %v1622, 2147483648
    %v1625 = vmul.f32 %v1624, 1.442695
    %v1626 = vpow.pop %v1625
    %v1627 = vadd.f32 %v1626, 1.0
    %v1628 = vrcp.pop %v1627
    %v1629 = vmul.f32 %v1627, %v1628
    %v1630 = vsub.f32 1.0, %v1629
    %v1631 = vmul.f32 %v1628, %v1630
    %v1632 = vadd.f32 %v1628, %v1631
    %vm1633 = vweird.f32 %v1627
    %vm1634 = vweird.f32 %v1628
    %vm1635 = vmor %vm1633, %vm1634
    %v1636 = vsel %vm1635, %v1628, %v1632
    %v1637 = vand.u32 2147483647, %v1627
    %vm1638 = vcmp.eq.f32.partialorder %v1637, 8.507059e+37
    %v1639 = vand.u32 %v1627, 2147483648
    %v1640 = vor.u32 1.1754944e-38, %v1639
    %v1641 = vsel %vm1638, %v1640, %v1636
    %v1642 = vmul.f32 1.0, %v1641
    %v1643 = vsel %vm1571, %v1623, %v1642
    %v1644 = vmul.f32 %v1643, 0.0
    %1646 = vrot.lane.b32.xlu0 %v1643, 64
    %v1647 = vpop.permute.xlu0 %1646
    %v1649 = vmul.f32 %v1643, %v1647
    %1651 = vrot.lane.b32.xlu0 %v1649, 32
    %v1652 = vpop.permute.xlu0 %1651
    %v1654 = vadd.f32 %v1644, %v1652
    %v1655 = vtanh.pop %v1654
    %1657 = vrot.lane.b32.xlu0 %v1655, 64
    %v1658 = vpop.permute.xlu0 %1657
    %v1660 = vmul.f32 %v1643, %v1658
    %v1661 = vsel %vm1577, %v1660, 0.0
    %v1662 = vsel %vm1577, %v1654, 0.0
    %1664 = vrot.lane.b32.xlu0 %v1661, 32
    %v1665 = vpop.permute.xlu0 %1664
    %vm1666 = vcmask 261120
    %v1667 = vsel %vm1666, %v1665, 0
    %1669 = vmatpush.msra.mxu0 0.0
    %1670 = vmatpush.msra.mxu0 0.0
    %1671 = vmatpush.msra.mxu0 0.0
    %1672 = vmatpush.msra.mxu0 0.0
    %1673 = vmatpush.msra.mxu0 0.0
    %1674 = vmatpush.msra.mxu0 0.0
    %1675 = vmatpush.msra.mxu0 0.0
    %1676 = vmatpush.msra.mxu0 0.0
    %1677 = vmatpush.msra.mxu0 0.0
    %1678 = vmatpush.msra.mxu0 0.0
    %1679 = vmatpush.msra.mxu0 0.0
    %1680 = vmatpush.msra.mxu0 0.0
    %1681 = vmatpush.msra.mxu0 %v1559
    %1682 = vmatpush.msra.mxu0 %v1558
    %1683 = vmatpush.msra.mxu0 %v1557
    %1684 = vmatpush.msra.mxu0 %v1556
    %1685 = vmatmul.f32.gmra.mxu0 %v1667
    %v1686 = vpop.f32.mrf.mxu0
    %v1687 = vadd.f32 %v1620, %v1686
    %1688 = vdwg.mxu0
    %v1690 = vperm.slane %v1560, 0
    %v1692 = vadd.f32 %v1687, %v1690
    %v1693 = vtanh.pop %v1692
    %v1694 = vxor.u32 %v1692, 2147483648
    %v1695 = vmul.f32 %v1694, 1.442695
    %v1696 = vpow.pop %v1695
    %v1697 = vadd.f32 %v1696, 1.0
    %v1698 = vrcp.pop %v1697
    %v1699 = vmul.f32 %v1697, %v1698
    %v1700 = vsub.f32 1.0, %v1699
    %v1701 = vmul.f32 %v1698, %v1700
    %v1702 = vadd.f32 %v1698, %v1701
    %vm1703 = vweird.f32 %v1697
    %vm1704 = vweird.f32 %v1698
    %vm1705 = vmor %vm1703, %vm1704
    %v1706 = vsel %vm1705, %v1698, %v1702
    %v1707 = vand.u32 2147483647, %v1697
    %vm1708 = vcmp.eq.f32.partialorder %v1707, 8.507059e+37
    %v1709 = vand.u32 %v1697, 2147483648
    %v1710 = vor.u32 1.1754944e-38, %v1709
    %v1711 = vsel %vm1708, %v1710, %v1706
    %v1712 = vmul.f32 1.0, %v1711
    %v1713 = vsel %vm1571, %v1693, %v1712
    %v1714 = vmul.f32 %v1713, 0.0
    %1716 = vrot.lane.b32.xlu0 %v1713, 64
    %v1717 = vpop.permute.xlu0 %1716
    %v1719 = vmul.f32 %v1713, %v1717
    %1721 = vrot.lane.b32.xlu0 %v1719, 32
    %v1722 = vpop.permute.xlu0 %1721
    %v1724 = vadd.f32 %v1714, %v1722
    %v1725 = vtanh.pop %v1724
    %1727 = vrot.lane.b32.xlu0 %v1725, 64
    %v1728 = vpop.permute.xlu0 %1727
    %v1730 = vmul.f32 %v1713, %v1728
    %v1731 = vsel %vm1577, %v1730, 0.0
    %v1732 = vsel %vm1577, %v1724, 0.0
    %vm1733 = vcmp.gt.f32.partialorder %v1562, 0.0
    %v1734 = vsel %vm1733, 1, 0
    %1735 = vset.pattern.permute.xlu0 0
    %1736 = vperm.xlu0 %1735, %v1734
    %v1737 = vpop.permute.xlu0 %1736
    %vm1738 = vcmp.eq.s32.totalorder %v1737, 1
    %1741 = vrot.lane.b32.xlu0 %v1731, 64
    %v1742 = vpop.permute.xlu0 %1741
    %v1744 = vsel %vm1666, %v1665, %v1742
    %v1746 = vsel %vm1578, %v1744, 0
    %1748 = vmatpush.msra.mxu0 0.0
    %1749 = vmatpush.msra.mxu0 0.0
    %1750 = vmatpush.msra.mxu0 0.0
    %1751 = vmatpush.msra.mxu0 0.0
    %1752 = vmatpush.msra.mxu0 0.0
    %1753 = vmatpush.msra.mxu0 0.0
    %1754 = vmatpush.msra.mxu0 0.0
    %1755 = vmatpush.msra.mxu0 0.0
    %1756 = vmatpush.msra.mxu0 %v1554
    %1757 = vmatpush.msra.mxu0 %v1552
    %1758 = vmatpush.msra.mxu0 %v1550
    %1759 = vmatpush.msra.mxu0 %v1548
    %1760 = vmatpush.msra.mxu0 %v1546
    %1761 = vmatpush.msra.mxu0 %v1544
    %1762 = vmatpush.msra.mxu0 %v1542
    %1763 = vmatpush.msra.mxu0 %v1540
    %1764 = vmatmul.f32.gmra.mxu0 %v1746
    %v1765 = vpop.f32.mrf.mxu0
    %v1766 = vadd.f32 0.0, %v1765
    %1767 = vdwg.mxu0
    %1768 = vmatpush.msra.mxu0 0.0
    %1769 = vmatpush.msra.mxu0 0.0
    %1770 = vmatpush.msra.mxu0 0.0
    %1771 = vmatpush.msra.mxu0 0.0
    %1772 = vmatpush.msra.mxu0 0.0
    %1773 = vmatpush.msra.mxu0 0.0
    %1774 = vmatpush.msra.mxu0 0.0
    %1775 = vmatpush.msra.mxu0 0.0
    %1776 = vmatpush.msra.mxu0 %v1555
    %1777 = vmatpush.msra.mxu0 %v1553
    %1778 = vmatpush.msra.mxu0 %v1551
    %1779 = vmatpush.msra.mxu0 %v1549
    %1780 = vmatpush.msra.mxu0 %v1547
    %1781 = vmatpush.msra.mxu0 %v1545
    %1782 = vmatpush.msra.mxu0 %v1543
    %1783 = vmatpush.msra.mxu0 %v1541
    %1784 = vmatmul.f32.gmra.mxu0 %v1746
    %v1785 = vpop.f32.mrf.mxu0
    %v1786 = vadd.f32 0.0, %v1785
    %1787 = vdwg.mxu0
    %v1788 = vadd.f32 %v1533, %v1766
    %v1789 = vtanh.pop %v1788
    %v1790 = vxor.u32 %v1788, 2147483648
    %v1791 = vmul.f32 %v1790, 1.442695
    %v1792 = vpow.pop %v1791
    %v1793 = vadd.f32 %v1792, 1.0
    %v1794 = vrcp.pop %v1793
    %v1795 = vmul.f32 %v1793, %v1794
    %v1796 = vsub.f32 1.0, %v1795
    %v1797 = vmul.f32 %v1794, %v1796
    %v1798 = vadd.f32 %v1794, %v1797
    %vm1799 = vweird.f32 %v1793
    %vm1800 = vweird.f32 %v1794
    %vm1801 = vmor %vm1799, %vm1800
    %v1802 = vsel %vm1801, %v1794, %v1798
    %v1803 = vand.u32 2147483647, %v1793
    %vm1804 = vcmp.eq.f32.partialorder %v1803, 8.507059e+37
    %v1805 = vand.u32 %v1793, 2147483648
    %v1806 = vor.u32 1.1754944e-38, %v1805
    %v1807 = vsel %vm1804, %v1806, %v1802
    %v1808 = vmul.f32 1.0, %v1807
    %v1809 = vsel %vm1571, %v1789, %v1808
    %v1810 = vmul.f32 %v1809, %v1662
    %1812 = vrot.lane.b32.xlu0 %v1809, 64
    %v1813 = vpop.permute.xlu0 %1812
    %v1815 = vmul.f32 %v1809, %v1813
    %1817 = vrot.lane.b32.xlu0 %v1815, 32
    %v1818 = vpop.permute.xlu0 %1817
    %v1820 = vadd.f32 %v1810, %v1818
    %v1821 = vtanh.pop %v1820
    %1823 = vrot.lane.b32.xlu0 %v1821, 64
    %v1824 = vpop.permute.xlu0 %1823
    %v1826 = vmul.f32 %v1809, %v1824
    %v1827 = vsel %vm1738, %v1826, %v1661
    %v1828 = vsel %vm1738, %v1820, %v1662
    %1830 = vrot.lane.b32.xlu0 %v1827, 32
    %v1831 = vpop.permute.xlu0 %1830
    %v1832 = vsel %vm1666, %v1831, 0
    %1834 = vmatpush.msra.mxu0 0.0
    %1835 = vmatpush.msra.mxu0 0.0
    %1836 = vmatpush.msra.mxu0 0.0
    %1837 = vmatpush.msra.mxu0 0.0
    %1838 = vmatpush.msra.mxu0 0.0
    %1839 = vmatpush.msra.mxu0 0.0
    %1840 = vmatpush.msra.mxu0 0.0
    %1841 = vmatpush.msra.mxu0 0.0
    %1842 = vmatpush.msra.mxu0 0.0
    %1843 = vmatpush.msra.mxu0 0.0
    %1844 = vmatpush.msra.mxu0 0.0
    %1845 = vmatpush.msra.mxu0 0.0
    %1846 = vmatpush.msra.mxu0 %v1559
    %1847 = vmatpush.msra.mxu0 %v1558
    %1848 = vmatpush.msra.mxu0 %v1557
    %1849 = vmatpush.msra.mxu0 %v1556
    %1850 = vmatmul.f32.gmra.mxu0 %v1832
    %v1851 = vpop.f32.mrf.mxu0
    %v1852 = vadd.f32 %v1786, %v1851
    %1853 = vdwg.mxu0
    %v1854 = vadd.f32 %v1852, %v1690
    %v1855 = vtanh.pop %v1854
    %v1856 = vxor.u32 %v1854, 2147483648
    %v1857 = vmul.f32 %v1856, 1.442695
    %v1858 = vpow.pop %v1857
    %v1859 = vadd.f32 %v1858, 1.0
    %v1860 = vrcp.pop %v1859
    %v1861 = vmul.f32 %v1859, %v1860
    %v1862 = vsub.f32 1.0, %v1861
    %v1863 = vmul.f32 %v1860, %v1862
    %v1864 = vadd.f32 %v1860, %v1863
    %vm1865 = vweird.f32 %v1859
    %vm1866 = vweird.f32 %v1860
    %vm1867 = vmor %vm1865, %vm1866
    %v1868 = vsel %vm1867, %v1860, %v1864
    %v1869 = vand.u32 2147483647, %v1859
    %vm1870 = vcmp.eq.f32.partialorder %v1869, 8.507059e+37
    %v1871 = vand.u32 %v1859, 2147483648
    %v1872 = vor.u32 1.1754944e-38, %v1871
    %v1873 = vsel %vm1870, %v1872, %v1868
    %v1874 = vmul.f32 1.0, %v1873
    %v1875 = vsel %vm1571, %v1855, %v1874
    %v1876 = vmul.f32 %v1875, %v1732
    %1878 = vrot.lane.b32.xlu0 %v1875, 64
    %v1879 = vpop.permute.xlu0 %1878
    %v1881 = vmul.f32 %v1875, %v1879
    %1883 = vrot.lane.b32.xlu0 %v1881, 32
    %v1884 = vpop.permute.xlu0 %1883
    %v1886 = vadd.f32 %v1876, %v1884
    %v1887 = vtanh.pop %v1886
    %1889 = vrot.lane.b32.xlu0 %v1887, 64
    %v1890 = vpop.permute.xlu0 %1889
    %v1892 = vmul.f32 %v1875, %v1890
    %v1893 = vsel %vm1738, %v1892, %v1731
    %v1894 = vsel %vm1738, %v1886, %v1732
    %vm1895 = vcmp.gt.f32.partialorder %v1563, 0.0
    %v1896 = vsel %vm1895, 1, 0
    %1897 = vset.pattern.permute.xlu0 0
    %1898 = vperm.xlu0 %1897, %v1896
    %v1899 = vpop.permute.xlu0 %1898
    %vm1900 = vcmp.eq.s32.totalorder %v1899, 1
    %1903 = vrot.lane.b32.xlu0 %v1893, 64
    %v1904 = vpop.permute.xlu0 %1903
    %v1906 = vsel %vm1666, %v1831, %v1904
    %v1908 = vsel %vm1578, %v1906, 0
    %1910 = vmatpush.msra.mxu0 0.0
    %1911 = vmatpush.msra.mxu0 0.0
    %1912 = vmatpush.msra.mxu0 0.0
    %1913 = vmatpush.msra.mxu0 0.0
    %1914 = vmatpush.msra.mxu0 0.0
    %1915 = vmatpush.msra.mxu0 0.0
    %1916 = vmatpush.msra.mxu0 0.0
    %1917 = vmatpush.msra.mxu0 0.0
    %1918 = vmatpush.msra.mxu0 %v1554
    %1919 = vmatpush.msra.mxu0 %v1552
    %1920 = vmatpush.msra.mxu0 %v1550
    %1921 = vmatpush.msra.mxu0 %v1548
    %1922 = vmatpush.msra.mxu0 %v1546
    %1923 = vmatpush.msra.mxu0 %v1544
    %1924 = vmatpush.msra.mxu0 %v1542
    %1925 = vmatpush.msra.mxu0 %v1540
    %1926 = vmatmul.f32.gmra.mxu0 %v1908
    %v1927 = vpop.f32.mrf.mxu0
    %v1928 = vadd.f32 0.0, %v1927
    %1929 = vdwg.mxu0
    %1930 = vmatpush.msra.mxu0 0.0
    %1931 = vmatpush.msra.mxu0 0.0
    %1932 = vmatpush.msra.mxu0 0.0
    %1933 = vmatpush.msra.mxu0 0.0
    %1934 = vmatpush.msra.mxu0 0.0
    %1935 = vmatpush.msra.mxu0 0.0
    %1936 = vmatpush.msra.mxu0 0.0
    %1937 = vmatpush.msra.mxu0 0.0
    %1938 = vmatpush.msra.mxu0 %v1555
    %1939 = vmatpush.msra.mxu0 %v1553
    %1940 = vmatpush.msra.mxu0 %v1551
    %1941 = vmatpush.msra.mxu0 %v1549
    %1942 = vmatpush.msra.mxu0 %v1547
    %1943 = vmatpush.msra.mxu0 %v1545
    %1944 = vmatpush.msra.mxu0 %v1543
    %1945 = vmatpush.msra.mxu0 %v1541
    %1946 = vmatmul.f32.gmra.mxu0 %v1908
    %v1947 = vpop.f32.mrf.mxu0
    %v1948 = vadd.f32 0.0, %v1947
    %1949 = vdwg.mxu0
    %v1950 = vadd.f32 %v1534, %v1928
    %v1951 = vtanh.pop %v1950
    %v1952 = vxor.u32 %v1950, 2147483648
    %v1953 = vmul.f32 %v1952, 1.442695
    %v1954 = vpow.pop %v1953
    %v1955 = vadd.f32 %v1954, 1.0
    %v1956 = vrcp.pop %v1955
    %v1957 = vmul.f32 %v1955, %v1956
    %v1958 = vsub.f32 1.0, %v1957
    %v1959 = vmul.f32 %v1956, %v1958
    %v1960 = vadd.f32 %v1956, %v1959
    %vm1961 = vweird.f32 %v1955
    %vm1962 = vweird.f32 %v1956
    %vm1963 = vmor %vm1961, %vm1962
    %v1964 = vsel %vm1963, %v1956, %v1960
    %v1965 = vand.u32 2147483647, %v1955
    %vm1966 = vcmp.eq.f32.partialorder %v1965, 8.507059e+37
    %v1967 = vand.u32 %v1955, 2147483648
    %v1968 = vor.u32 1.1754944e-38, %v1967
    %v1969 = vsel %vm1966, %v1968, %v1964
    %v1970 = vmul.f32 1.0, %v1969
    %v1971 = vsel %vm1571, %v1951, %v1970
    %v1972 = vmul.f32 %v1971, %v1828
    %1974 = vrot.lane.b32.xlu0 %v1971, 64
    %v1975 = vpop.permute.xlu0 %1974
    %v1977 = vmul.f32 %v1971, %v1975
    %1979 = vrot.lane.b32.xlu0 %v1977, 32
    %v1980 = vpop.permute.xlu0 %1979
    %v1982 = vadd.f32 %v1972, %v1980
    %v1983 = vtanh.pop %v1982
    %1985 = vrot.lane.b32.xlu0 %v1983, 64
    %v1986 = vpop.permute.xlu0 %1985
    %v1988 = vmul.f32 %v1971, %v1986
    %v1989 = vsel %vm1900, %v1988, %v1827
    %v1990 = vsel %vm1900, %v1982, %v1828
    %1992 = vrot.lane.b32.xlu0 %v1989, 32
    %v1993 = vpop.permute.xlu0 %1992
    %v1994 = vsel %vm1666, %v1993, 0
    %1996 = vmatpush.msra.mxu0 0.0
    %1997 = vmatpush.msra.mxu0 0.0
    %1998 = vmatpush.msra.mxu0 0.0
    %1999 = vmatpush.msra.mxu0 0.0
    %2000 = vmatpush.msra.mxu0 0.0
    %2001 = vmatpush.msra.mxu0 0.0
    %2002 = vmatpush.msra.mxu0 0.0
    %2003 = vmatpush.msra.mxu0 0.0
    %2004 = vmatpush.msra.mxu0 0.0
    %2005 = vmatpush.msra.mxu0 0.0
    %2006 = vmatpush.msra.mxu0 0.0
    %2007 = vmatpush.msra.mxu0 0.0
    %2008 = vmatpush.msra.mxu0 %v1559
    %2009 = vmatpush.msra.mxu0 %v1558
    %2010 = vmatpush.msra.mxu0 %v1557
    %2011 = vmatpush.msra.mxu0 %v1556
    %2012 = vmatmul.f32.gmra.mxu0 %v1994
    %v2013 = vpop.f32.mrf.mxu0
    %v2014 = vadd.f32 %v1948, %v2013
    %2015 = vdwg.mxu0
    %v2016 = vadd.f32 %v2014, %v1690
    %v2017 = vtanh.pop %v2016
    %v2018 = vxor.u32 %v2016, 2147483648
    %v2019 = vmul.f32 %v2018, 1.442695
    %v2020 = vpow.pop %v2019
    %v2021 = vadd.f32 %v2020, 1.0
    %v2022 = vrcp.pop %v2021
    %v2023 = vmul.f32 %v2021, %v2022
    %v2024 = vsub.f32 1.0, %v2023
    %v2025 = vmul.f32 %v2022, %v2024
    %v2026 = vadd.f32 %v2022, %v2025
    %vm2027 = vweird.f32 %v2021
    %vm2028 = vweird.f32 %v2022
    %vm2029 = vmor %vm2027, %vm2028
    %v2030 = vsel %vm2029, %v2022, %v2026
    %v2031 = vand.u32 2147483647, %v2021
    %vm2032 = vcmp.eq.f32.partialorder %v2031, 8.507059e+37
    %v2033 = vand.u32 %v2021, 2147483648
    %v2034 = vor.u32 1.1754944e-38, %v2033
    %v2035 = vsel %vm2032, %v2034, %v2030
    %v2036 = vmul.f32 1.0, %v2035
    %v2037 = vsel %vm1571, %v2017, %v2036
    %v2038 = vmul.f32 %v2037, %v1894
    %2040 = vrot.lane.b32.xlu0 %v2037, 64
    %v2041 = vpop.permute.xlu0 %2040
    %v2043 = vmul.f32 %v2037, %v2041
    %2045 = vrot.lane.b32.xlu0 %v2043, 32
    %v2046 = vpop.permute.xlu0 %2045
    %v2048 = vadd.f32 %v2038, %v2046
    %v2049 = vtanh.pop %v2048
    %2051 = vrot.lane.b32.xlu0 %v2049, 64
    %v2052 = vpop.permute.xlu0 %2051
    %v2054 = vmul.f32 %v2037, %v2052
    %v2055 = vsel %vm1900, %v2054, %v1893
    %v2056 = vsel %vm1900, %v2048, %v1894
    %vm2057 = vcmp.gt.f32.partialorder %v1564, 0.0
    %v2058 = vsel %vm2057, 1, 0
    %2059 = vset.pattern.permute.xlu0 0
    %2060 = vperm.xlu0 %2059, %v2058
    %v2061 = vpop.permute.xlu0 %2060
    %vm2062 = vcmp.eq.s32.totalorder %v2061, 1
    %2065 = vrot.lane.b32.xlu0 %v2055, 64
    %v2066 = vpop.permute.xlu0 %2065
    %v2068 = vsel %vm1666, %v1993, %v2066
    %v2070 = vsel %vm1578, %v2068, 0
    %2072 = vmatpush.msra.mxu0 0.0
    %2073 = vmatpush.msra.mxu0 0.0
    %2074 = vmatpush.msra.mxu0 0.0
    %2075 = vmatpush.msra.mxu0 0.0
    %2076 = vmatpush.msra.mxu0 0.0
    %2077 = vmatpush.msra.mxu0 0.0
    %2078 = vmatpush.msra.mxu0 0.0
    %2079 = vmatpush.msra.mxu0 0.0
    %2080 = vmatpush.msra.mxu0 %v1554
    %2081 = vmatpush.msra.mxu0 %v1552
    %2082 = vmatpush.msra.mxu0 %v1550
    %2083 = vmatpush.msra.mxu0 %v1548
    %2084 = vmatpush.msra.mxu0 %v1546
    %2085 = vmatpush.msra.mxu0 %v1544
    %2086 = vmatpush.msra.mxu0 %v1542
    %2087 = vmatpush.msra.mxu0 %v1540
    %2088 = vmatmul.f32.gmra.mxu0 %v2070
    %v2089 = vpop.f32.mrf.mxu0
    %v2090 = vadd.f32 0.0, %v2089
    %2091 = vdwg.mxu0
    %2092 = vmatpush.msra.mxu0 0.0
    %2093 = vmatpush.msra.mxu0 0.0
    %2094 = vmatpush.msra.mxu0 0.0
    %2095 = vmatpush.msra.mxu0 0.0
    %2096 = vmatpush.msra.mxu0 0.0
    %2097 = vmatpush.msra.mxu0 0.0
    %2098 = vmatpush.msra.mxu0 0.0
    %2099 = vmatpush.msra.mxu0 0.0
    %2100 = vmatpush.msra.mxu0 %v1555
    %2101 = vmatpush.msra.mxu0 %v1553
    %2102 = vmatpush.msra.mxu0 %v1551
    %2103 = vmatpush.msra.mxu0 %v1549
    %2104 = vmatpush.msra.mxu0 %v1547
    %2105 = vmatpush.msra.mxu0 %v1545
    %2106 = vmatpush.msra.mxu0 %v1543
    %2107 = vmatpush.msra.mxu0 %v1541
    %2108 = vmatmul.f32.gmra.mxu0 %v2070
    %v2109 = vpop.f32.mrf.mxu0
    %v2110 = vadd.f32 0.0, %v2109
    %2111 = vdwg.mxu0
    %v2112 = vadd.f32 %v1535, %v2090
    %v2113 = vtanh.pop %v2112
    %v2114 = vxor.u32 %v2112, 2147483648
    %v2115 = vmul.f32 %v2114, 1.442695
    %v2116 = vpow.pop %v2115
    %v2117 = vadd.f32 %v2116, 1.0
    %v2118 = vrcp.pop %v2117
    %v2119 = vmul.f32 %v2117, %v2118
    %v2120 = vsub.f32 1.0, %v2119
    %v2121 = vmul.f32 %v2118, %v2120
    %v2122 = vadd.f32 %v2118, %v2121
    %vm2123 = vweird.f32 %v2117
    %vm2124 = vweird.f32 %v2118
    %vm2125 = vmor %vm2123, %vm2124
    %v2126 = vsel %vm2125, %v2118, %v2122
    %v2127 = vand.u32 2147483647, %v2117
    %vm2128 = vcmp.eq.f32.partialorder %v2127, 8.507059e+37
    %v2129 = vand.u32 %v2117, 2147483648
    %v2130 = vor.u32 1.1754944e-38, %v2129
    %v2131 = vsel %vm2128, %v2130, %v2126
    %v2132 = vmul.f32 1.0, %v2131
    %v2133 = vsel %vm1571, %v2113, %v2132
    %v2134 = vmul.f32 %v2133, %v1990
    %2136 = vrot.lane.b32.xlu0 %v2133, 64
    %v2137 = vpop.permute.xlu0 %2136
    %v2139 = vmul.f32 %v2133, %v2137
    %2141 = vrot.lane.b32.xlu0 %v2139, 32
    %v2142 = vpop.permute.xlu0 %2141
    %v2144 = vadd.f32 %v2134, %v2142
    %v2145 = vtanh.pop %v2144
    %2147 = vrot.lane.b32.xlu0 %v2145, 64
    %v2148 = vpop.permute.xlu0 %2147
    %v2150 = vmul.f32 %v2133, %v2148
    %v2151 = vsel %vm2062, %v2150, %v1989
    %v2152 = vsel %vm2062, %v2144, %v1990
    %2154 = vrot.lane.b32.xlu0 %v2151, 32
    %v2155 = vpop.permute.xlu0 %2154
    %v2156 = vsel %vm1666, %v2155, 0
    %2158 = vmatpush.msra.mxu0 0.0
    %2159 = vmatpush.msra.mxu0 0.0
    %2160 = vmatpush.msra.mxu0 0.0
    %2161 = vmatpush.msra.mxu0 0.0
    %2162 = vmatpush.msra.mxu0 0.0
    %2163 = vmatpush.msra.mxu0 0.0
    %2164 = vmatpush.msra.mxu0 0.0
    %2165 = vmatpush.msra.mxu0 0.0
    %2166 = vmatpush.msra.mxu0 0.0
    %2167 = vmatpush.msra.mxu0 0.0
    %2168 = vmatpush.msra.mxu0 0.0
    %2169 = vmatpush.msra.mxu0 0.0
    %2170 = vmatpush.msra.mxu0 %v1559
    %2171 = vmatpush.msra.mxu0 %v1558
    %2172 = vmatpush.msra.mxu0 %v1557
    %2173 = vmatpush.msra.mxu0 %v1556
    %2174 = vmatmul.f32.gmra.mxu0 %v2156
    %v2175 = vpop.f32.mrf.mxu0
    %v2176 = vadd.f32 %v2110, %v2175
    %2177 = vdwg.mxu0
    %v2178 = vadd.f32 %v2176, %v1690
    %v2179 = vtanh.pop %v2178
    %v2180 = vxor.u32 %v2178, 2147483648
    %v2181 = vmul.f32 %v2180, 1.442695
    %v2182 = vpow.pop %v2181
    %v2183 = vadd.f32 %v2182, 1.0
    %v2184 = vrcp.pop %v2183
    %v2185 = vmul.f32 %v2183, %v2184
    %v2186 = vsub.f32 1.0, %v2185
    %v2187 = vmul.f32 %v2184, %v2186
    %v2188 = vadd.f32 %v2184, %v2187
    %vm2189 = vweird.f32 %v2183
    %vm2190 = vweird.f32 %v2184
    %vm2191 = vmor %vm2189, %vm2190
    %v2192 = vsel %vm2191, %v2184, %v2188
    %v2193 = vand.u32 2147483647, %v2183
    %vm2194 = vcmp.eq.f32.partialorder %v2193, 8.507059e+37
    %v2195 = vand.u32 %v2183, 2147483648
    %v2196 = vor.u32 1.1754944e-38, %v2195
    %v2197 = vsel %vm2194, %v2196, %v2192
    %v2198 = vmul.f32 1.0, %v2197
    %v2199 = vsel %vm1571, %v2179, %v2198
    %v2200 = vmul.f32 %v2199, %v2056
    %2202 = vrot.lane.b32.xlu0 %v2199, 64
    %v2203 = vpop.permute.xlu0 %2202
    %v2205 = vmul.f32 %v2199, %v2203
    %2207 = vrot.lane.b32.xlu0 %v2205, 32
    %v2208 = vpop.permute.xlu0 %2207
    %v2210 = vadd.f32 %v2200, %v2208
    %v2211 = vtanh.pop %v2210
    %2213 = vrot.lane.b32.xlu0 %v2211, 64
    %v2214 = vpop.permute.xlu0 %2213
    %v2216 = vmul.f32 %v2199, %v2214
    %v2217 = vsel %vm2062, %v2216, %v2055
    %v2218 = vsel %vm2062, %v2210, %v2056
    %vm2219 = vcmp.gt.f32.partialorder %v1565, 0.0
    %v2220 = vsel %vm2219, 1, 0
    %2221 = vset.pattern.permute.xlu0 0
    %2222 = vperm.xlu0 %2221, %v2220
    %v2223 = vpop.permute.xlu0 %2222
    %vm2224 = vcmp.eq.s32.totalorder %v2223, 1
    %2227 = vrot.lane.b32.xlu0 %v2217, 64
    %v2228 = vpop.permute.xlu0 %2227
    %v2230 = vsel %vm1666, %v2155, %v2228
    %v2232 = vsel %vm1578, %v2230, 0
    %2234 = vmatpush.msra.mxu0 0.0
    %2235 = vmatpush.msra.mxu0 0.0
    %2236 = vmatpush.msra.mxu0 0.0
    %2237 = vmatpush.msra.mxu0 0.0
    %2238 = vmatpush.msra.mxu0 0.0
    %2239 = vmatpush.msra.mxu0 0.0
    %2240 = vmatpush.msra.mxu0 0.0
    %2241 = vmatpush.msra.mxu0 0.0
    %2242 = vmatpush.msra.mxu0 %v1554
    %2243 = vmatpush.msra.mxu0 %v1552
    %2244 = vmatpush.msra.mxu0 %v1550
    %2245 = vmatpush.msra.mxu0 %v1548
    %2246 = vmatpush.msra.mxu0 %v1546
    %2247 = vmatpush.msra.mxu0 %v1544
    %2248 = vmatpush.msra.mxu0 %v1542
    %2249 = vmatpush.msra.mxu0 %v1540
    %2250 = vmatmul.f32.gmra.mxu0 %v2232
    %v2251 = vpop.f32.mrf.mxu0
    %v2252 = vadd.f32 0.0, %v2251
    %2253 = vdwg.mxu0
    %2254 = vmatpush.msra.mxu0 0.0
    %2255 = vmatpush.msra.mxu0 0.0
    %2256 = vmatpush.msra.mxu0 0.0
    %2257 = vmatpush.msra.mxu0 0.0
    %2258 = vmatpush.msra.mxu0 0.0
    %2259 = vmatpush.msra.mxu0 0.0
    %2260 = vmatpush.msra.mxu0 0.0
    %2261 = vmatpush.msra.mxu0 0.0
    %2262 = vmatpush.msra.mxu0 %v1555
    %2263 = vmatpush.msra.mxu0 %v1553
    %2264 = vmatpush.msra.mxu0 %v1551
    %2265 = vmatpush.msra.mxu0 %v1549
    %2266 = vmatpush.msra.mxu0 %v1547
    %2267 = vmatpush.msra.mxu0 %v1545
    %2268 = vmatpush.msra.mxu0 %v1543
    %2269 = vmatpush.msra.mxu0 %v1541
    %2270 = vmatmul.f32.gmra.mxu0 %v2232
    %v2271 = vpop.f32.mrf.mxu0
    %v2272 = vadd.f32 0.0, %v2271
    %2273 = vdwg.mxu0
    %v2274 = vadd.f32 %v1536, %v2252
    %v2275 = vtanh.pop %v2274
    %v2276 = vxor.u32 %v2274, 2147483648
    %v2277 = vmul.f32 %v2276, 1.442695
    %v2278 = vpow.pop %v2277
    %v2279 = vadd.f32 %v2278, 1.0
    %v2280 = vrcp.pop %v2279
    %v2281 = vmul.f32 %v2279, %v2280
    %v2282 = vsub.f32 1.0, %v2281
    %v2283 = vmul.f32 %v2280, %v2282
    %v2284 = vadd.f32 %v2280, %v2283
    %vm2285 = vweird.f32 %v2279
    %vm2286 = vweird.f32 %v2280
    %vm2287 = vmor %vm2285, %vm2286
    %v2288 = vsel %vm2287, %v2280, %v2284
    %v2289 = vand.u32 2147483647, %v2279
    %vm2290 = vcmp.eq.f32.partialorder %v2289, 8.507059e+37
    %v2291 = vand.u32 %v2279, 2147483648
    %v2292 = vor.u32 1.1754944e-38, %v2291
    %v2293 = vsel %vm2290, %v2292, %v2288
    %v2294 = vmul.f32 1.0, %v2293
    %v2295 = vsel %vm1571, %v2275, %v2294
    %v2296 = vmul.f32 %v2295, %v2152
    %2298 = vrot.lane.b32.xlu0 %v2295, 64
    %v2299 = vpop.permute.xlu0 %2298
    %v2301 = vmul.f32 %v2295, %v2299
    %2303 = vrot.lane.b32.xlu0 %v2301, 32
    %v2304 = vpop.permute.xlu0 %2303
    %v2306 = vadd.f32 %v2296, %v2304
    %v2307 = vtanh.pop %v2306
    %2309 = vrot.lane.b32.xlu0 %v2307, 64
    %v2310 = vpop.permute.xlu0 %2309
    %v2312 = vmul.f32 %v2295, %v2310
    %v2313 = vsel %vm2224, %v2312, %v2151
    %v2314 = vsel %vm2224, %v2306, %v2152
    %2316 = vrot.lane.b32.xlu0 %v2313, 32
    %v2317 = vpop.permute.xlu0 %2316
    %v2318 = vsel %vm1666, %v2317, 0
    %2320 = vmatpush.msra.mxu0 0.0
    %2321 = vmatpush.msra.mxu0 0.0
    %2322 = vmatpush.msra.mxu0 0.0
    %2323 = vmatpush.msra.mxu0 0.0
    %2324 = vmatpush.msra.mxu0 0.0
    %2325 = vmatpush.msra.mxu0 0.0
    %2326 = vmatpush.msra.mxu0 0.0
    %2327 = vmatpush.msra.mxu0 0.0
    %2328 = vmatpush.msra.mxu0 0.0
    %2329 = vmatpush.msra.mxu0 0.0
    %2330 = vmatpush.msra.mxu0 0.0
    %2331 = vmatpush.msra.mxu0 0.0
    %2332 = vmatpush.msra.mxu0 %v1559
    %2333 = vmatpush.msra.mxu0 %v1558
    %2334 = vmatpush.msra.mxu0 %v1557
    %2335 = vmatpush.msra.mxu0 %v1556
    %2336 = vmatmul.f32.gmra.mxu0 %v2318
    %v2337 = vpop.f32.mrf.mxu0
    %v2338 = vadd.f32 %v2272, %v2337
    %2339 = vdwg.mxu0
    %v2340 = vadd.f32 %v2338, %v1690
    %v2341 = vtanh.pop %v2340
    %v2342 = vxor.u32 %v2340, 2147483648
    %v2343 = vmul.f32 %v2342, 1.442695
    %v2344 = vpow.pop %v2343
    %v2345 = vadd.f32 %v2344, 1.0
    %v2346 = vrcp.pop %v2345
    %v2347 = vmul.f32 %v2345, %v2346
    %v2348 = vsub.f32 1.0, %v2347
    %v2349 = vmul.f32 %v2346, %v2348
    %v2350 = vadd.f32 %v2346, %v2349
    %vm2351 = vweird.f32 %v2345
    %vm2352 = vweird.f32 %v2346
    %vm2353 = vmor %vm2351, %vm2352
    %v2354 = vsel %vm2353, %v2346, %v2350
    %v2355 = vand.u32 2147483647, %v2345
    %vm2356 = vcmp.eq.f32.partialorder %v2355, 8.507059e+37
    %v2357 = vand.u32 %v2345, 2147483648
    %v2358 = vor.u32 1.1754944e-38, %v2357
    %v2359 = vsel %vm2356, %v2358, %v2354
    %v2360 = vmul.f32 1.0, %v2359
    %v2361 = vsel %vm1571, %v2341, %v2360
    %v2362 = vmul.f32 %v2361, %v2218
    %2364 = vrot.lane.b32.xlu0 %v2361, 64
    %v2365 = vpop.permute.xlu0 %2364
    %v2367 = vmul.f32 %v2361, %v2365
    %2369 = vrot.lane.b32.xlu0 %v2367, 32
    %v2370 = vpop.permute.xlu0 %2369
    %v2372 = vadd.f32 %v2362, %v2370
    %v2373 = vtanh.pop %v2372
    %2375 = vrot.lane.b32.xlu0 %v2373, 64
    %v2376 = vpop.permute.xlu0 %2375
    %v2378 = vmul.f32 %v2361, %v2376
    %v2379 = vsel %vm2224, %v2378, %v2217
    %v2380 = vsel %vm2224, %v2372, %v2218
    %vm2381 = vcmp.gt.f32.partialorder %v1566, 0.0
    %v2382 = vsel %vm2381, 1, 0
    %2383 = vset.pattern.permute.xlu0 0
    %2384 = vperm.xlu0 %2383, %v2382
    %v2385 = vpop.permute.xlu0 %2384
    %vm2386 = vcmp.eq.s32.totalorder %v2385, 1
    %2389 = vrot.lane.b32.xlu0 %v2379, 64
    %v2390 = vpop.permute.xlu0 %2389
    %v2392 = vsel %vm1666, %v2317, %v2390
    %v2394 = vsel %vm1578, %v2392, 0
    %2396 = vmatpush.msra.mxu0 0.0
    %2397 = vmatpush.msra.mxu0 0.0
    %2398 = vmatpush.msra.mxu0 0.0
    %2399 = vmatpush.msra.mxu0 0.0
    %2400 = vmatpush.msra.mxu0 0.0
    %2401 = vmatpush.msra.mxu0 0.0
    %2402 = vmatpush.msra.mxu0 0.0
    %2403 = vmatpush.msra.mxu0 0.0
    %2404 = vmatpush.msra.mxu0 %v1554
    %2405 = vmatpush.msra.mxu0 %v1552
    %2406 = vmatpush.msra.mxu0 %v1550
    %2407 = vmatpush.msra.mxu0 %v1548
    %2408 = vmatpush.msra.mxu0 %v1546
    %2409 = vmatpush.msra.mxu0 %v1544
    %2410 = vmatpush.msra.mxu0 %v1542
    %2411 = vmatpush.msra.mxu0 %v1540
    %2412 = vmatmul.f32.gmra.mxu0 %v2394
    %v2413 = vpop.f32.mrf.mxu0
    %v2414 = vadd.f32 0.0, %v2413
    %2415 = vdwg.mxu0
    %2416 = vmatpush.msra.mxu0 0.0
    %2417 = vmatpush.msra.mxu0 0.0
    %2418 = vmatpush.msra.mxu0 0.0
    %2419 = vmatpush.msra.mxu0 0.0
    %2420 = vmatpush.msra.mxu0 0.0
    %2421 = vmatpush.msra.mxu0 0.0
    %2422 = vmatpush.msra.mxu0 0.0
    %2423 = vmatpush.msra.mxu0 0.0
    %2424 = vmatpush.msra.mxu0 %v1555
    %2425 = vmatpush.msra.mxu0 %v1553
    %2426 = vmatpush.msra.mxu0 %v1551
    %2427 = vmatpush.msra.mxu0 %v1549
    %2428 = vmatpush.msra.mxu0 %v1547
    %2429 = vmatpush.msra.mxu0 %v1545
    %2430 = vmatpush.msra.mxu0 %v1543
    %2431 = vmatpush.msra.mxu0 %v1541
    %2432 = vmatmul.f32.gmra.mxu0 %v2394
    %v2433 = vpop.f32.mrf.mxu0
    %v2434 = vadd.f32 0.0, %v2433
    %2435 = vdwg.mxu0
    %v2436 = vadd.f32 %v1537, %v2414
    %v2437 = vtanh.pop %v2436
    %v2438 = vxor.u32 %v2436, 2147483648
    %v2439 = vmul.f32 %v2438, 1.442695
    %v2440 = vpow.pop %v2439
    %v2441 = vadd.f32 %v2440, 1.0
    %v2442 = vrcp.pop %v2441
    %v2443 = vmul.f32 %v2441, %v2442
    %v2444 = vsub.f32 1.0, %v2443
    %v2445 = vmul.f32 %v2442, %v2444
    %v2446 = vadd.f32 %v2442, %v2445
    %vm2447 = vweird.f32 %v2441
    %vm2448 = vweird.f32 %v2442
    %vm2449 = vmor %vm2447, %vm2448
    %v2450 = vsel %vm2449, %v2442, %v2446
    %v2451 = vand.u32 2147483647, %v2441
    %vm2452 = vcmp.eq.f32.partialorder %v2451, 8.507059e+37
    %v2453 = vand.u32 %v2441, 2147483648
    %v2454 = vor.u32 1.1754944e-38, %v2453
    %v2455 = vsel %vm2452, %v2454, %v2450
    %v2456 = vmul.f32 1.0, %v2455
    %v2457 = vsel %vm1571, %v2437, %v2456
    %v2458 = vmul.f32 %v2457, %v2314
    %2460 = vrot.lane.b32.xlu0 %v2457, 64
    %v2461 = vpop.permute.xlu0 %2460
    %v2463 = vmul.f32 %v2457, %v2461
    %2465 = vrot.lane.b32.xlu0 %v2463, 32
    %v2466 = vpop.permute.xlu0 %2465
    %v2468 = vadd.f32 %v2458, %v2466
    %v2469 = vtanh.pop %v2468
    %2471 = vrot.lane.b32.xlu0 %v2469, 64
    %v2472 = vpop.permute.xlu0 %2471
    %v2474 = vmul.f32 %v2457, %v2472
    %v2475 = vsel %vm2386, %v2474, %v2313
    %v2476 = vsel %vm2386, %v2468, %v2314
    %2478 = vrot.lane.b32.xlu0 %v2475, 32
    %v2479 = vpop.permute.xlu0 %2478
    %v2480 = vsel %vm1666, %v2479, 0
    %2482 = vmatpush.msra.mxu0 0.0
    %2483 = vmatpush.msra.mxu0 0.0
    %2484 = vmatpush.msra.mxu0 0.0
    %2485 = vmatpush.msra.mxu0 0.0
    %2486 = vmatpush.msra.mxu0 0.0
    %2487 = vmatpush.msra.mxu0 0.0
    %2488 = vmatpush.msra.mxu0 0.0
    %2489 = vmatpush.msra.mxu0 0.0
    %2490 = vmatpush.msra.mxu0 0.0
    %2491 = vmatpush.msra.mxu0 0.0
    %2492 = vmatpush.msra.mxu0 0.0
    %2493 = vmatpush.msra.mxu0 0.0
    %2494 = vmatpush.msra.mxu0 %v1559
    %2495 = vmatpush.msra.mxu0 %v1558
    %2496 = vmatpush.msra.mxu0 %v1557
    %2497 = vmatpush.msra.mxu0 %v1556
    %2498 = vmatmul.f32.gmra.mxu0 %v2480
    %v2499 = vpop.f32.mrf.mxu0
    %v2500 = vadd.f32 %v2434, %v2499
    %2501 = vdwg.mxu0
    %v2502 = vadd.f32 %v2500, %v1690
    %v2503 = vtanh.pop %v2502
    %v2504 = vxor.u32 %v2502, 2147483648
    %v2505 = vmul.f32 %v2504, 1.442695
    %v2506 = vpow.pop %v2505
    %v2507 = vadd.f32 %v2506, 1.0
    %v2508 = vrcp.pop %v2507
    %v2509 = vmul.f32 %v2507, %v2508
    %v2510 = vsub.f32 1.0, %v2509
    %v2511 = vmul.f32 %v2508, %v2510
    %v2512 = vadd.f32 %v2508, %v2511
    %vm2513 = vweird.f32 %v2507
    %vm2514 = vweird.f32 %v2508
    %vm2515 = vmor %vm2513, %vm2514
    %v2516 = vsel %vm2515, %v2508, %v2512
    %v2517 = vand.u32 2147483647, %v2507
    %vm2518 = vcmp.eq.f32.partialorder %v2517, 8.507059e+37
    %v2519 = vand.u32 %v2507, 2147483648
    %v2520 = vor.u32 1.1754944e-38, %v2519
    %v2521 = vsel %vm2518, %v2520, %v2516
    %v2522 = vmul.f32 1.0, %v2521
    %v2523 = vsel %vm1571, %v2503, %v2522
    %v2524 = vmul.f32 %v2523, %v2380
    %2526 = vrot.lane.b32.xlu0 %v2523, 64
    %v2527 = vpop.permute.xlu0 %2526
    %v2529 = vmul.f32 %v2523, %v2527
    %2531 = vrot.lane.b32.xlu0 %v2529, 32
    %v2532 = vpop.permute.xlu0 %2531
    %v2534 = vadd.f32 %v2524, %v2532
    %v2535 = vtanh.pop %v2534
    %2537 = vrot.lane.b32.xlu0 %v2535, 64
    %v2538 = vpop.permute.xlu0 %2537
    %v2540 = vmul.f32 %v2523, %v2538
    %v2541 = vsel %vm2386, %v2540, %v2379
    %v2542 = vsel %vm2386, %v2534, %v2380
    %vm2543 = vcmp.gt.f32.partialorder %v1567, 0.0
    %v2544 = vsel %vm2543, 1, 0
    %2545 = vset.pattern.permute.xlu0 0
    %2546 = vperm.xlu0 %2545, %v2544
    %v2547 = vpop.permute.xlu0 %2546
    %vm2548 = vcmp.eq.s32.totalorder %v2547, 1
    %2551 = vrot.lane.b32.xlu0 %v2541, 64
    %v2552 = vpop.permute.xlu0 %2551
    %v2554 = vsel %vm1666, %v2479, %v2552
    %v2556 = vsel %vm1578, %v2554, 0
    %2558 = vmatpush.msra.mxu0 0.0
    %2559 = vmatpush.msra.mxu0 0.0
    %2560 = vmatpush.msra.mxu0 0.0
    %2561 = vmatpush.msra.mxu0 0.0
    %2562 = vmatpush.msra.mxu0 0.0
    %2563 = vmatpush.msra.mxu0 0.0
    %2564 = vmatpush.msra.mxu0 0.0
    %2565 = vmatpush.msra.mxu0 0.0
    %2566 = vmatpush.msra.mxu0 %v1554
    %2567 = vmatpush.msra.mxu0 %v1552
    %2568 = vmatpush.msra.mxu0 %v1550
    %2569 = vmatpush.msra.mxu0 %v1548
    %2570 = vmatpush.msra.mxu0 %v1546
    %2571 = vmatpush.msra.mxu0 %v1544
    %2572 = vmatpush.msra.mxu0 %v1542
    %2573 = vmatpush.msra.mxu0 %v1540
    %2574 = vmatmul.f32.gmra.mxu0 %v2556
    %v2575 = vpop.f32.mrf.mxu0
    %v2576 = vadd.f32 0.0, %v2575
    %2577 = vdwg.mxu0
    %2578 = vmatpush.msra.mxu0 0.0
    %2579 = vmatpush.msra.mxu0 0.0
    %2580 = vmatpush.msra.mxu0 0.0
    %2581 = vmatpush.msra.mxu0 0.0
    %2582 = vmatpush.msra.mxu0 0.0
    %2583 = vmatpush.msra.mxu0 0.0
    %2584 = vmatpush.msra.mxu0 0.0
    %2585 = vmatpush.msra.mxu0 0.0
    %2586 = vmatpush.msra.mxu0 %v1555
    %2587 = vmatpush.msra.mxu0 %v1553
    %2588 = vmatpush.msra.mxu0 %v1551
    %2589 = vmatpush.msra.mxu0 %v1549
    %2590 = vmatpush.msra.mxu0 %v1547
    %2591 = vmatpush.msra.mxu0 %v1545
    %2592 = vmatpush.msra.mxu0 %v1543
    %2593 = vmatpush.msra.mxu0 %v1541
    %2594 = vmatmul.f32.gmra.mxu0 %v2556
    %v2595 = vpop.f32.mrf.mxu0
    %v2596 = vadd.f32 0.0, %v2595
    %2597 = vdwg.mxu0
    %v2598 = vadd.f32 %v1538, %v2576
    %v2599 = vtanh.pop %v2598
    %v2600 = vxor.u32 %v2598, 2147483648
    %v2601 = vmul.f32 %v2600, 1.442695
    %v2602 = vpow.pop %v2601
    %v2603 = vadd.f32 %v2602, 1.0
    %v2604 = vrcp.pop %v2603
    %v2605 = vmul.f32 %v2603, %v2604
    %v2606 = vsub.f32 1.0, %v2605
    %v2607 = vmul.f32 %v2604, %v2606
    %v2608 = vadd.f32 %v2604, %v2607
    %vm2609 = vweird.f32 %v2603
    %vm2610 = vweird.f32 %v2604
    %vm2611 = vmor %vm2609, %vm2610
    %v2612 = vsel %vm2611, %v2604, %v2608
    %v2613 = vand.u32 2147483647, %v2603
    %vm2614 = vcmp.eq.f32.partialorder %v2613, 8.507059e+37
    %v2615 = vand.u32 %v2603, 2147483648
    %v2616 = vor.u32 1.1754944e-38, %v2615
    %v2617 = vsel %vm2614, %v2616, %v2612
    %v2618 = vmul.f32 1.0, %v2617
    %v2619 = vsel %vm1571, %v2599, %v2618
    %v2620 = vmul.f32 %v2619, %v2476
    %2622 = vrot.lane.b32.xlu0 %v2619, 64
    %v2623 = vpop.permute.xlu0 %2622
    %v2625 = vmul.f32 %v2619, %v2623
    %2627 = vrot.lane.b32.xlu0 %v2625, 32
    %v2628 = vpop.permute.xlu0 %2627
    %v2630 = vadd.f32 %v2620, %v2628
    %v2631 = vtanh.pop %v2630
    %2633 = vrot.lane.b32.xlu0 %v2631, 64
    %v2634 = vpop.permute.xlu0 %2633
    %v2636 = vmul.f32 %v2619, %v2634
    %v2637 = vsel %vm2548, %v2636, %v2475
    %v2638 = vsel %vm2548, %v2630, %v2476
    %2640 = vrot.lane.b32.xlu0 %v2637, 32
    %v2641 = vpop.permute.xlu0 %2640
    %v2642 = vsel %vm1666, %v2641, 0
    %2644 = vmatpush.msra.mxu0 0.0
    %2645 = vmatpush.msra.mxu0 0.0
    %2646 = vmatpush.msra.mxu0 0.0
    %2647 = vmatpush.msra.mxu0 0.0
    %2648 = vmatpush.msra.mxu0 0.0
    %2649 = vmatpush.msra.mxu0 0.0
    %2650 = vmatpush.msra.mxu0 0.0
    %2651 = vmatpush.msra.mxu0 0.0
    %2652 = vmatpush.msra.mxu0 0.0
    %2653 = vmatpush.msra.mxu0 0.0
    %2654 = vmatpush.msra.mxu0 0.0
    %2655 = vmatpush.msra.mxu0 0.0
    %2656 = vmatpush.msra.mxu0 %v1559
    %2657 = vmatpush.msra.mxu0 %v1558
    %2658 = vmatpush.msra.mxu0 %v1557
    %2659 = vmatpush.msra.mxu0 %v1556
    %2660 = vmatmul.f32.gmra.mxu0 %v2642
    %v2661 = vpop.f32.mrf.mxu0
    %v2662 = vadd.f32 %v2596, %v2661
    %2663 = vdwg.mxu0
    %v2664 = vadd.f32 %v2662, %v1690
    %v2665 = vtanh.pop %v2664
    %v2666 = vxor.u32 %v2664, 2147483648
    %v2667 = vmul.f32 %v2666, 1.442695
    %v2668 = vpow.pop %v2667
    %v2669 = vadd.f32 %v2668, 1.0
    %v2670 = vrcp.pop %v2669
    %v2671 = vmul.f32 %v2669, %v2670
    %v2672 = vsub.f32 1.0, %v2671
    %v2673 = vmul.f32 %v2670, %v2672
    %v2674 = vadd.f32 %v2670, %v2673
    %vm2675 = vweird.f32 %v2669
    %vm2676 = vweird.f32 %v2670
    %vm2677 = vmor %vm2675, %vm2676
    %v2678 = vsel %vm2677, %v2670, %v2674
    %v2679 = vand.u32 2147483647, %v2669
    %vm2680 = vcmp.eq.f32.partialorder %v2679, 8.507059e+37
    %v2681 = vand.u32 %v2669, 2147483648
    %v2682 = vor.u32 1.1754944e-38, %v2681
    %v2683 = vsel %vm2680, %v2682, %v2678
    %v2684 = vmul.f32 1.0, %v2683
    %v2685 = vsel %vm1571, %v2665, %v2684
    %v2686 = vmul.f32 %v2685, %v2542
    %2688 = vrot.lane.b32.xlu0 %v2685, 64
    %v2689 = vpop.permute.xlu0 %2688
    %v2691 = vmul.f32 %v2685, %v2689
    %2693 = vrot.lane.b32.xlu0 %v2691, 32
    %v2694 = vpop.permute.xlu0 %2693
    %v2696 = vadd.f32 %v2686, %v2694
    %v2697 = vtanh.pop %v2696
    %2699 = vrot.lane.b32.xlu0 %v2697, 64
    %v2700 = vpop.permute.xlu0 %2699
    %v2702 = vmul.f32 %v2685, %v2700
    %v2703 = vsel %vm2548, %v2702, %v2541
    %v2704 = vsel %vm2548, %v2696, %v2542
    %vm2705 = vcmp.gt.f32.partialorder %v1568, 0.0
    %v2706 = vsel %vm2705, 1, 0
    %2707 = vset.pattern.permute.xlu0 0
    %2708 = vperm.xlu0 %2707, %v2706
    %v2709 = vpop.permute.xlu0 %2708
    %vm2710 = vcmp.eq.s32.totalorder %v2709, 1
    %2713 = vrot.lane.b32.xlu0 %v2703, 64
    %v2714 = vpop.permute.xlu0 %2713
    %v2716 = vsel %vm1666, %v2641, %v2714
    %v2718 = vsel %vm1578, %v2716, 0
    %2720 = vmatpush.msra.mxu0 0.0
    %2721 = vmatpush.msra.mxu0 0.0
    %2722 = vmatpush.msra.mxu0 0.0
    %2723 = vmatpush.msra.mxu0 0.0
    %2724 = vmatpush.msra.mxu0 0.0
    %2725 = vmatpush.msra.mxu0 0.0
    %2726 = vmatpush.msra.mxu0 0.0
    %2727 = vmatpush.msra.mxu0 0.0
    %2728 = vmatpush.msra.mxu0 %v1554
    %2729 = vmatpush.msra.mxu0 %v1552
    %2730 = vmatpush.msra.mxu0 %v1550
    %2731 = vmatpush.msra.mxu0 %v1548
    %2732 = vmatpush.msra.mxu0 %v1546
    %2733 = vmatpush.msra.mxu0 %v1544
    %2734 = vmatpush.msra.mxu0 %v1542
    %2735 = vmatpush.msra.mxu0 %v1540
    %2736 = vmatmul.f32.gmra.mxu0 %v2718
    %v2737 = vpop.f32.mrf.mxu0
    %v2738 = vadd.f32 0.0, %v2737
    %2739 = vdwg.mxu0
    %2740 = vmatpush.msra.mxu0 0.0
    %2741 = vmatpush.msra.mxu0 0.0
    %2742 = vmatpush.msra.mxu0 0.0
    %2743 = vmatpush.msra.mxu0 0.0
    %2744 = vmatpush.msra.mxu0 0.0
    %2745 = vmatpush.msra.mxu0 0.0
    %2746 = vmatpush.msra.mxu0 0.0
    %2747 = vmatpush.msra.mxu0 0.0
    %2748 = vmatpush.msra.mxu0 %v1555
    %2749 = vmatpush.msra.mxu0 %v1553
    %2750 = vmatpush.msra.mxu0 %v1551
    %2751 = vmatpush.msra.mxu0 %v1549
    %2752 = vmatpush.msra.mxu0 %v1547
    %2753 = vmatpush.msra.mxu0 %v1545
    %2754 = vmatpush.msra.mxu0 %v1543
    %2755 = vmatpush.msra.mxu0 %v1541
    %2756 = vmatmul.f32.gmra.mxu0 %v2718
    %v2757 = vpop.f32.mrf.mxu0
    %v2758 = vadd.f32 0.0, %v2757
    %2759 = vdwg.mxu0
    %v2760 = vadd.f32 %v1539, %v2738
    %v2761 = vtanh.pop %v2760
    %v2762 = vxor.u32 %v2760, 2147483648
    %v2763 = vmul.f32 %v2762, 1.442695
    %v2764 = vpow.pop %v2763
    %v2765 = vadd.f32 %v2764, 1.0
    %v2766 = vrcp.pop %v2765
    %v2767 = vmul.f32 %v2765, %v2766
    %v2768 = vsub.f32 1.0, %v2767
    %v2769 = vmul.f32 %v2766, %v2768
    %v2770 = vadd.f32 %v2766, %v2769
    %vm2771 = vweird.f32 %v2765
    %vm2772 = vweird.f32 %v2766
    %vm2773 = vmor %vm2771, %vm2772
    %v2774 = vsel %vm2773, %v2766, %v2770
    %v2775 = vand.u32 2147483647, %v2765
    %vm2776 = vcmp.eq.f32.partialorder %v2775, 8.507059e+37
    %v2777 = vand.u32 %v2765, 2147483648
    %v2778 = vor.u32 1.1754944e-38, %v2777
    %v2779 = vsel %vm2776, %v2778, %v2774
    %v2780 = vmul.f32 1.0, %v2779
    %v2781 = vsel %vm1571, %v2761, %v2780
    %v2782 = vmul.f32 %v2781, %v2638
    %2784 = vrot.lane.b32.xlu0 %v2781, 64
    %v2785 = vpop.permute.xlu0 %2784
    %v2787 = vmul.f32 %v2781, %v2785
    %2789 = vrot.lane.b32.xlu0 %v2787, 32
    %v2790 = vpop.permute.xlu0 %2789
    %v2792 = vadd.f32 %v2782, %v2790
    %v2793 = vtanh.pop %v2792
    %2795 = vrot.lane.b32.xlu0 %v2793, 64
    %v2796 = vpop.permute.xlu0 %2795
    %v2798 = vmul.f32 %v2781, %v2796
    %v2799 = vsel %vm2710, %v2798, %v2637
    %2801 = vrot.lane.b32.xlu0 %v2799, 32
    %v2802 = vpop.permute.xlu0 %2801
    %v2803 = vsel %vm1666, %v2802, 0
    %2805 = vmatpush.msra.mxu0 0.0
    %2806 = vmatpush.msra.mxu0 0.0
    %2807 = vmatpush.msra.mxu0 0.0
    %2808 = vmatpush.msra.mxu0 0.0
    %2809 = vmatpush.msra.mxu0 0.0
    %2810 = vmatpush.msra.mxu0 0.0
    %2811 = vmatpush.msra.mxu0 0.0
    %2812 = vmatpush.msra.mxu0 0.0
    %2813 = vmatpush.msra.mxu0 0.0
    %2814 = vmatpush.msra.mxu0 0.0
    %2815 = vmatpush.msra.mxu0 0.0
    %2816 = vmatpush.msra.mxu0 0.0
    %2817 = vmatpush.msra.mxu0 %v1559
    %2818 = vmatpush.msra.mxu0 %v1558
    %2819 = vmatpush.msra.mxu0 %v1557
    %2820 = vmatpush.msra.mxu0 %v1556
    %2821 = vmatmul.f32.gmra.mxu0 %v2803
    %v2822 = vpop.f32.mrf.mxu0
    %v2823 = vadd.f32 %v2758, %v2822
    %2824 = vdwg.mxu0
    %v2825 = vadd.f32 %v2823, %v1690
    %v2826 = vtanh.pop %v2825
    %v2827 = vxor.u32 %v2825, 2147483648
    %v2828 = vmul.f32 %v2827, 1.442695
    %v2829 = vpow.pop %v2828
    %v2830 = vadd.f32 %v2829, 1.0
    %v2831 = vrcp.pop %v2830
    %v2832 = vmul.f32 %v2830, %v2831
    %v2833 = vsub.f32 1.0, %v2832
    %v2834 = vmul.f32 %v2831, %v2833
    %v2835 = vadd.f32 %v2831, %v2834
    %vm2836 = vweird.f32 %v2830
    %vm2837 = vweird.f32 %v2831
    %vm2838 = vmor %vm2836, %vm2837
    %v2839 = vsel %vm2838, %v2831, %v2835
    %v2840 = vand.u32 2147483647, %v2830
    %vm2841 = vcmp.eq.f32.partialorder %v2840, 8.507059e+37
    %v2842 = vand.u32 %v2830, 2147483648
    %v2843 = vor.u32 1.1754944e-38, %v2842
    %v2844 = vsel %vm2841, %v2843, %v2839
    %v2845 = vmul.f32 1.0, %v2844
    %v2846 = vsel %vm1571, %v2826, %v2845
    %v2847 = vmul.f32 %v2846, %v2704
    %2849 = vrot.lane.b32.xlu0 %v2846, 64
    %v2850 = vpop.permute.xlu0 %2849
    %v2852 = vmul.f32 %v2846, %v2850
    %2854 = vrot.lane.b32.xlu0 %v2852, 32
    %v2855 = vpop.permute.xlu0 %2854
    %v2857 = vadd.f32 %v2847, %v2855
    %v2858 = vtanh.pop %v2857
    %2860 = vrot.lane.b32.xlu0 %v2858, 64
    %v2861 = vpop.permute.xlu0 %2860
    %v2863 = vmul.f32 %v2846, %v2861
    %v2864 = vsel %vm2710, %v2863, %v2703
    %v2865 = vld [vmem:[%s11] sm:$0xff]
    %v2866 = vld [vmem:[%s11 + $0x8] sm:$0xff]
    %v2867 = vld [vmem:[%s11 + $0x10] sm:$0xff]
    %v2868 = vld [vmem:[%s11 + $0x18] sm:$0xff]
    %v2869 = vld [vmem:[%s12] sm:$0x1]
    %v2871 = vperm.slane %v2869, 0
    %2874 = vrot.lane.b32.xlu0 %v2864, 32
    %v2875 = vpop.permute.xlu0 %2874
    %v2876 = vsel %vm1666, %v2875, 0
    %2878 = vmatpush.msra.mxu0 0.0
    %2879 = vmatpush.msra.mxu0 0.0
    %2880 = vmatpush.msra.mxu0 0.0
    %2881 = vmatpush.msra.mxu0 0.0
    %2882 = vmatpush.msra.mxu0 0.0
    %2883 = vmatpush.msra.mxu0 0.0
    %2884 = vmatpush.msra.mxu0 0.0
    %2885 = vmatpush.msra.mxu0 0.0
    %2886 = vmatpush.msra.mxu0 0.0
    %2887 = vmatpush.msra.mxu0 0.0
    %2888 = vmatpush.msra.mxu0 0.0
    %2889 = vmatpush.msra.mxu0 0.0
    %2890 = vmatpush.msra.mxu0 %v2868
    %2891 = vmatpush.msra.mxu0 %v2867
    %2892 = vmatpush.msra.mxu0 %v2866
    %2893 = vmatpush.msra.mxu0 %v2865
    %2894 = vmatmul.f32.gmra.mxu0 %v2803
    %v2895 = vpop.f32.mrf.mxu0
    %v2896 = vadd.f32 %v2871, %v2895
    %2897 = vmatmul.f32.gmra.mxu0 %v2876
    %v2898 = vpop.f32.mrf.mxu0
    %v2899 = vadd.f32 %v2871, %v2898
    %2900 = vdwg.mxu0
    %vm2901 = vcmp.ge.f32.partialorder %v2896, 0.0
    %vm2902 = vcmp.ge.f32.partialorder %v2899, 0.0
    %v2903 = vmul.f32 %v2896, 0.22916667
    %v2904 = vmul.f32 %v2899, 0.22916667
    %v2905 = vsel %vm2901, %v2896, %v2903
    %v2906 = vsel %vm2902, %v2899, %v2904
    %2907 = vst [vmem:[#allocation5] sm:$0xff] %v2905
    %2908 = vst [vmem:[#allocation5 + $0x8] sm:$0xff] %v2906
    // Predicated region
    $region58: #{tpu_custom_call.1} parent=1 // pred_check
      _
    $region59: #{tpu_custom_call.1} parent=1 // pred_check_branch
      %2910 = sbr.rel (0) target = $region61
    $region60: #{tpu_custom_call.1} parent=1 // pred_region
      %2912 = vsyncadd [#allocation4], 0
      %s2913 = sshll.u32 [#allocation5], 4
      %s2914 = int_to_ptr.vmem [resolvable:$true] %s2913
      %s2915 = sshll.u32 %s13, 4
      %s2916 = int_to_ptr.hbm [resolvable:$true] %s2915
      %2921 = dma.vmem_to_hbm [thread:$0]  %s2914, 256, %s2916, [#allocation4], 128, 128, 8
    $region61: #{tpu_custom_call.1} parent=1 // pred_fallthru
      _
    // Predicated region
    $region62: #{tpu_custom_call.1} parent=1 // pred_check
      _
    $region63: #{tpu_custom_call.1} parent=1 // pred_check_branch
      %2923 = sbr.rel (0) target = $region65
    $region64: #{tpu_custom_call.1} parent=1 // pred_region
      %2925 = dma.done [#allocation4], 256
    $region65: #{tpu_custom_call.1} parent=1 // pred_fallthru
      _
    %2926 = vsyncpa [#allocation3], 1
    %2927 = vsyncpa [#allocation4], 1

</llo_original>
